<compile_context>
chip_gen: v6e
topology: v6e:2x2x1
jax: 0.10.0
libtpu: 0.0.40
codegen_flags: <defaults>
</compile_context>

<pallas_src>
import jax
import jax.numpy as jnp
import numpy as np
from jax import lax
from jax.experimental import pallas as pl
from jax.experimental.pallas import tpu as pltpu


_GATE_ORDER = (0, 1, 3, 2)  # PyTorch rows [i, f, g, o] -> our block order [i, f, o, g]


# ----------------------------- weight packing (host, one-time) ---------------

def pack_params(params):
    """One-time packing of PyTorch-layout LSTM weights (hoisted out of the
    per-call jit path).  Returns a flat tuple (Wx_0, Whh_0, b_0, Wx_1, ...).

    Column layout (width 8H), gate blocks interleaved by direction:
        [i_f, i_b, f_f, f_b, o_f, o_b, g_f, g_b]
    Wx_l  : (2*in_l, 8H)  rows 0:in_l multiply the normal-time-order input,
                          rows in_l:2*in_l multiply the time-REVERSED input,
                          so the pre-loop GEMM produces a direction-resolved
                          projection buffer.
    Whh_l : (2H, 8H)      block "diagonal": rows 0:H -> fwd cols, H:2H -> bwd.
    b_l   : (1, 8H)       b_ih + b_hh for both directions.
    """
    packed = []
    for layer in params:
        w_ih_f, w_hh_f, b_ih_f, b_hh_f = [np.asarray(a, np.float32) for a in layer["fwd"]]
        w_ih_b, w_hh_b, b_ih_b, b_hh_b = [np.asarray(a, np.float32) for a in layer["bwd"]]
        H = w_hh_f.shape[1]
        in_dim = w_ih_f.shape[1]

        def gate(w, k):                       # (4H, X) -> (X, H) block for gate k
            return w[k * H:(k + 1) * H, :].T

        z_in = np.zeros((in_dim, H), np.float32)
        z_h = np.zeros((H, H), np.float32)

        top, bot = [], []                     # Wx rows: normal-order / reversed-order input
        rtop, rbot = [], []                   # Whh rows: h_fwd / h_bwd
        bcols = []
        bf = b_ih_f + b_hh_f
        bb = b_ih_b + b_hh_b
        for k in _GATE_ORDER:
            top += [gate(w_ih_f, k), z_in]
            bot += [z_in, gate(w_ih_b, k)]
            rtop += [gate(w_hh_f, k), z_h]
            rbot += [z_h, gate(w_hh_b, k)]
            bcols += [bf[k * H:(k + 1) * H], bb[k * H:(k + 1) * H]]

        Wx = np.concatenate([np.concatenate(top, 1), np.concatenate(bot, 1)], 0)
        Whh = np.concatenate([np.concatenate(rtop, 1), np.concatenate(rbot, 1)], 0)
        b = np.concatenate(bcols)[None, :]
        packed += [jnp.asarray(Wx), jnp.asarray(Whh), jnp.asarray(b)]
    return tuple(packed)


# --------------------------------- kernel -----------------------------------

def _make_bilstm_kernel(num_layers, seq, bp, hidden):
    H, B = hidden, bp

    def kernel(*refs):
        n_w = 3 * num_layers
        x_ref = refs[0]                        # (seq*B, 2*vector_dim) [normal | reversed]
        w_refs = refs[1:1 + n_w]
        o_ref = refs[1 + n_w]                  # (seq*B, 2H)
        proj_scr = refs[2 + n_w]               # (seq*B, 8H) f32, direction-resolved proj
        act_scr = refs[3 + n_w]                # (seq*B, 4H) f32, [normal 2H | reversed 2H]

        for l in range(num_layers):
            wx_ref, whh_ref, b_ref = w_refs[3 * l:3 * l + 3]
            last = l == num_layers - 1

            # 1) Whole-sequence, both-direction, direction-RESOLVED input
            #    projection: single lane-dense GEMM with bias folded in.
            #    Nothing here sits on the h->h serial chain.
            lhs = (x_ref[...] if l == 0 else act_scr[...]).astype(jnp.float32)
            proj_scr[...] = (
                jnp.dot(lhs, wx_ref[...], preferred_element_type=jnp.float32)
                + b_ref[...])

            # TODO(synk): for large H, read whh adjacent to the dot inside a
            # lax.fori_loop(unroll=True) or stage it in MXU weight registers;
            # at H=32/seq=8 the hoisted value (16 vregs) is fine.
            whh = whh_ref[...]                 # (2H, 8H)

            # 2) Fused fwd+bwd recurrence; state lives in registers; loop
            #    fully unrolled (seq static).
            h = jnp.zeros((B, 2 * H), jnp.float32)      # [h_fwd | h_bwd]
            c = jnp.zeros((B, 2 * H), jnp.float32)      # [c_fwd | c_bwd]
            for t in range(seq):
                rt = seq - 1 - t
                r0 = t * B                     # sublane-aligned (B multiple of 8)
                q0 = rt * B
                gates = proj_scr[r0:r0 + B, :] + jnp.dot(
                    h, whh, preferred_element_type=jnp.float32)
                # sigmoid via tanh: one EUP op + one FMA on the serial chain.
                sig = 0.5 * jnp.tanh(0.5 * gates[:, :6 * H]) + 0.5
                g = jnp.tanh(gates[:, 6 * H:])            # [g_f | g_b]
                i_g = sig[:, :2 * H]
                f_g = sig[:, 2 * H:4 * H]
                o_g = sig[:, 4 * H:6 * H]
                c = f_g * c + i_g * g
                h = o_g * jnp.tanh(c)
                h_f = h[:, :H]
                h_b = h[:, H:]
                if last:
                    # fwd hidden belongs at time t, bwd hidden at time rt.
                    o_ref[r0:r0 + B, 0:H] = h_f.astype(o_ref.dtype)
                    o_ref[q0:q0 + B, H:2 * H] = h_b.astype(o_ref.dtype)
                else:
                    # normal-time-order copy (feeds next layer's fwd columns)
                    act_scr[r0:r0 + B, 0:H] = h_f
                    act_scr[q0:q0 + B, H:2 * H] = h_b
                    # time-reversed copy (feeds next layer's bwd columns)
                    act_scr[q0:q0 + B, 2 * H:3 * H] = h_f
                    act_scr[r0:r0 + B, 3 * H:4 * H] = h_b

    return kernel


# -------------------------------- wrapper ------------------------------------

def bidirectional_lstm_forward(inputs, packed):
    """Equivalent of BidirectionalLSTM.forward (zero initial hidden state).

    inputs: (seq, batch, vector_dim); packed: output of pack_params().
    Returns (seq, batch, 2*hidden).
    """
    seq, B, _ = inputs.shape
    num_layers = len(packed) // 3
    H = packed[1].shape[0] // 2               # Whh_0 is (2H, 8H)

    # Pad batch to a full 8-row sublane tile: every per-step row block in the
    # kernel becomes an aligned (8, lanes) access. Padded rows compute
    # harmless garbage and are sliced off below (never user-visible).
    Bp = ((B + 7) // 8) * 8
    x = inputs
    if Bp != B:
        x = jnp.pad(x, ((0, 0), (0, Bp - B), (0, 0)))
    x2d = x.reshape(seq * Bp, -1)
    xr2d = x[::-1].reshape(seq * Bp, -1)                # time-reversed copy
    x_cat = jnp.concatenate([x2d, xr2d], axis=1)        # [normal | reversed]

    kernel = _make_bilstm_kernel(num_layers, seq, Bp, H)
    vmem = pl.BlockSpec(memory_space=pltpu.MemorySpace.VMEM)

    out2d = pl.pallas_call(
        kernel,
        out_shape=jax.ShapeDtypeStruct((seq * Bp, 2 * H), inputs.dtype),
        in_specs=[vmem] * (1 + 3 * num_layers),
        out_specs=vmem,
        scratch_shapes=[
            pltpu.VMEM((seq * Bp, 8 * H), jnp.float32),   # resolved projection
            pltpu.VMEM((seq * Bp, 4 * H), jnp.float32),   # inter-layer acts [normal|rev]
        ],
        # Raise the scoped VMEM limit so whole-sequence buffers stay resident
        # as shapes grow (v5e default scoped limit is only 16 MiB).
        compiler_params=pltpu.CompilerParams(vmem_limit_bytes=32 * 1024 * 1024),
    )(x_cat, *packed)

    return out2d.reshape(seq, Bp, 2 * H)[:, :B, :]


# ----------------------- pure-JAX reference (for validation) ----------------

def _lstm_dir_ref(x, w_ih, w_hh, b_ih, b_hh):
    H = w_hh.shape[1]
    batch = x.shape[1]

    def step(carry, x_t):
        h, c = carry
        gates = x_t @ w_ih.T + b_ih + h @ w_hh.T + b_hh
        i, f, g, o = jnp.split(gates, 4, axis=-1)
        c = jax.nn.sigmoid(f) * c + jax.nn.sigmoid(i) * jnp.tanh(g)
        h = jax.nn.sigmoid(o) * jnp.tanh(c)
        return (h, c), h

    init = (jnp.zeros((batch, H), jnp.float32), jnp.zeros((batch, H), jnp.float32))
    _, hs = lax.scan(step, init, x)
    return hs


def bidirectional_lstm_ref(inputs, params):
    out = inputs
    for layer in params:
        fwd = _lstm_dir_ref(out, *layer["fwd"])
        bwd = _lstm_dir_ref(out[::-1], *layer["bwd"])[::-1]
        out = jnp.concatenate([fwd, bwd], axis=-1)
    return out


# ----------------------- deterministic parameter init -----------------------

def init_params(key, vector_dim, hidden, num_layers):
    """Same shapes/init distribution as torch.nn.LSTM (U(-1/sqrt(H), 1/sqrt(H)))."""
    params = []
    bound = 1.0 / float(np.sqrt(hidden))
    in_dim = vector_dim
    for _ in range(num_layers):
        layer = {}
        for d in ("fwd", "bwd"):
            key, k1, k2, k3, k4 = jax.random.split(key, 5)
            w_ih = jax.random.uniform(k1, (4 * hidden, in_dim), jnp.float32, -bound, bound)
            w_hh = jax.random.uniform(k2, (4 * hidden, hidden), jnp.float32, -bound, bound)
            b_ih = jax.random.uniform(k3, (4 * hidden,), jnp.float32, -bound, bound)
            b_hh = jax.random.uniform(k4, (4 * hidden,), jnp.float32, -bound, bound)
            layer[d] = (w_ih, w_hh, b_ih, b_hh)
        params.append(layer)
        in_dim = 2 * hidden  # next layer consumes concatenated directions
    return params


if __name__ == "__main__":
    # layer_size=[32, 32] -> hidden=32, num_layers=2, bidirectional;
    # vector_dim=32; seq=8; batch=2.
    seq_len, batch, vector_dim, hidden, num_layers = 8, 2, 32, 32, 2

    key = jax.random.PRNGKey(0)
    key, kx = jax.random.split(key)
    inputs = jax.random.normal(kx, (seq_len, batch, vector_dim), jnp.float32)
    params = init_params(key, vector_dim, hidden, num_layers)

    # One-time weight packing, hoisted off the per-call path.
    packed = pack_params(params)

    fwd_fn = jax.jit(bidirectional_lstm_forward)
    out = jax.block_until_ready(fwd_fn(inputs, packed))

    assert out.shape == (seq_len, batch, 2 * hidden), out.shape

    ref = bidirectional_lstm_ref(inputs, params)
    np.testing.assert_allclose(np.asarray(out), np.asarray(ref), rtol=1e-4, atol=1e-4)

    print("KERNEL_OK")
</pallas_src>

<mosaic_0001>
module attributes {stable_mosaic.version = 11 : i64} {
  func.func @kernel(%arg0: memref<64x64xf32, #tpu.memory_space<vmem>>, %arg1: memref<64x256xf32, #tpu.memory_space<vmem>>, %arg2: memref<64x256xf32, #tpu.memory_space<vmem>>, %arg3: memref<1x256xf32, #tpu.memory_space<vmem>>, %arg4: memref<128x256xf32, #tpu.memory_space<vmem>>, %arg5: memref<64x256xf32, #tpu.memory_space<vmem>>, %arg6: memref<1x256xf32, #tpu.memory_space<vmem>>, %arg7: memref<64x64xf32, #tpu.memory_space<vmem>>, %arg8: memref<64x256xf32, #tpu.memory_space<vmem>>, %arg9: memref<64x128xf32, #tpu.memory_space<vmem>>) attributes {dimension_semantics = [], scalar_prefetch = 0 : i64, scratch_operands = 2 : i64, tpu.core_type = #tpu.core_type<tc>} {
    %c0 = arith.constant 0 : index
    %c0_0 = arith.constant 0 : index
    %0 = vector.load %arg0[%c0, %c0_0] : memref<64x64xf32, #tpu.memory_space<vmem>>, vector<64x64xf32>
    %c0_1 = arith.constant 0 : index
    %c0_2 = arith.constant 0 : index
    %1 = vector.load %arg1[%c0_1, %c0_2] : memref<64x256xf32, #tpu.memory_space<vmem>>, vector<64x256xf32>
    %cst = arith.constant dense<0.000000e+00> : vector<64x256xf32>
    %2 = tpu.matmul %0, %1, %cst {dimension_numbers = #tpu.dot_dimension_numbers<[1], [0], [0], [1], [0, 0, 1, 1], [], []>} : vector<64x64xf32>, vector<64x256xf32>, vector<64x256xf32> -> vector<64x256xf32>
    %c0_3 = arith.constant 0 : index
    %c0_4 = arith.constant 0 : index
    %3 = vector.load %arg3[%c0_3, %c0_4] : memref<1x256xf32, #tpu.memory_space<vmem>>, vector<1x256xf32>
    %4 = vector.broadcast %3 : vector<1x256xf32> to vector<64x256xf32>
    %5 = arith.addf %2, %4 : vector<64x256xf32>
    %c0_5 = arith.constant 0 : index
    %c0_6 = arith.constant 0 : index
    %6 = vector.load %arg8[%c0_5, %c0_6] : memref<64x256xf32, #tpu.memory_space<vmem>>, vector<64x256xf32>
    tpu.vector_store %arg8[%c0_5, %c0_6], %5 {strides = array<i32>} : memref<64x256xf32, #tpu.memory_space<vmem>>, vector<64x256xf32>,
    %c0_7 = arith.constant 0 : index
    %c0_8 = arith.constant 0 : index
    %7 = vector.load %arg2[%c0_7, %c0_8] : memref<64x256xf32, #tpu.memory_space<vmem>>, vector<64x256xf32>
    %cst_9 = arith.constant 0.000000e+00 : f32
    %8 = vector.broadcast %cst_9 : f32 to vector<8x64xf32>
    %cst_10 = arith.constant 0.000000e+00 : f32
    %9 = vector.broadcast %cst_10 : f32 to vector<8x64xf32>
    %c0_11 = arith.constant 0 : index
    %c0_12 = arith.constant 0 : index
    %10 = vector.load %arg8[%c0_11, %c0_12] : memref<64x256xf32, #tpu.memory_space<vmem>>, vector<8x256xf32>
    %cst_13 = arith.constant dense<0.000000e+00> : vector<8x256xf32>
    %11 = tpu.matmul %8, %7, %cst_13 {dimension_numbers = #tpu.dot_dimension_numbers<[1], [0], [0], [1], [0, 0, 1, 1], [], []>} : vector<8x64xf32>, vector<64x256xf32>, vector<8x256xf32> -> vector<8x256xf32>
    %12 = arith.addf %10, %11 : vector<8x256xf32>
    %13 = vector.extract_strided_slice %12 {offsets = [0, 0], sizes = [8, 192], strides = [1, 1]} : vector<8x256xf32> to vector<8x192xf32>
    %cst_14 = arith.constant 5.000000e-01 : f32
    %14 = vector.broadcast %cst_14 : f32 to vector<8x192xf32>
    %15 = arith.mulf %14, %13 : vector<8x192xf32>
    %16 = math.tanh %15 : vector<8x192xf32>
    %cst_15 = arith.constant 5.000000e-01 : f32
    %17 = vector.broadcast %cst_15 : f32 to vector<8x192xf32>
    %18 = arith.mulf %17, %16 : vector<8x192xf32>
    %cst_16 = arith.constant 5.000000e-01 : f32
    %19 = vector.broadcast %cst_16 : f32 to vector<8x192xf32>
    %20 = arith.addf %18, %19 : vector<8x192xf32>
    %21 = vector.extract_strided_slice %12 {offsets = [0, 192], sizes = [8, 64], strides = [1, 1]} : vector<8x256xf32> to vector<8x64xf32>
    %22 = math.tanh %21 : vector<8x64xf32>
    %23 = vector.extract_strided_slice %20 {offsets = [0, 0], sizes = [8, 64], strides = [1, 1]} : vector<8x192xf32> to vector<8x64xf32>
    %24 = vector.extract_strided_slice %20 {offsets = [0, 64], sizes = [8, 64], strides = [1, 1]} : vector<8x192xf32> to vector<8x64xf32>
    %25 = vector.extract_strided_slice %20 {offsets = [0, 128], sizes = [8, 64], strides = [1, 1]} : vector<8x192xf32> to vector<8x64xf32>
    %26 = arith.mulf %24, %9 : vector<8x64xf32>
    %27 = arith.mulf %23, %22 : vector<8x64xf32>
    %28 = arith.addf %26, %27 : vector<8x64xf32>
    %29 = math.tanh %28 : vector<8x64xf32>
    %30 = arith.mulf %25, %29 : vector<8x64xf32>
    %31 = vector.extract_strided_slice %30 {offsets = [0, 0], sizes = [8, 32], strides = [1, 1]} : vector<8x64xf32> to vector<8x32xf32>
    %32 = vector.extract_strided_slice %30 {offsets = [0, 32], sizes = [8, 32], strides = [1, 1]} : vector<8x64xf32> to vector<8x32xf32>
    %c0_17 = arith.constant 0 : index
    %c0_18 = arith.constant 0 : index
    %33 = vector.load %arg9[%c0_17, %c0_18] : memref<64x128xf32, #tpu.memory_space<vmem>>, vector<8x32xf32>
    tpu.vector_store %arg9[%c0_17, %c0_18], %31 {strides = array<i32>} : memref<64x128xf32, #tpu.memory_space<vmem>>, vector<8x32xf32>,
    %c56 = arith.constant 56 : index
    %c32 = arith.constant 32 : index
    %34 = vector.load %arg9[%c56, %c32] : memref<64x128xf32, #tpu.memory_space<vmem>>, vector<8x32xf32>
    tpu.vector_store %arg9[%c56, %c32], %32 {strides = array<i32>} : memref<64x128xf32, #tpu.memory_space<vmem>>, vector<8x32xf32>,
    %c56_19 = arith.constant 56 : index
    %c64 = arith.constant 64 : index
    %35 = vector.load %arg9[%c56_19, %c64] : memref<64x128xf32, #tpu.memory_space<vmem>>, vector<8x32xf32>
    tpu.vector_store %arg9[%c56_19, %c64], %31 {strides = array<i32>} : memref<64x128xf32, #tpu.memory_space<vmem>>, vector<8x32xf32>,
    %c0_20 = arith.constant 0 : index
    %c96 = arith.constant 96 : index
    %36 = vector.load %arg9[%c0_20, %c96] : memref<64x128xf32, #tpu.memory_space<vmem>>, vector<8x32xf32>
    tpu.vector_store %arg9[%c0_20, %c96], %32 {strides = array<i32>} : memref<64x128xf32, #tpu.memory_space<vmem>>, vector<8x32xf32>,
    %c8 = arith.constant 8 : index
    %c0_21 = arith.constant 0 : index
    %37 = vector.load %arg8[%c8, %c0_21] : memref<64x256xf32, #tpu.memory_space<vmem>>, vector<8x256xf32>
    %cst_22 = arith.constant dense<0.000000e+00> : vector<8x256xf32>
    %38 = tpu.matmul %30, %7, %cst_22 {dimension_numbers = #tpu.dot_dimension_numbers<[1], [0], [0], [1], [0, 0, 1, 1], [], []>} : vector<8x64xf32>, vector<64x256xf32>, vector<8x256xf32> -> vector<8x256xf32>
    %39 = arith.addf %37, %38 : vector<8x256xf32>
    %40 = vector.extract_strided_slice %39 {offsets = [0, 0], sizes = [8, 192], strides = [1, 1]} : vector<8x256xf32> to vector<8x192xf32>
    %cst_23 = arith.constant 5.000000e-01 : f32
    %41 = vector.broadcast %cst_23 : f32 to vector<8x192xf32>
    %42 = arith.mulf %41, %40 : vector<8x192xf32>
    %43 = math.tanh %42 : vector<8x192xf32>
    %cst_24 = arith.constant 5.000000e-01 : f32
    %44 = vector.broadcast %cst_24 : f32 to vector<8x192xf32>
    %45 = arith.mulf %44, %43 : vector<8x192xf32>
    %cst_25 = arith.constant 5.000000e-01 : f32
    %46 = vector.broadcast %cst_25 : f32 to vector<8x192xf32>
    %47 = arith.addf %45, %46 : vector<8x192xf32>
    %48 = vector.extract_strided_slice %39 {offsets = [0, 192], sizes = [8, 64], strides = [1, 1]} : vector<8x256xf32> to vector<8x64xf32>
    %49 = math.tanh %48 : vector<8x64xf32>
    %50 = vector.extract_strided_slice %47 {offsets = [0, 0], sizes = [8, 64], strides = [1, 1]} : vector<8x192xf32> to vector<8x64xf32>
    %51 = vector.extract_strided_slice %47 {offsets = [0, 64], sizes = [8, 64], strides = [1, 1]} : vector<8x192xf32> to vector<8x64xf32>
    %52 = vector.extract_strided_slice %47 {offsets = [0, 128], sizes = [8, 64], strides = [1, 1]} : vector<8x192xf32> to vector<8x64xf32>
    %53 = arith.mulf %51, %28 : vector<8x64xf32>
    %54 = arith.mulf %50, %49 : vector<8x64xf32>
    %55 = arith.addf %53, %54 : vector<8x64xf32>
    %56 = math.tanh %55 : vector<8x64xf32>
    %57 = arith.mulf %52, %56 : vector<8x64xf32>
    %58 = vector.extract_strided_slice %57 {offsets = [0, 0], sizes = [8, 32], strides = [1, 1]} : vector<8x64xf32> to vector<8x32xf32>
    %59 = vector.extract_strided_slice %57 {offsets = [0, 32], sizes = [8, 32], strides = [1, 1]} : vector<8x64xf32> to vector<8x32xf32>
    %c8_26 = arith.constant 8 : index
    %c0_27 = arith.constant 0 : index
    %60 = vector.load %arg9[%c8_26, %c0_27] : memref<64x128xf32, #tpu.memory_space<vmem>>, vector<8x32xf32>
    tpu.vector_store %arg9[%c8_26, %c0_27], %58 {strides = array<i32>} : memref<64x128xf32, #tpu.memory_space<vmem>>, vector<8x32xf32>,
    %c48 = arith.constant 48 : index
    %c32_28 = arith.constant 32 : index
    %61 = vector.load %arg9[%c48, %c32_28] : memref<64x128xf32, #tpu.memory_space<vmem>>, vector<8x32xf32>
    tpu.vector_store %arg9[%c48, %c32_28], %59 {strides = array<i32>} : memref<64x128xf32, #tpu.memory_space<vmem>>, vector<8x32xf32>,
    %c48_29 = arith.constant 48 : index
    %c64_30 = arith.constant 64 : index
    %62 = vector.load %arg9[%c48_29, %c64_30] : memref<64x128xf32, #tpu.memory_space<vmem>>, vector<8x32xf32>
    tpu.vector_store %arg9[%c48_29, %c64_30], %58 {strides = array<i32>} : memref<64x128xf32, #tpu.memory_space<vmem>>, vector<8x32xf32>,
    %c8_31 = arith.constant 8 : index
    %c96_32 = arith.constant 96 : index
    %63 = vector.load %arg9[%c8_31, %c96_32] : memref<64x128xf32, #tpu.memory_space<vmem>>, vector<8x32xf32>
    tpu.vector_store %arg9[%c8_31, %c96_32], %59 {strides = array<i32>} : memref<64x128xf32, #tpu.memory_space<vmem>>, vector<8x32xf32>,
    %c16 = arith.constant 16 : index
    %c0_33 = arith.constant 0 : index
    %64 = vector.load %arg8[%c16, %c0_33] : memref<64x256xf32, #tpu.memory_space<vmem>>, vector<8x256xf32>
    %cst_34 = arith.constant dense<0.000000e+00> : vector<8x256xf32>
    %65 = tpu.matmul %57, %7, %cst_34 {dimension_numbers = #tpu.dot_dimension_numbers<[1], [0], [0], [1], [0, 0, 1, 1], [], []>} : vector<8x64xf32>, vector<64x256xf32>, vector<8x256xf32> -> vector<8x256xf32>
    %66 = arith.addf %64, %65 : vector<8x256xf32>
    %67 = vector.extract_strided_slice %66 {offsets = [0, 0], sizes = [8, 192], strides = [1, 1]} : vector<8x256xf32> to vector<8x192xf32>
    %cst_35 = arith.constant 5.000000e-01 : f32
    %68 = vector.broadcast %cst_35 : f32 to vector<8x192xf32>
    %69 = arith.mulf %68, %67 : vector<8x192xf32>
    %70 = math.tanh %69 : vector<8x192xf32>
    %cst_36 = arith.constant 5.000000e-01 : f32
    %71 = vector.broadcast %cst_36 : f32 to vector<8x192xf32>
    %72 = arith.mulf %71, %70 : vector<8x192xf32>
    %cst_37 = arith.constant 5.000000e-01 : f32
    %73 = vector.broadcast %cst_37 : f32 to vector<8x192xf32>
    %74 = arith.addf %72, %73 : vector<8x192xf32>
    %75 = vector.extract_strided_slice %66 {offsets = [0, 192], sizes = [8, 64], strides = [1, 1]} : vector<8x256xf32> to vector<8x64xf32>
    %76 = math.tanh %75 : vector<8x64xf32>
    %77 = vector.extract_strided_slice %74 {offsets = [0, 0], sizes = [8, 64], strides = [1, 1]} : vector<8x192xf32> to vector<8x64xf32>
    %78 = vector.extract_strided_slice %74 {offsets = [0, 64], sizes = [8, 64], strides = [1, 1]} : vector<8x192xf32> to vector<8x64xf32>
    %79 = vector.extract_strided_slice %74 {offsets = [0, 128], sizes = [8, 64], strides = [1, 1]} : vector<8x192xf32> to vector<8x64xf32>
    %80 = arith.mulf %78, %55 : vector<8x64xf32>
    %81 = arith.mulf %77, %76 : vector<8x64xf32>
    %82 = arith.addf %80, %81 : vector<8x64xf32>
    %83 = math.tanh %82 : vector<8x64xf32>
    %84 = arith.mulf %79, %83 : vector<8x64xf32>
    %85 = vector.extract_strided_slice %84 {offsets = [0, 0], sizes = [8, 32], strides = [1, 1]} : vector<8x64xf32> to vector<8x32xf32>
    %86 = vector.extract_strided_slice %84 {offsets = [0, 32], sizes = [8, 32], strides = [1, 1]} : vector<8x64xf32> to vector<8x32xf32>
    %c16_38 = arith.constant 16 : index
    %c0_39 = arith.constant 0 : index
    %87 = vector.load %arg9[%c16_38, %c0_39] : memref<64x128xf32, #tpu.memory_space<vmem>>, vector<8x32xf32>
    tpu.vector_store %arg9[%c16_38, %c0_39], %85 {strides = array<i32>} : memref<64x128xf32, #tpu.memory_space<vmem>>, vector<8x32xf32>,
    %c40 = arith.constant 40 : index
    %c32_40 = arith.constant 32 : index
    %88 = vector.load %arg9[%c40, %c32_40] : memref<64x128xf32, #tpu.memory_space<vmem>>, vector<8x32xf32>
    tpu.vector_store %arg9[%c40, %c32_40], %86 {strides = array<i32>} : memref<64x128xf32, #tpu.memory_space<vmem>>, vector<8x32xf32>,
    %c40_41 = arith.constant 40 : index
    %c64_42 = arith.constant 64 : index
    %89 = vector.load %arg9[%c40_41, %c64_42] : memref<64x128xf32, #tpu.memory_space<vmem>>, vector<8x32xf32>
    tpu.vector_store %arg9[%c40_41, %c64_42], %85 {strides = array<i32>} : memref<64x128xf32, #tpu.memory_space<vmem>>, vector<8x32xf32>,
    %c16_43 = arith.constant 16 : index
    %c96_44 = arith.constant 96 : index
    %90 = vector.load %arg9[%c16_43, %c96_44] : memref<64x128xf32, #tpu.memory_space<vmem>>, vector<8x32xf32>
    tpu.vector_store %arg9[%c16_43, %c96_44], %86 {strides = array<i32>} : memref<64x128xf32, #tpu.memory_space<vmem>>, vector<8x32xf32>,
    %c24 = arith.constant 24 : index
    %c0_45 = arith.constant 0 : index
    %91 = vector.load %arg8[%c24, %c0_45] : memref<64x256xf32, #tpu.memory_space<vmem>>, vector<8x256xf32>
    %cst_46 = arith.constant dense<0.000000e+00> : vector<8x256xf32>
    %92 = tpu.matmul %84, %7, %cst_46 {dimension_numbers = #tpu.dot_dimension_numbers<[1], [0], [0], [1], [0, 0, 1, 1], [], []>} : vector<8x64xf32>, vector<64x256xf32>, vector<8x256xf32> -> vector<8x256xf32>
    %93 = arith.addf %91, %92 : vector<8x256xf32>
    %94 = vector.extract_strided_slice %93 {offsets = [0, 0], sizes = [8, 192], strides = [1, 1]} : vector<8x256xf32> to vector<8x192xf32>
    %cst_47 = arith.constant 5.000000e-01 : f32
    %95 = vector.broadcast %cst_47 : f32 to vector<8x192xf32>
    %96 = arith.mulf %95, %94 : vector<8x192xf32>
    %97 = math.tanh %96 : vector<8x192xf32>
    %cst_48 = arith.constant 5.000000e-01 : f32
    %98 = vector.broadcast %cst_48 : f32 to vector<8x192xf32>
    %99 = arith.mulf %98, %97 : vector<8x192xf32>
    %cst_49 = arith.constant 5.000000e-01 : f32
    %100 = vector.broadcast %cst_49 : f32 to vector<8x192xf32>
    %101 = arith.addf %99, %100 : vector<8x192xf32>
    %102 = vector.extract_strided_slice %93 {offsets = [0, 192], sizes = [8, 64], strides = [1, 1]} : vector<8x256xf32> to vector<8x64xf32>
    %103 = math.tanh %102 : vector<8x64xf32>
    %104 = vector.extract_strided_slice %101 {offsets = [0, 0], sizes = [8, 64], strides = [1, 1]} : vector<8x192xf32> to vector<8x64xf32>
    %105 = vector.extract_strided_slice %101 {offsets = [0, 64], sizes = [8, 64], strides = [1, 1]} : vector<8x192xf32> to vector<8x64xf32>
    %106 = vector.extract_strided_slice %101 {offsets = [0, 128], sizes = [8, 64], strides = [1, 1]} : vector<8x192xf32> to vector<8x64xf32>
    %107 = arith.mulf %105, %82 : vector<8x64xf32>
    %108 = arith.mulf %104, %103 : vector<8x64xf32>
    %109 = arith.addf %107, %108 : vector<8x64xf32>
    %110 = math.tanh %109 : vector<8x64xf32>
    %111 = arith.mulf %106, %110 : vector<8x64xf32>
    %112 = vector.extract_strided_slice %111 {offsets = [0, 0], sizes = [8, 32], strides = [1, 1]} : vector<8x64xf32> to vector<8x32xf32>
    %113 = vector.extract_strided_slice %111 {offsets = [0, 32], sizes = [8, 32], strides = [1, 1]} : vector<8x64xf32> to vector<8x32xf32>
    %c24_50 = arith.constant 24 : index
    %c0_51 = arith.constant 0 : index
    %114 = vector.load %arg9[%c24_50, %c0_51] : memref<64x128xf32, #tpu.memory_space<vmem>>, vector<8x32xf32>
    tpu.vector_store %arg9[%c24_50, %c0_51], %112 {strides = array<i32>} : memref<64x128xf32, #tpu.memory_space<vmem>>, vector<8x32xf32>,
    %c32_52 = arith.constant 32 : index
    %c32_53 = arith.constant 32 : index
    %115 = vector.load %arg9[%c32_52, %c32_53] : memref<64x128xf32, #tpu.memory_space<vmem>>, vector<8x32xf32>
    tpu.vector_store %arg9[%c32_52, %c32_53], %113 {strides = array<i32>} : memref<64x128xf32, #tpu.memory_space<vmem>>, vector<8x32xf32>,
    %c32_54 = arith.constant 32 : index
    %c64_55 = arith.constant 64 : index
    %116 = vector.load %arg9[%c32_54, %c64_55] : memref<64x128xf32, #tpu.memory_space<vmem>>, vector<8x32xf32>
    tpu.vector_store %arg9[%c32_54, %c64_55], %112 {strides = array<i32>} : memref<64x128xf32, #tpu.memory_space<vmem>>, vector<8x32xf32>,
    %c24_56 = arith.constant 24 : index
    %c96_57 = arith.constant 96 : index
    %117 = vector.load %arg9[%c24_56, %c96_57] : memref<64x128xf32, #tpu.memory_space<vmem>>, vector<8x32xf32>
    tpu.vector_store %arg9[%c24_56, %c96_57], %113 {strides = array<i32>} : memref<64x128xf32, #tpu.memory_space<vmem>>, vector<8x32xf32>,
    %c32_58 = arith.constant 32 : index
    %c0_59 = arith.constant 0 : index
    %118 = vector.load %arg8[%c32_58, %c0_59] : memref<64x256xf32, #tpu.memory_space<vmem>>, vector<8x256xf32>
    %cst_60 = arith.constant dense<0.000000e+00> : vector<8x256xf32>
    %119 = tpu.matmul %111, %7, %cst_60 {dimension_numbers = #tpu.dot_dimension_numbers<[1], [0], [0], [1], [0, 0, 1, 1], [], []>} : vector<8x64xf32>, vector<64x256xf32>, vector<8x256xf32> -> vector<8x256xf32>
    %120 = arith.addf %118, %119 : vector<8x256xf32>
    %121 = vector.extract_strided_slice %120 {offsets = [0, 0], sizes = [8, 192], strides = [1, 1]} : vector<8x256xf32> to vector<8x192xf32>
    %cst_61 = arith.constant 5.000000e-01 : f32
    %122 = vector.broadcast %cst_61 : f32 to vector<8x192xf32>
    %123 = arith.mulf %122, %121 : vector<8x192xf32>
    %124 = math.tanh %123 : vector<8x192xf32>
    %cst_62 = arith.constant 5.000000e-01 : f32
    %125 = vector.broadcast %cst_62 : f32 to vector<8x192xf32>
    %126 = arith.mulf %125, %124 : vector<8x192xf32>
    %cst_63 = arith.constant 5.000000e-01 : f32
    %127 = vector.broadcast %cst_63 : f32 to vector<8x192xf32>
    %128 = arith.addf %126, %127 : vector<8x192xf32>
    %129 = vector.extract_strided_slice %120 {offsets = [0, 192], sizes = [8, 64], strides = [1, 1]} : vector<8x256xf32> to vector<8x64xf32>
    %130 = math.tanh %129 : vector<8x64xf32>
    %131 = vector.extract_strided_slice %128 {offsets = [0, 0], sizes = [8, 64], strides = [1, 1]} : vector<8x192xf32> to vector<8x64xf32>
    %132 = vector.extract_strided_slice %128 {offsets = [0, 64], sizes = [8, 64], strides = [1, 1]} : vector<8x192xf32> to vector<8x64xf32>
    %133 = vector.extract_strided_slice %128 {offsets = [0, 128], sizes = [8, 64], strides = [1, 1]} : vector<8x192xf32> to vector<8x64xf32>
    %134 = arith.mulf %132, %109 : vector<8x64xf32>
    %135 = arith.mulf %131, %130 : vector<8x64xf32>
    %136 = arith.addf %134, %135 : vector<8x64xf32>
    %137 = math.tanh %136 : vector<8x64xf32>
    %138 = arith.mulf %133, %137 : vector<8x64xf32>
    %139 = vector.extract_strided_slice %138 {offsets = [0, 0], sizes = [8, 32], strides = [1, 1]} : vector<8x64xf32> to vector<8x32xf32>
    %140 = vector.extract_strided_slice %138 {offsets = [0, 32], sizes = [8, 32], strides = [1, 1]} : vector<8x64xf32> to vector<8x32xf32>
    %c32_64 = arith.constant 32 : index
    %c0_65 = arith.constant 0 : index
    %141 = vector.load %arg9[%c32_64, %c0_65] : memref<64x128xf32, #tpu.memory_space<vmem>>, vector<8x32xf32>
    tpu.vector_store %arg9[%c32_64, %c0_65], %139 {strides = array<i32>} : memref<64x128xf32, #tpu.memory_space<vmem>>, vector<8x32xf32>,
    %c24_66 = arith.constant 24 : index
    %c32_67 = arith.constant 32 : index
    %142 = vector.load %arg9[%c24_66, %c32_67] : memref<64x128xf32, #tpu.memory_space<vmem>>, vector<8x32xf32>
    tpu.vector_store %arg9[%c24_66, %c32_67], %140 {strides = array<i32>} : memref<64x128xf32, #tpu.memory_space<vmem>>, vector<8x32xf32>,
    %c24_68 = arith.constant 24 : index
    %c64_69 = arith.constant 64 : index
    %143 = vector.load %arg9[%c24_68, %c64_69] : memref<64x128xf32, #tpu.memory_space<vmem>>, vector<8x32xf32>
    tpu.vector_store %arg9[%c24_68, %c64_69], %139 {strides = array<i32>} : memref<64x128xf32, #tpu.memory_space<vmem>>, vector<8x32xf32>,
    %c32_70 = arith.constant 32 : index
    %c96_71 = arith.constant 96 : index
    %144 = vector.load %arg9[%c32_70, %c96_71] : memref<64x128xf32, #tpu.memory_space<vmem>>, vector<8x32xf32>
    tpu.vector_store %arg9[%c32_70, %c96_71], %140 {strides = array<i32>} : memref<64x128xf32, #tpu.memory_space<vmem>>, vector<8x32xf32>,
    %c40_72 = arith.constant 40 : index
    %c0_73 = arith.constant 0 : index
    %145 = vector.load %arg8[%c40_72, %c0_73] : memref<64x256xf32, #tpu.memory_space<vmem>>, vector<8x256xf32>
    %cst_74 = arith.constant dense<0.000000e+00> : vector<8x256xf32>
    %146 = tpu.matmul %138, %7, %cst_74 {dimension_numbers = #tpu.dot_dimension_numbers<[1], [0], [0], [1], [0, 0, 1, 1], [], []>} : vector<8x64xf32>, vector<64x256xf32>, vector<8x256xf32> -> vector<8x256xf32>
    %147 = arith.addf %145, %146 : vector<8x256xf32>
    %148 = vector.extract_strided_slice %147 {offsets = [0, 0], sizes = [8, 192], strides = [1, 1]} : vector<8x256xf32> to vector<8x192xf32>
    %cst_75 = arith.constant 5.000000e-01 : f32
    %149 = vector.broadcast %cst_75 : f32 to vector<8x192xf32>
    %150 = arith.mulf %149, %148 : vector<8x192xf32>
    %151 = math.tanh %150 : vector<8x192xf32>
    %cst_76 = arith.constant 5.000000e-01 : f32
    %152 = vector.broadcast %cst_76 : f32 to vector<8x192xf32>
    %153 = arith.mulf %152, %151 : vector<8x192xf32>
    %cst_77 = arith.constant 5.000000e-01 : f32
    %154 = vector.broadcast %cst_77 : f32 to vector<8x192xf32>
    %155 = arith.addf %153, %154 : vector<8x192xf32>
    %156 = vector.extract_strided_slice %147 {offsets = [0, 192], sizes = [8, 64], strides = [1, 1]} : vector<8x256xf32> to vector<8x64xf32>
    %157 = math.tanh %156 : vector<8x64xf32>
    %158 = vector.extract_strided_slice %155 {offsets = [0, 0], sizes = [8, 64], strides = [1, 1]} : vector<8x192xf32> to vector<8x64xf32>
    %159 = vector.extract_strided_slice %155 {offsets = [0, 64], sizes = [8, 64], strides = [1, 1]} : vector<8x192xf32> to vector<8x64xf32>
    %160 = vector.extract_strided_slice %155 {offsets = [0, 128], sizes = [8, 64], strides = [1, 1]} : vector<8x192xf32> to vector<8x64xf32>
    %161 = arith.mulf %159, %136 : vector<8x64xf32>
    %162 = arith.mulf %158, %157 : vector<8x64xf32>
    %163 = arith.addf %161, %162 : vector<8x64xf32>
    %164 = math.tanh %163 : vector<8x64xf32>
    %165 = arith.mulf %160, %164 : vector<8x64xf32>
    %166 = vector.extract_strided_slice %165 {offsets = [0, 0], sizes = [8, 32], strides = [1, 1]} : vector<8x64xf32> to vector<8x32xf32>
    %167 = vector.extract_strided_slice %165 {offsets = [0, 32], sizes = [8, 32], strides = [1, 1]} : vector<8x64xf32> to vector<8x32xf32>
    %c40_78 = arith.constant 40 : index
    %c0_79 = arith.constant 0 : index
    %168 = vector.load %arg9[%c40_78, %c0_79] : memref<64x128xf32, #tpu.memory_space<vmem>>, vector<8x32xf32>
    tpu.vector_store %arg9[%c40_78, %c0_79], %166 {strides = array<i32>} : memref<64x128xf32, #tpu.memory_space<vmem>>, vector<8x32xf32>,
    %c16_80 = arith.constant 16 : index
    %c32_81 = arith.constant 32 : index
    %169 = vector.load %arg9[%c16_80, %c32_81] : memref<64x128xf32, #tpu.memory_space<vmem>>, vector<8x32xf32>
    tpu.vector_store %arg9[%c16_80, %c32_81], %167 {strides = array<i32>} : memref<64x128xf32, #tpu.memory_space<vmem>>, vector<8x32xf32>,
    %c16_82 = arith.constant 16 : index
    %c64_83 = arith.constant 64 : index
    %170 = vector.load %arg9[%c16_82, %c64_83] : memref<64x128xf32, #tpu.memory_space<vmem>>, vector<8x32xf32>
    tpu.vector_store %arg9[%c16_82, %c64_83], %166 {strides = array<i32>} : memref<64x128xf32, #tpu.memory_space<vmem>>, vector<8x32xf32>,
    %c40_84 = arith.constant 40 : index
    %c96_85 = arith.constant 96 : index
    %171 = vector.load %arg9[%c40_84, %c96_85] : memref<64x128xf32, #tpu.memory_space<vmem>>, vector<8x32xf32>
    tpu.vector_store %arg9[%c40_84, %c96_85], %167 {strides = array<i32>} : memref<64x128xf32, #tpu.memory_space<vmem>>, vector<8x32xf32>,
    %c48_86 = arith.constant 48 : index
    %c0_87 = arith.constant 0 : index
    %172 = vector.load %arg8[%c48_86, %c0_87] : memref<64x256xf32, #tpu.memory_space<vmem>>, vector<8x256xf32>
    %cst_88 = arith.constant dense<0.000000e+00> : vector<8x256xf32>
    %173 = tpu.matmul %165, %7, %cst_88 {dimension_numbers = #tpu.dot_dimension_numbers<[1], [0], [0], [1], [0, 0, 1, 1], [], []>} : vector<8x64xf32>, vector<64x256xf32>, vector<8x256xf32> -> vector<8x256xf32>
    %174 = arith.addf %172, %173 : vector<8x256xf32>
    %175 = vector.extract_strided_slice %174 {offsets = [0, 0], sizes = [8, 192], strides = [1, 1]} : vector<8x256xf32> to vector<8x192xf32>
    %cst_89 = arith.constant 5.000000e-01 : f32
    %176 = vector.broadcast %cst_89 : f32 to vector<8x192xf32>
    %177 = arith.mulf %176, %175 : vector<8x192xf32>
    %178 = math.tanh %177 : vector<8x192xf32>
    %cst_90 = arith.constant 5.000000e-01 : f32
    %179 = vector.broadcast %cst_90 : f32 to vector<8x192xf32>
    %180 = arith.mulf %179, %178 : vector<8x192xf32>
    %cst_91 = arith.constant 5.000000e-01 : f32
    %181 = vector.broadcast %cst_91 : f32 to vector<8x192xf32>
    %182 = arith.addf %180, %181 : vector<8x192xf32>
    %183 = vector.extract_strided_slice %174 {offsets = [0, 192], sizes = [8, 64], strides = [1, 1]} : vector<8x256xf32> to vector<8x64xf32>
    %184 = math.tanh %183 : vector<8x64xf32>
    %185 = vector.extract_strided_slice %182 {offsets = [0, 0], sizes = [8, 64], strides = [1, 1]} : vector<8x192xf32> to vector<8x64xf32>
    %186 = vector.extract_strided_slice %182 {offsets = [0, 64], sizes = [8, 64], strides = [1, 1]} : vector<8x192xf32> to vector<8x64xf32>
    %187 = vector.extract_strided_slice %182 {offsets = [0, 128], sizes = [8, 64], strides = [1, 1]} : vector<8x192xf32> to vector<8x64xf32>
    %188 = arith.mulf %186, %163 : vector<8x64xf32>
    %189 = arith.mulf %185, %184 : vector<8x64xf32>
    %190 = arith.addf %188, %189 : vector<8x64xf32>
    %191 = math.tanh %190 : vector<8x64xf32>
    %192 = arith.mulf %187, %191 : vector<8x64xf32>
    %193 = vector.extract_strided_slice %192 {offsets = [0, 0], sizes = [8, 32], strides = [1, 1]} : vector<8x64xf32> to vector<8x32xf32>
    %194 = vector.extract_strided_slice %192 {offsets = [0, 32], sizes = [8, 32], strides = [1, 1]} : vector<8x64xf32> to vector<8x32xf32>
    %c48_92 = arith.constant 48 : index
    %c0_93 = arith.constant 0 : index
    %195 = vector.load %arg9[%c48_92, %c0_93] : memref<64x128xf32, #tpu.memory_space<vmem>>, vector<8x32xf32>
    tpu.vector_store %arg9[%c48_92, %c0_93], %193 {strides = array<i32>} : memref<64x128xf32, #tpu.memory_space<vmem>>, vector<8x32xf32>,
    %c8_94 = arith.constant 8 : index
    %c32_95 = arith.constant 32 : index
    %196 = vector.load %arg9[%c8_94, %c32_95] : memref<64x128xf32, #tpu.memory_space<vmem>>, vector<8x32xf32>
    tpu.vector_store %arg9[%c8_94, %c32_95], %194 {strides = array<i32>} : memref<64x128xf32, #tpu.memory_space<vmem>>, vector<8x32xf32>,
    %c8_96 = arith.constant 8 : index
    %c64_97 = arith.constant 64 : index
    %197 = vector.load %arg9[%c8_96, %c64_97] : memref<64x128xf32, #tpu.memory_space<vmem>>, vector<8x32xf32>
    tpu.vector_store %arg9[%c8_96, %c64_97], %193 {strides = array<i32>} : memref<64x128xf32, #tpu.memory_space<vmem>>, vector<8x32xf32>,
    %c48_98 = arith.constant 48 : index
    %c96_99 = arith.constant 96 : index
    %198 = vector.load %arg9[%c48_98, %c96_99] : memref<64x128xf32, #tpu.memory_space<vmem>>, vector<8x32xf32>
    tpu.vector_store %arg9[%c48_98, %c96_99], %194 {strides = array<i32>} : memref<64x128xf32, #tpu.memory_space<vmem>>, vector<8x32xf32>,
    %c56_100 = arith.constant 56 : index
    %c0_101 = arith.constant 0 : index
    %199 = vector.load %arg8[%c56_100, %c0_101] : memref<64x256xf32, #tpu.memory_space<vmem>>, vector<8x256xf32>
    %cst_102 = arith.constant dense<0.000000e+00> : vector<8x256xf32>
    %200 = tpu.matmul %192, %7, %cst_102 {dimension_numbers = #tpu.dot_dimension_numbers<[1], [0], [0], [1], [0, 0, 1, 1], [], []>} : vector<8x64xf32>, vector<64x256xf32>, vector<8x256xf32> -> vector<8x256xf32>
    %201 = arith.addf %199, %200 : vector<8x256xf32>
    %202 = vector.extract_strided_slice %201 {offsets = [0, 0], sizes = [8, 192], strides = [1, 1]} : vector<8x256xf32> to vector<8x192xf32>
    %cst_103 = arith.constant 5.000000e-01 : f32
    %203 = vector.broadcast %cst_103 : f32 to vector<8x192xf32>
    %204 = arith.mulf %203, %202 : vector<8x192xf32>
    %205 = math.tanh %204 : vector<8x192xf32>
    %cst_104 = arith.constant 5.000000e-01 : f32
    %206 = vector.broadcast %cst_104 : f32 to vector<8x192xf32>
    %207 = arith.mulf %206, %205 : vector<8x192xf32>
    %cst_105 = arith.constant 5.000000e-01 : f32
    %208 = vector.broadcast %cst_105 : f32 to vector<8x192xf32>
    %209 = arith.addf %207, %208 : vector<8x192xf32>
    %210 = vector.extract_strided_slice %201 {offsets = [0, 192], sizes = [8, 64], strides = [1, 1]} : vector<8x256xf32> to vector<8x64xf32>
    %211 = math.tanh %210 : vector<8x64xf32>
    %212 = vector.extract_strided_slice %209 {offsets = [0, 0], sizes = [8, 64], strides = [1, 1]} : vector<8x192xf32> to vector<8x64xf32>
    %213 = vector.extract_strided_slice %209 {offsets = [0, 64], sizes = [8, 64], strides = [1, 1]} : vector<8x192xf32> to vector<8x64xf32>
    %214 = vector.extract_strided_slice %209 {offsets = [0, 128], sizes = [8, 64], strides = [1, 1]} : vector<8x192xf32> to vector<8x64xf32>
    %215 = arith.mulf %213, %190 : vector<8x64xf32>
    %216 = arith.mulf %212, %211 : vector<8x64xf32>
    %217 = arith.addf %215, %216 : vector<8x64xf32>
    %218 = math.tanh %217 : vector<8x64xf32>
    %219 = arith.mulf %214, %218 : vector<8x64xf32>
    %220 = vector.extract_strided_slice %219 {offsets = [0, 0], sizes = [8, 32], strides = [1, 1]} : vector<8x64xf32> to vector<8x32xf32>
    %221 = vector.extract_strided_slice %219 {offsets = [0, 32], sizes = [8, 32], strides = [1, 1]} : vector<8x64xf32> to vector<8x32xf32>
    %c56_106 = arith.constant 56 : index
    %c0_107 = arith.constant 0 : index
    %222 = vector.load %arg9[%c56_106, %c0_107] : memref<64x128xf32, #tpu.memory_space<vmem>>, vector<8x32xf32>
    tpu.vector_store %arg9[%c56_106, %c0_107], %220 {strides = array<i32>} : memref<64x128xf32, #tpu.memory_space<vmem>>, vector<8x32xf32>,
    %c0_108 = arith.constant 0 : index
    %c32_109 = arith.constant 32 : index
    %223 = vector.load %arg9[%c0_108, %c32_109] : memref<64x128xf32, #tpu.memory_space<vmem>>, vector<8x32xf32>
    tpu.vector_store %arg9[%c0_108, %c32_109], %221 {strides = array<i32>} : memref<64x128xf32, #tpu.memory_space<vmem>>, vector<8x32xf32>,
    %c0_110 = arith.constant 0 : index
    %c64_111 = arith.constant 64 : index
    %224 = vector.load %arg9[%c0_110, %c64_111] : memref<64x128xf32, #tpu.memory_space<vmem>>, vector<8x32xf32>
    tpu.vector_store %arg9[%c0_110, %c64_111], %220 {strides = array<i32>} : memref<64x128xf32, #tpu.memory_space<vmem>>, vector<8x32xf32>,
    %c56_112 = arith.constant 56 : index
    %c96_113 = arith.constant 96 : index
    %225 = vector.load %arg9[%c56_112, %c96_113] : memref<64x128xf32, #tpu.memory_space<vmem>>, vector<8x32xf32>
    tpu.vector_store %arg9[%c56_112, %c96_113], %221 {strides = array<i32>} : memref<64x128xf32, #tpu.memory_space<vmem>>, vector<8x32xf32>,
    %c0_114 = arith.constant 0 : index
    %c0_115 = arith.constant 0 : index
    %226 = vector.load %arg9[%c0_114, %c0_115] : memref<64x128xf32, #tpu.memory_space<vmem>>, vector<64x128xf32>
    %c0_116 = arith.constant 0 : index
    %c0_117 = arith.constant 0 : index
    %227 = vector.load %arg4[%c0_116, %c0_117] : memref<128x256xf32, #tpu.memory_space<vmem>>, vector<128x256xf32>
    %cst_118 = arith.constant dense<0.000000e+00> : vector<64x256xf32>
    %228 = tpu.matmul %226, %227, %cst_118 {dimension_numbers = #tpu.dot_dimension_numbers<[1], [0], [0], [1], [0, 0, 1, 1], [], []>} : vector<64x128xf32>, vector<128x256xf32>, vector<64x256xf32> -> vector<64x256xf32>
    %c0_119 = arith.constant 0 : index
    %c0_120 = arith.constant 0 : index
    %229 = vector.load %arg6[%c0_119, %c0_120] : memref<1x256xf32, #tpu.memory_space<vmem>>, vector<1x256xf32>
    %230 = vector.broadcast %229 : vector<1x256xf32> to vector<64x256xf32>
    %231 = arith.addf %228, %230 : vector<64x256xf32>
    %c0_121 = arith.constant 0 : index
    %c0_122 = arith.constant 0 : index
    %232 = vector.load %arg8[%c0_121, %c0_122] : memref<64x256xf32, #tpu.memory_space<vmem>>, vector<64x256xf32>
    tpu.vector_store %arg8[%c0_121, %c0_122], %231 {strides = array<i32>} : memref<64x256xf32, #tpu.memory_space<vmem>>, vector<64x256xf32>,
    %c0_123 = arith.constant 0 : index
    %c0_124 = arith.constant 0 : index
    %233 = vector.load %arg5[%c0_123, %c0_124] : memref<64x256xf32, #tpu.memory_space<vmem>>, vector<64x256xf32>
    %cst_125 = arith.constant 0.000000e+00 : f32
    %234 = vector.broadcast %cst_125 : f32 to vector<8x64xf32>
    %cst_126 = arith.constant 0.000000e+00 : f32
    %235 = vector.broadcast %cst_126 : f32 to vector<8x64xf32>
    %c0_127 = arith.constant 0 : index
    %c0_128 = arith.constant 0 : index
    %236 = vector.load %arg8[%c0_127, %c0_128] : memref<64x256xf32, #tpu.memory_space<vmem>>, vector<8x256xf32>
    %cst_129 = arith.constant dense<0.000000e+00> : vector<8x256xf32>
    %237 = tpu.matmul %234, %233, %cst_129 {dimension_numbers = #tpu.dot_dimension_numbers<[1], [0], [0], [1], [0, 0, 1, 1], [], []>} : vector<8x64xf32>, vector<64x256xf32>, vector<8x256xf32> -> vector<8x256xf32>
    %238 = arith.addf %236, %237 : vector<8x256xf32>
    %239 = vector.extract_strided_slice %238 {offsets = [0, 0], sizes = [8, 192], strides = [1, 1]} : vector<8x256xf32> to vector<8x192xf32>
    %cst_130 = arith.constant 5.000000e-01 : f32
    %240 = vector.broadcast %cst_130 : f32 to vector<8x192xf32>
    %241 = arith.mulf %240, %239 : vector<8x192xf32>
    %242 = math.tanh %241 : vector<8x192xf32>
    %cst_131 = arith.constant 5.000000e-01 : f32
    %243 = vector.broadcast %cst_131 : f32 to vector<8x192xf32>
    %244 = arith.mulf %243, %242 : vector<8x192xf32>
    %cst_132 = arith.constant 5.000000e-01 : f32
    %245 = vector.broadcast %cst_132 : f32 to vector<8x192xf32>
    %246 = arith.addf %244, %245 : vector<8x192xf32>
    %247 = vector.extract_strided_slice %238 {offsets = [0, 192], sizes = [8, 64], strides = [1, 1]} : vector<8x256xf32> to vector<8x64xf32>
    %248 = math.tanh %247 : vector<8x64xf32>
    %249 = vector.extract_strided_slice %246 {offsets = [0, 0], sizes = [8, 64], strides = [1, 1]} : vector<8x192xf32> to vector<8x64xf32>
    %250 = vector.extract_strided_slice %246 {offsets = [0, 64], sizes = [8, 64], strides = [1, 1]} : vector<8x192xf32> to vector<8x64xf32>
    %251 = vector.extract_strided_slice %246 {offsets = [0, 128], sizes = [8, 64], strides = [1, 1]} : vector<8x192xf32> to vector<8x64xf32>
    %252 = arith.mulf %250, %235 : vector<8x64xf32>
    %253 = arith.mulf %249, %248 : vector<8x64xf32>
    %254 = arith.addf %252, %253 : vector<8x64xf32>
    %255 = math.tanh %254 : vector<8x64xf32>
    %256 = arith.mulf %251, %255 : vector<8x64xf32>
    %257 = vector.extract_strided_slice %256 {offsets = [0, 0], sizes = [8, 32], strides = [1, 1]} : vector<8x64xf32> to vector<8x32xf32>
    %258 = vector.extract_strided_slice %256 {offsets = [0, 32], sizes = [8, 32], strides = [1, 1]} : vector<8x64xf32> to vector<8x32xf32>
    %c0_133 = arith.constant 0 : index
    %c0_134 = arith.constant 0 : index
    %259 = vector.load %arg7[%c0_133, %c0_134] : memref<64x64xf32, #tpu.memory_space<vmem>>, vector<8x32xf32>
    tpu.vector_store %arg7[%c0_133, %c0_134], %257 {strides = array<i32>} : memref<64x64xf32, #tpu.memory_space<vmem>>, vector<8x32xf32>,
    %c56_135 = arith.constant 56 : index
    %c32_136 = arith.constant 32 : index
    %260 = vector.load %arg7[%c56_135, %c32_136] : memref<64x64xf32, #tpu.memory_space<vmem>>, vector<8x32xf32>
    tpu.vector_store %arg7[%c56_135, %c32_136], %258 {strides = array<i32>} : memref<64x64xf32, #tpu.memory_space<vmem>>, vector<8x32xf32>,
    %c8_137 = arith.constant 8 : index
    %c0_138 = arith.constant 0 : index
    %261 = vector.load %arg8[%c8_137, %c0_138] : memref<64x256xf32, #tpu.memory_space<vmem>>, vector<8x256xf32>
    %cst_139 = arith.constant dense<0.000000e+00> : vector<8x256xf32>
    %262 = tpu.matmul %256, %233, %cst_139 {dimension_numbers = #tpu.dot_dimension_numbers<[1], [0], [0], [1], [0, 0, 1, 1], [], []>} : vector<8x64xf32>, vector<64x256xf32>, vector<8x256xf32> -> vector<8x256xf32>
    %263 = arith.addf %261, %262 : vector<8x256xf32>
    %264 = vector.extract_strided_slice %263 {offsets = [0, 0], sizes = [8, 192], strides = [1, 1]} : vector<8x256xf32> to vector<8x192xf32>
    %cst_140 = arith.constant 5.000000e-01 : f32
    %265 = vector.broadcast %cst_140 : f32 to vector<8x192xf32>
    %266 = arith.mulf %265, %264 : vector<8x192xf32>
    %267 = math.tanh %266 : vector<8x192xf32>
    %cst_141 = arith.constant 5.000000e-01 : f32
    %268 = vector.broadcast %cst_141 : f32 to vector<8x192xf32>
    %269 = arith.mulf %268, %267 : vector<8x192xf32>
    %cst_142 = arith.constant 5.000000e-01 : f32
    %270 = vector.broadcast %cst_142 : f32 to vector<8x192xf32>
    %271 = arith.addf %269, %270 : vector<8x192xf32>
    %272 = vector.extract_strided_slice %263 {offsets = [0, 192], sizes = [8, 64], strides = [1, 1]} : vector<8x256xf32> to vector<8x64xf32>
    %273 = math.tanh %272 : vector<8x64xf32>
    %274 = vector.extract_strided_slice %271 {offsets = [0, 0], sizes = [8, 64], strides = [1, 1]} : vector<8x192xf32> to vector<8x64xf32>
    %275 = vector.extract_strided_slice %271 {offsets = [0, 64], sizes = [8, 64], strides = [1, 1]} : vector<8x192xf32> to vector<8x64xf32>
    %276 = vector.extract_strided_slice %271 {offsets = [0, 128], sizes = [8, 64], strides = [1, 1]} : vector<8x192xf32> to vector<8x64xf32>
    %277 = arith.mulf %275, %254 : vector<8x64xf32>
    %278 = arith.mulf %274, %273 : vector<8x64xf32>
    %279 = arith.addf %277, %278 : vector<8x64xf32>
    %280 = math.tanh %279 : vector<8x64xf32>
    %281 = arith.mulf %276, %280 : vector<8x64xf32>
    %282 = vector.extract_strided_slice %281 {offsets = [0, 0], sizes = [8, 32], strides = [1, 1]} : vector<8x64xf32> to vector<8x32xf32>
    %283 = vector.extract_strided_slice %281 {offsets = [0, 32], sizes = [8, 32], strides = [1, 1]} : vector<8x64xf32> to vector<8x32xf32>
    %c8_143 = arith.constant 8 : index
    %c0_144 = arith.constant 0 : index
    %284 = vector.load %arg7[%c8_143, %c0_144] : memref<64x64xf32, #tpu.memory_space<vmem>>, vector<8x32xf32>
    tpu.vector_store %arg7[%c8_143, %c0_144], %282 {strides = array<i32>} : memref<64x64xf32, #tpu.memory_space<vmem>>, vector<8x32xf32>,
    %c48_145 = arith.constant 48 : index
    %c32_146 = arith.constant 32 : index
    %285 = vector.load %arg7[%c48_145, %c32_146] : memref<64x64xf32, #tpu.memory_space<vmem>>, vector<8x32xf32>
    tpu.vector_store %arg7[%c48_145, %c32_146], %283 {strides = array<i32>} : memref<64x64xf32, #tpu.memory_space<vmem>>, vector<8x32xf32>,
    %c16_147 = arith.constant 16 : index
    %c0_148 = arith.constant 0 : index
    %286 = vector.load %arg8[%c16_147, %c0_148] : memref<64x256xf32, #tpu.memory_space<vmem>>, vector<8x256xf32>
    %cst_149 = arith.constant dense<0.000000e+00> : vector<8x256xf32>
    %287 = tpu.matmul %281, %233, %cst_149 {dimension_numbers = #tpu.dot_dimension_numbers<[1], [0], [0], [1], [0, 0, 1, 1], [], []>} : vector<8x64xf32>, vector<64x256xf32>, vector<8x256xf32> -> vector<8x256xf32>
    %288 = arith.addf %286, %287 : vector<8x256xf32>
    %289 = vector.extract_strided_slice %288 {offsets = [0, 0], sizes = [8, 192], strides = [1, 1]} : vector<8x256xf32> to vector<8x192xf32>
    %cst_150 = arith.constant 5.000000e-01 : f32
    %290 = vector.broadcast %cst_150 : f32 to vector<8x192xf32>
    %291 = arith.mulf %290, %289 : vector<8x192xf32>
    %292 = math.tanh %291 : vector<8x192xf32>
    %cst_151 = arith.constant 5.000000e-01 : f32
    %293 = vector.broadcast %cst_151 : f32 to vector<8x192xf32>
    %294 = arith.mulf %293, %292 : vector<8x192xf32>
    %cst_152 = arith.constant 5.000000e-01 : f32
    %295 = vector.broadcast %cst_152 : f32 to vector<8x192xf32>
    %296 = arith.addf %294, %295 : vector<8x192xf32>
    %297 = vector.extract_strided_slice %288 {offsets = [0, 192], sizes = [8, 64], strides = [1, 1]} : vector<8x256xf32> to vector<8x64xf32>
    %298 = math.tanh %297 : vector<8x64xf32>
    %299 = vector.extract_strided_slice %296 {offsets = [0, 0], sizes = [8, 64], strides = [1, 1]} : vector<8x192xf32> to vector<8x64xf32>
    %300 = vector.extract_strided_slice %296 {offsets = [0, 64], sizes = [8, 64], strides = [1, 1]} : vector<8x192xf32> to vector<8x64xf32>
    %301 = vector.extract_strided_slice %296 {offsets = [0, 128], sizes = [8, 64], strides = [1, 1]} : vector<8x192xf32> to vector<8x64xf32>
    %302 = arith.mulf %300, %279 : vector<8x64xf32>
    %303 = arith.mulf %299, %298 : vector<8x64xf32>
    %304 = arith.addf %302, %303 : vector<8x64xf32>
    %305 = math.tanh %304 : vector<8x64xf32>
    %306 = arith.mulf %301, %305 : vector<8x64xf32>
    %307 = vector.extract_strided_slice %306 {offsets = [0, 0], sizes = [8, 32], strides = [1, 1]} : vector<8x64xf32> to vector<8x32xf32>
    %308 = vector.extract_strided_slice %306 {offsets = [0, 32], sizes = [8, 32], strides = [1, 1]} : vector<8x64xf32> to vector<8x32xf32>
    %c16_153 = arith.constant 16 : index
    %c0_154 = arith.constant 0 : index
    %309 = vector.load %arg7[%c16_153, %c0_154] : memref<64x64xf32, #tpu.memory_space<vmem>>, vector<8x32xf32>
    tpu.vector_store %arg7[%c16_153, %c0_154], %307 {strides = array<i32>} : memref<64x64xf32, #tpu.memory_space<vmem>>, vector<8x32xf32>,
    %c40_155 = arith.constant 40 : index
    %c32_156 = arith.constant 32 : index
    %310 = vector.load %arg7[%c40_155, %c32_156] : memref<64x64xf32, #tpu.memory_space<vmem>>, vector<8x32xf32>
    tpu.vector_store %arg7[%c40_155, %c32_156], %308 {strides = array<i32>} : memref<64x64xf32, #tpu.memory_space<vmem>>, vector<8x32xf32>,
    %c24_157 = arith.constant 24 : index
    %c0_158 = arith.constant 0 : index
    %311 = vector.load %arg8[%c24_157, %c0_158] : memref<64x256xf32, #tpu.memory_space<vmem>>, vector<8x256xf32>
    %cst_159 = arith.constant dense<0.000000e+00> : vector<8x256xf32>
    %312 = tpu.matmul %306, %233, %cst_159 {dimension_numbers = #tpu.dot_dimension_numbers<[1], [0], [0], [1], [0, 0, 1, 1], [], []>} : vector<8x64xf32>, vector<64x256xf32>, vector<8x256xf32> -> vector<8x256xf32>
    %313 = arith.addf %311, %312 : vector<8x256xf32>
    %314 = vector.extract_strided_slice %313 {offsets = [0, 0], sizes = [8, 192], strides = [1, 1]} : vector<8x256xf32> to vector<8x192xf32>
    %cst_160 = arith.constant 5.000000e-01 : f32
    %315 = vector.broadcast %cst_160 : f32 to vector<8x192xf32>
    %316 = arith.mulf %315, %314 : vector<8x192xf32>
    %317 = math.tanh %316 : vector<8x192xf32>
    %cst_161 = arith.constant 5.000000e-01 : f32
    %318 = vector.broadcast %cst_161 : f32 to vector<8x192xf32>
    %319 = arith.mulf %318, %317 : vector<8x192xf32>
    %cst_162 = arith.constant 5.000000e-01 : f32
    %320 = vector.broadcast %cst_162 : f32 to vector<8x192xf32>
    %321 = arith.addf %319, %320 : vector<8x192xf32>
    %322 = vector.extract_strided_slice %313 {offsets = [0, 192], sizes = [8, 64], strides = [1, 1]} : vector<8x256xf32> to vector<8x64xf32>
    %323 = math.tanh %322 : vector<8x64xf32>
    %324 = vector.extract_strided_slice %321 {offsets = [0, 0], sizes = [8, 64], strides = [1, 1]} : vector<8x192xf32> to vector<8x64xf32>
    %325 = vector.extract_strided_slice %321 {offsets = [0, 64], sizes = [8, 64], strides = [1, 1]} : vector<8x192xf32> to vector<8x64xf32>
    %326 = vector.extract_strided_slice %321 {offsets = [0, 128], sizes = [8, 64], strides = [1, 1]} : vector<8x192xf32> to vector<8x64xf32>
    %327 = arith.mulf %325, %304 : vector<8x64xf32>
    %328 = arith.mulf %324, %323 : vector<8x64xf32>
    %329 = arith.addf %327, %328 : vector<8x64xf32>
    %330 = math.tanh %329 : vector<8x64xf32>
    %331 = arith.mulf %326, %330 : vector<8x64xf32>
    %332 = vector.extract_strided_slice %331 {offsets = [0, 0], sizes = [8, 32], strides = [1, 1]} : vector<8x64xf32> to vector<8x32xf32>
    %333 = vector.extract_strided_slice %331 {offsets = [0, 32], sizes = [8, 32], strides = [1, 1]} : vector<8x64xf32> to vector<8x32xf32>
    %c24_163 = arith.constant 24 : index
    %c0_164 = arith.constant 0 : index
    %334 = vector.load %arg7[%c24_163, %c0_164] : memref<64x64xf32, #tpu.memory_space<vmem>>, vector<8x32xf32>
    tpu.vector_store %arg7[%c24_163, %c0_164], %332 {strides = array<i32>} : memref<64x64xf32, #tpu.memory_space<vmem>>, vector<8x32xf32>,
    %c32_165 = arith.constant 32 : index
    %c32_166 = arith.constant 32 : index
    %335 = vector.load %arg7[%c32_165, %c32_166] : memref<64x64xf32, #tpu.memory_space<vmem>>, vector<8x32xf32>
    tpu.vector_store %arg7[%c32_165, %c32_166], %333 {strides = array<i32>} : memref<64x64xf32, #tpu.memory_space<vmem>>, vector<8x32xf32>,
    %c32_167 = arith.constant 32 : index
    %c0_168 = arith.constant 0 : index
    %336 = vector.load %arg8[%c32_167, %c0_168] : memref<64x256xf32, #tpu.memory_space<vmem>>, vector<8x256xf32>
    %cst_169 = arith.constant dense<0.000000e+00> : vector<8x256xf32>
    %337 = tpu.matmul %331, %233, %cst_169 {dimension_numbers = #tpu.dot_dimension_numbers<[1], [0], [0], [1], [0, 0, 1, 1], [], []>} : vector<8x64xf32>, vector<64x256xf32>, vector<8x256xf32> -> vector<8x256xf32>
    %338 = arith.addf %336, %337 : vector<8x256xf32>
    %339 = vector.extract_strided_slice %338 {offsets = [0, 0], sizes = [8, 192], strides = [1, 1]} : vector<8x256xf32> to vector<8x192xf32>
    %cst_170 = arith.constant 5.000000e-01 : f32
    %340 = vector.broadcast %cst_170 : f32 to vector<8x192xf32>
    %341 = arith.mulf %340, %339 : vector<8x192xf32>
    %342 = math.tanh %341 : vector<8x192xf32>
    %cst_171 = arith.constant 5.000000e-01 : f32
    %343 = vector.broadcast %cst_171 : f32 to vector<8x192xf32>
    %344 = arith.mulf %343, %342 : vector<8x192xf32>
    %cst_172 = arith.constant 5.000000e-01 : f32
    %345 = vector.broadcast %cst_172 : f32 to vector<8x192xf32>
    %346 = arith.addf %344, %345 : vector<8x192xf32>
    %347 = vector.extract_strided_slice %338 {offsets = [0, 192], sizes = [8, 64], strides = [1, 1]} : vector<8x256xf32> to vector<8x64xf32>
    %348 = math.tanh %347 : vector<8x64xf32>
    %349 = vector.extract_strided_slice %346 {offsets = [0, 0], sizes = [8, 64], strides = [1, 1]} : vector<8x192xf32> to vector<8x64xf32>
    %350 = vector.extract_strided_slice %346 {offsets = [0, 64], sizes = [8, 64], strides = [1, 1]} : vector<8x192xf32> to vector<8x64xf32>
    %351 = vector.extract_strided_slice %346 {offsets = [0, 128], sizes = [8, 64], strides = [1, 1]} : vector<8x192xf32> to vector<8x64xf32>
    %352 = arith.mulf %350, %329 : vector<8x64xf32>
    %353 = arith.mulf %349, %348 : vector<8x64xf32>
    %354 = arith.addf %352, %353 : vector<8x64xf32>
    %355 = math.tanh %354 : vector<8x64xf32>
    %356 = arith.mulf %351, %355 : vector<8x64xf32>
    %357 = vector.extract_strided_slice %356 {offsets = [0, 0], sizes = [8, 32], strides = [1, 1]} : vector<8x64xf32> to vector<8x32xf32>
    %358 = vector.extract_strided_slice %356 {offsets = [0, 32], sizes = [8, 32], strides = [1, 1]} : vector<8x64xf32> to vector<8x32xf32>
    %c32_173 = arith.constant 32 : index
    %c0_174 = arith.constant 0 : index
    %359 = vector.load %arg7[%c32_173, %c0_174] : memref<64x64xf32, #tpu.memory_space<vmem>>, vector<8x32xf32>
    tpu.vector_store %arg7[%c32_173, %c0_174], %357 {strides = array<i32>} : memref<64x64xf32, #tpu.memory_space<vmem>>, vector<8x32xf32>,
    %c24_175 = arith.constant 24 : index
    %c32_176 = arith.constant 32 : index
    %360 = vector.load %arg7[%c24_175, %c32_176] : memref<64x64xf32, #tpu.memory_space<vmem>>, vector<8x32xf32>
    tpu.vector_store %arg7[%c24_175, %c32_176], %358 {strides = array<i32>} : memref<64x64xf32, #tpu.memory_space<vmem>>, vector<8x32xf32>,
    %c40_177 = arith.constant 40 : index
    %c0_178 = arith.constant 0 : index
    %361 = vector.load %arg8[%c40_177, %c0_178] : memref<64x256xf32, #tpu.memory_space<vmem>>, vector<8x256xf32>
    %cst_179 = arith.constant dense<0.000000e+00> : vector<8x256xf32>
    %362 = tpu.matmul %356, %233, %cst_179 {dimension_numbers = #tpu.dot_dimension_numbers<[1], [0], [0], [1], [0, 0, 1, 1], [], []>} : vector<8x64xf32>, vector<64x256xf32>, vector<8x256xf32> -> vector<8x256xf32>
    %363 = arith.addf %361, %362 : vector<8x256xf32>
    %364 = vector.extract_strided_slice %363 {offsets = [0, 0], sizes = [8, 192], strides = [1, 1]} : vector<8x256xf32> to vector<8x192xf32>
    %cst_180 = arith.constant 5.000000e-01 : f32
    %365 = vector.broadcast %cst_180 : f32 to vector<8x192xf32>
    %366 = arith.mulf %365, %364 : vector<8x192xf32>
    %367 = math.tanh %366 : vector<8x192xf32>
    %cst_181 = arith.constant 5.000000e-01 : f32
    %368 = vector.broadcast %cst_181 : f32 to vector<8x192xf32>
    %369 = arith.mulf %368, %367 : vector<8x192xf32>
    %cst_182 = arith.constant 5.000000e-01 : f32
    %370 = vector.broadcast %cst_182 : f32 to vector<8x192xf32>
    %371 = arith.addf %369, %370 : vector<8x192xf32>
    %372 = vector.extract_strided_slice %363 {offsets = [0, 192], sizes = [8, 64], strides = [1, 1]} : vector<8x256xf32> to vector<8x64xf32>
    %373 = math.tanh %372 : vector<8x64xf32>
    %374 = vector.extract_strided_slice %371 {offsets = [0, 0], sizes = [8, 64], strides = [1, 1]} : vector<8x192xf32> to vector<8x64xf32>
    %375 = vector.extract_strided_slice %371 {offsets = [0, 64], sizes = [8, 64], strides = [1, 1]} : vector<8x192xf32> to vector<8x64xf32>
    %376 = vector.extract_strided_slice %371 {offsets = [0, 128], sizes = [8, 64], strides = [1, 1]} : vector<8x192xf32> to vector<8x64xf32>
    %377 = arith.mulf %375, %354 : vector<8x64xf32>
    %378 = arith.mulf %374, %373 : vector<8x64xf32>
    %379 = arith.addf %377, %378 : vector<8x64xf32>
    %380 = math.tanh %379 : vector<8x64xf32>
    %381 = arith.mulf %376, %380 : vector<8x64xf32>
    %382 = vector.extract_strided_slice %381 {offsets = [0, 0], sizes = [8, 32], strides = [1, 1]} : vector<8x64xf32> to vector<8x32xf32>
    %383 = vector.extract_strided_slice %381 {offsets = [0, 32], sizes = [8, 32], strides = [1, 1]} : vector<8x64xf32> to vector<8x32xf32>
    %c40_183 = arith.constant 40 : index
    %c0_184 = arith.constant 0 : index
    %384 = vector.load %arg7[%c40_183, %c0_184] : memref<64x64xf32, #tpu.memory_space<vmem>>, vector<8x32xf32>
    tpu.vector_store %arg7[%c40_183, %c0_184], %382 {strides = array<i32>} : memref<64x64xf32, #tpu.memory_space<vmem>>, vector<8x32xf32>,
    %c16_185 = arith.constant 16 : index
    %c32_186 = arith.constant 32 : index
    %385 = vector.load %arg7[%c16_185, %c32_186] : memref<64x64xf32, #tpu.memory_space<vmem>>, vector<8x32xf32>
    tpu.vector_store %arg7[%c16_185, %c32_186], %383 {strides = array<i32>} : memref<64x64xf32, #tpu.memory_space<vmem>>, vector<8x32xf32>,
    %c48_187 = arith.constant 48 : index
    %c0_188 = arith.constant 0 : index
    %386 = vector.load %arg8[%c48_187, %c0_188] : memref<64x256xf32, #tpu.memory_space<vmem>>, vector<8x256xf32>
    %cst_189 = arith.constant dense<0.000000e+00> : vector<8x256xf32>
    %387 = tpu.matmul %381, %233, %cst_189 {dimension_numbers = #tpu.dot_dimension_numbers<[1], [0], [0], [1], [0, 0, 1, 1], [], []>} : vector<8x64xf32>, vector<64x256xf32>, vector<8x256xf32> -> vector<8x256xf32>
    %388 = arith.addf %386, %387 : vector<8x256xf32>
    %389 = vector.extract_strided_slice %388 {offsets = [0, 0], sizes = [8, 192], strides = [1, 1]} : vector<8x256xf32> to vector<8x192xf32>
    %cst_190 = arith.constant 5.000000e-01 : f32
    %390 = vector.broadcast %cst_190 : f32 to vector<8x192xf32>
    %391 = arith.mulf %390, %389 : vector<8x192xf32>
    %392 = math.tanh %391 : vector<8x192xf32>
    %cst_191 = arith.constant 5.000000e-01 : f32
    %393 = vector.broadcast %cst_191 : f32 to vector<8x192xf32>
    %394 = arith.mulf %393, %392 : vector<8x192xf32>
    %cst_192 = arith.constant 5.000000e-01 : f32
    %395 = vector.broadcast %cst_192 : f32 to vector<8x192xf32>
    %396 = arith.addf %394, %395 : vector<8x192xf32>
    %397 = vector.extract_strided_slice %388 {offsets = [0, 192], sizes = [8, 64], strides = [1, 1]} : vector<8x256xf32> to vector<8x64xf32>
    %398 = math.tanh %397 : vector<8x64xf32>
    %399 = vector.extract_strided_slice %396 {offsets = [0, 0], sizes = [8, 64], strides = [1, 1]} : vector<8x192xf32> to vector<8x64xf32>
    %400 = vector.extract_strided_slice %396 {offsets = [0, 64], sizes = [8, 64], strides = [1, 1]} : vector<8x192xf32> to vector<8x64xf32>
    %401 = vector.extract_strided_slice %396 {offsets = [0, 128], sizes = [8, 64], strides = [1, 1]} : vector<8x192xf32> to vector<8x64xf32>
    %402 = arith.mulf %400, %379 : vector<8x64xf32>
    %403 = arith.mulf %399, %398 : vector<8x64xf32>
    %404 = arith.addf %402, %403 : vector<8x64xf32>
    %405 = math.tanh %404 : vector<8x64xf32>
    %406 = arith.mulf %401, %405 : vector<8x64xf32>
    %407 = vector.extract_strided_slice %406 {offsets = [0, 0], sizes = [8, 32], strides = [1, 1]} : vector<8x64xf32> to vector<8x32xf32>
    %408 = vector.extract_strided_slice %406 {offsets = [0, 32], sizes = [8, 32], strides = [1, 1]} : vector<8x64xf32> to vector<8x32xf32>
    %c48_193 = arith.constant 48 : index
    %c0_194 = arith.constant 0 : index
    %409 = vector.load %arg7[%c48_193, %c0_194] : memref<64x64xf32, #tpu.memory_space<vmem>>, vector<8x32xf32>
    tpu.vector_store %arg7[%c48_193, %c0_194], %407 {strides = array<i32>} : memref<64x64xf32, #tpu.memory_space<vmem>>, vector<8x32xf32>,
    %c8_195 = arith.constant 8 : index
    %c32_196 = arith.constant 32 : index
    %410 = vector.load %arg7[%c8_195, %c32_196] : memref<64x64xf32, #tpu.memory_space<vmem>>, vector<8x32xf32>
    tpu.vector_store %arg7[%c8_195, %c32_196], %408 {strides = array<i32>} : memref<64x64xf32, #tpu.memory_space<vmem>>, vector<8x32xf32>,
    %c56_197 = arith.constant 56 : index
    %c0_198 = arith.constant 0 : index
    %411 = vector.load %arg8[%c56_197, %c0_198] : memref<64x256xf32, #tpu.memory_space<vmem>>, vector<8x256xf32>
    %cst_199 = arith.constant dense<0.000000e+00> : vector<8x256xf32>
    %412 = tpu.matmul %406, %233, %cst_199 {dimension_numbers = #tpu.dot_dimension_numbers<[1], [0], [0], [1], [0, 0, 1, 1], [], []>} : vector<8x64xf32>, vector<64x256xf32>, vector<8x256xf32> -> vector<8x256xf32>
    %413 = arith.addf %411, %412 : vector<8x256xf32>
    %414 = vector.extract_strided_slice %413 {offsets = [0, 0], sizes = [8, 192], strides = [1, 1]} : vector<8x256xf32> to vector<8x192xf32>
    %cst_200 = arith.constant 5.000000e-01 : f32
    %415 = vector.broadcast %cst_200 : f32 to vector<8x192xf32>
    %416 = arith.mulf %415, %414 : vector<8x192xf32>
    %417 = math.tanh %416 : vector<8x192xf32>
    %cst_201 = arith.constant 5.000000e-01 : f32
    %418 = vector.broadcast %cst_201 : f32 to vector<8x192xf32>
    %419 = arith.mulf %418, %417 : vector<8x192xf32>
    %cst_202 = arith.constant 5.000000e-01 : f32
    %420 = vector.broadcast %cst_202 : f32 to vector<8x192xf32>
    %421 = arith.addf %419, %420 : vector<8x192xf32>
    %422 = vector.extract_strided_slice %413 {offsets = [0, 192], sizes = [8, 64], strides = [1, 1]} : vector<8x256xf32> to vector<8x64xf32>
    %423 = math.tanh %422 : vector<8x64xf32>
    %424 = vector.extract_strided_slice %421 {offsets = [0, 0], sizes = [8, 64], strides = [1, 1]} : vector<8x192xf32> to vector<8x64xf32>
    %425 = vector.extract_strided_slice %421 {offsets = [0, 64], sizes = [8, 64], strides = [1, 1]} : vector<8x192xf32> to vector<8x64xf32>
    %426 = vector.extract_strided_slice %421 {offsets = [0, 128], sizes = [8, 64], strides = [1, 1]} : vector<8x192xf32> to vector<8x64xf32>
    %427 = arith.mulf %425, %404 : vector<8x64xf32>
    %428 = arith.mulf %424, %423 : vector<8x64xf32>
    %429 = arith.addf %427, %428 : vector<8x64xf32>
    %430 = math.tanh %429 : vector<8x64xf32>
    %431 = arith.mulf %426, %430 : vector<8x64xf32>
    %432 = vector.extract_strided_slice %431 {offsets = [0, 0], sizes = [8, 32], strides = [1, 1]} : vector<8x64xf32> to vector<8x32xf32>
    %433 = vector.extract_strided_slice %431 {offsets = [0, 32], sizes = [8, 32], strides = [1, 1]} : vector<8x64xf32> to vector<8x32xf32>
    %c56_203 = arith.constant 56 : index
    %c0_204 = arith.constant 0 : index
    %434 = vector.load %arg7[%c56_203, %c0_204] : memref<64x64xf32, #tpu.memory_space<vmem>>, vector<8x32xf32>
    tpu.vector_store %arg7[%c56_203, %c0_204], %432 {strides = array<i32>} : memref<64x64xf32, #tpu.memory_space<vmem>>, vector<8x32xf32>,
    %c0_205 = arith.constant 0 : index
    %c32_206 = arith.constant 32 : index
    %435 = vector.load %arg7[%c0_205, %c32_206] : memref<64x64xf32, #tpu.memory_space<vmem>>, vector<8x32xf32>
    tpu.vector_store %arg7[%c0_205, %c32_206], %433 {strides = array<i32>} : memref<64x64xf32, #tpu.memory_space<vmem>>, vector<8x32xf32>,
    return
  }
}

</mosaic_0001>

<llo_original>
// kernel: bidirectional_lstm_forward.1
$region0: #{bidirectional_lstm_forward.1}
  #allocation0 [shape = 'u32[]', space=smem, size = 0x4, offset = 0x4, fixed_abs, tag = 'smem constant byte address 0x4 - core index']
  #allocation1 [shape = 'u32[144,128]{1,0:T(1,128)}', space=vmem, size = 0x12000, scoped, tag = 'internal scratch']
  #allocation2 [shape = 'f32[64,256]{1,0:T(8,128)}', space=vmem, size = 0x10000, scoped, tag = 'scratch operand']
  #allocation3 [shape = 'f32[64,128]{1,0:T(8,128)}', space=vmem, size = 0x8000, scoped, tag = 'scratch operand']
  %s0 = inlined_call_operand.vmem [shape: f32[64,64], index: 0, kind: input, shape index: {}]
  %s1 = inlined_call_operand.vmem [shape: f32[64,256], index: 1, kind: input, shape index: {}]
  %s2 = inlined_call_operand.hbm [shape: f32[64,256], index: 2, kind: input, shape index: {}]
  %s3 = inlined_call_operand.vmem [shape: f32[1,256], index: 3, kind: input, shape index: {}]
  %s4 = inlined_call_operand.vmem [shape: f32[128,256], index: 4, kind: input, shape index: {}]
  %s5 = inlined_call_operand.hbm [shape: f32[64,256], index: 5, kind: input, shape index: {}]
  %s6 = inlined_call_operand.vmem [shape: f32[1,256], index: 6, kind: input, shape index: {}]
  %s7 = inlined_call_operand.vmem [shape: f32[64,64], index: 7, kind: output, shape index: {}]
  %s8 = sld [smem:[#allocation0]]
  $region46: #{bidirectional_lstm_forward.1} parent=0
    _
  %s10 = ssub.s32 1, %s8
  %s11 = scalar_select 0, %s10, %s8
  $region1: #{bidirectional_lstm_forward.1} parent=0
    #allocation4 [shape = 'u8[65536]{0}', space=vmem, size = 0x10000, scoped, tag = 'input window, operand 2, single buffered']
    #allocation5 [shape = 's32[1]{0}', space=sflag, size = 0x4, scoped, tag = 'scoped memory for bidirectional_lstm_forward.1']
    #allocation6 [shape = 'u8[65536]{0}', space=vmem, size = 0x10000, scoped, tag = 'input window, operand 5, single buffered']
    #allocation7 [shape = 's32[1]{0}', space=sflag, size = 0x4, scoped, tag = 'scoped memory for bidirectional_lstm_forward.1']
    %12 = vsyncpa [#allocation5], 0
    %13 = vsyncpa [#allocation7], 0
    // Predicated region
    $region2: #{bidirectional_lstm_forward.1} parent=1 // pred_check
      _
    $region3: #{bidirectional_lstm_forward.1} parent=1 // pred_check_branch
      %15 = sbr.rel (0) target = $region5
    $region4: #{bidirectional_lstm_forward.1} parent=1 // pred_region
      _
    $region5: #{bidirectional_lstm_forward.1} parent=1 // pred_fallthru
      _
    // Predicated region
    $region6: #{bidirectional_lstm_forward.1} parent=1 // pred_check
      _
    $region7: #{bidirectional_lstm_forward.1} parent=1 // pred_check_branch
      %17 = sbr.rel (0) target = $region9
    $region8: #{bidirectional_lstm_forward.1} parent=1 // pred_region
      _
    $region9: #{bidirectional_lstm_forward.1} parent=1 // pred_fallthru
      _
    // Predicated region
    $region10: #{bidirectional_lstm_forward.1} parent=1 // pred_check
      _
    $region11: #{bidirectional_lstm_forward.1} parent=1 // pred_check_branch
      %19 = sbr.rel (0) target = $region13
    $region12: #{bidirectional_lstm_forward.1} parent=1 // pred_region
      %s21 = ssub.s32 2048, 2048
      %22 = vsyncadd [#allocation5], %s21
      %s23 = sshll.u32 [#allocation4], 4
      %s24 = int_to_ptr.vmem [resolvable:$true] %s23
      %29 = dma.hbm_to_vmem [thread:$0]  %s2, 2048, %s24, [#allocation5], 256, 256, 16
    $region13: #{bidirectional_lstm_forward.1} parent=1 // pred_fallthru
      _
    // Predicated region
    $region14: #{bidirectional_lstm_forward.1} parent=1 // pred_check
      _
    $region15: #{bidirectional_lstm_forward.1} parent=1 // pred_check_branch
      %31 = sbr.rel (0) target = $region17
    $region16: #{bidirectional_lstm_forward.1} parent=1 // pred_region
      _
    $region17: #{bidirectional_lstm_forward.1} parent=1 // pred_fallthru
      _
    // Predicated region
    $region18: #{bidirectional_lstm_forward.1} parent=1 // pred_check
      _
    $region19: #{bidirectional_lstm_forward.1} parent=1 // pred_check_branch
      %33 = sbr.rel (0) target = $region21
    $region20: #{bidirectional_lstm_forward.1} parent=1 // pred_region
      _
    $region21: #{bidirectional_lstm_forward.1} parent=1 // pred_fallthru
      _
    // Predicated region
    $region22: #{bidirectional_lstm_forward.1} parent=1 // pred_check
      _
    $region23: #{bidirectional_lstm_forward.1} parent=1 // pred_check_branch
      %35 = sbr.rel (0) target = $region25
    $region24: #{bidirectional_lstm_forward.1} parent=1 // pred_region
      %s37 = ssub.s32 2048, 2048
      %38 = vsyncadd [#allocation7], %s37
      %s39 = sshll.u32 [#allocation6], 4
      %s40 = int_to_ptr.vmem [resolvable:$true] %s39
      %45 = dma.hbm_to_vmem [thread:$0]  %s5, 2048, %s40, [#allocation7], 256, 256, 16
    $region25: #{bidirectional_lstm_forward.1} parent=1 // pred_fallthru
      _
    // Predicated region
    $region26: #{bidirectional_lstm_forward.1} parent=1 // pred_check
      _
    $region27: #{bidirectional_lstm_forward.1} parent=1 // pred_check_branch
      %47 = sbr.rel (0) target = $region29
    $region28: #{bidirectional_lstm_forward.1} parent=1 // pred_region
      _
    $region29: #{bidirectional_lstm_forward.1} parent=1 // pred_fallthru
      _
    // Predicated region
    $region30: #{bidirectional_lstm_forward.1} parent=1 // pred_check
      _
    $region31: #{bidirectional_lstm_forward.1} parent=1 // pred_check_branch
      %49 = sbr.rel (0) target = $region33
    $region32: #{bidirectional_lstm_forward.1} parent=1 // pred_region
      %50 = dma.done [#allocation5], 2048
    $region33: #{bidirectional_lstm_forward.1} parent=1 // pred_fallthru
      _
    // Predicated region
    $region34: #{bidirectional_lstm_forward.1} parent=1 // pred_check
      _
    $region35: #{bidirectional_lstm_forward.1} parent=1 // pred_check_branch
      %52 = sbr.rel (0) target = $region37
    $region36: #{bidirectional_lstm_forward.1} parent=1 // pred_region
      %53 = dma.done [#allocation7], 2048
    $region37: #{bidirectional_lstm_forward.1} parent=1 // pred_fallthru
      _
    %v54 = vld [vmem:[%s0] sm:$0xff]
    %v55 = vld [vmem:[%s0 + $0x8] sm:$0xff]
    %v56 = vld [vmem:[%s0 + $0x10] sm:$0xff]
    %v57 = vld [vmem:[%s0 + $0x18] sm:$0xff]
    %v58 = vld [vmem:[%s0 + $0x20] sm:$0xff]
    %v59 = vld [vmem:[%s0 + $0x28] sm:$0xff]
    %v60 = vld [vmem:[%s0 + $0x30] sm:$0xff]
    %v61 = vld [vmem:[%s0 + $0x38] sm:$0xff]
    %v62 = vld [vmem:[%s1] sm:$0xff]
    %v63 = vld [vmem:[%s1 + $0x8] sm:$0xff]
    %v64 = vld [vmem:[%s1 + $0x10] sm:$0xff]
    %v65 = vld [vmem:[%s1 + $0x18] sm:$0xff]
    %v66 = vld [vmem:[%s1 + $0x20] sm:$0xff]
    %v67 = vld [vmem:[%s1 + $0x28] sm:$0xff]
    %v68 = vld [vmem:[%s1 + $0x30] sm:$0xff]
    %v69 = vld [vmem:[%s1 + $0x38] sm:$0xff]
    %v70 = vld [vmem:[%s1 + $0x40] sm:$0xff]
    %v71 = vld [vmem:[%s1 + $0x48] sm:$0xff]
    %v72 = vld [vmem:[%s1 + $0x50] sm:$0xff]
    %v73 = vld [vmem:[%s1 + $0x58] sm:$0xff]
    %v74 = vld [vmem:[%s1 + $0x60] sm:$0xff]
    %v75 = vld [vmem:[%s1 + $0x68] sm:$0xff]
    %v76 = vld [vmem:[%s1 + $0x70] sm:$0xff]
    %v77 = vld [vmem:[%s1 + $0x78] sm:$0xff]
    %v78 = vld [vmem:[%s3] sm:$0x3]
    %v80 = vlaneseq
    %v81 = vshrl.u32 %v80, 7
    %v82 = vsub.s32 0, %v81
    %v83 = vrot.slane %v78, %v82
    %v84 = vlaneseq
    %v85 = vshrl.u32 %v84, 7
    %v86 = vsub.s32 1, %v85
    %v87 = vrot.slane %v78, %v86
    %vm90 = vcmask 523264
    %v92 = vsel %vm90, %v54, 0
    %v95 = vsel %vm90, %v55, 0
    %v98 = vsel %vm90, %v56, 0
    %v101 = vsel %vm90, %v57, 0
    %v104 = vsel %vm90, %v58, 0
    %v107 = vsel %vm90, %v59, 0
    %v110 = vsel %vm90, %v60, 0
    %v113 = vsel %vm90, %v61, 0
    %115 = vmatprep.subr.mxu0 0.0
    %116 = vmatpush1.msra.mxu0 0.0
    %117 = vmatprep.subr.mxu0 0.0
    %118 = vmatpush1.msra.mxu0 0.0
    %119 = vmatprep.subr.mxu0 0.0
    %120 = vmatpush1.msra.mxu0 0.0
    %121 = vmatprep.subr.mxu0 0.0
    %122 = vmatpush1.msra.mxu0 0.0
    %123 = vmatprep.subr.mxu0 0.0
    %124 = vmatpush1.msra.mxu0 0.0
    %125 = vmatprep.subr.mxu0 0.0
    %126 = vmatpush1.msra.mxu0 0.0
    %127 = vmatprep.subr.mxu0 0.0
    %128 = vmatpush1.msra.mxu0 0.0
    %129 = vmatprep.subr.mxu0 0.0
    %130 = vmatpush1.msra.mxu0 0.0
    %131 = vmatprep.subr.mxu0 %v77
    %132 = vmatpush1.msra.mxu0 %v76
    %133 = vmatprep.subr.mxu0 %v75
    %134 = vmatpush1.msra.mxu0 %v74
    %135 = vmatprep.subr.mxu0 %v73
    %136 = vmatpush1.msra.mxu0 %v72
    %137 = vmatprep.subr.mxu0 %v71
    %138 = vmatpush1.msra.mxu0 %v70
    %139 = vmatprep.subr.mxu0 %v69
    %140 = vmatpush1.msra.mxu0 %v68
    %141 = vmatprep.subr.mxu0 %v67
    %142 = vmatpush1.msra.mxu0 %v66
    %143 = vmatprep.subr.mxu0 %v65
    %144 = vmatpush1.msra.mxu0 %v64
    %145 = vmatprep.subr.mxu0 %v63
    %146 = vmatpush1.msra.mxu0 %v62
    %147 = vmatprep.subr.mxu0 0.0
    %148 = vmatpush2.msra.mxu0 0.0
    %149 = vmatprep.subr.mxu0 0.0
    %150 = vmatpush2.msra.mxu0 0.0
    %151 = vmatprep.subr.mxu0 0.0
    %152 = vmatpush2.msra.mxu0 0.0
    %153 = vmatprep.subr.mxu0 0.0
    %154 = vmatpush2.msra.mxu0 0.0
    %155 = vmatprep.subr.mxu0 0.0
    %156 = vmatpush2.msra.mxu0 0.0
    %157 = vmatprep.subr.mxu0 0.0
    %158 = vmatpush2.msra.mxu0 0.0
    %159 = vmatprep.subr.mxu0 0.0
    %160 = vmatpush2.msra.mxu0 0.0
    %161 = vmatprep.subr.mxu0 0.0
    %162 = vmatpush2.msra.mxu0 0.0
    %163 = vmatprep.subr.mxu0 0.0
    %164 = vmatpush2.msra.mxu0 0.0
    %165 = vmatprep.subr.mxu0 0.0
    %166 = vmatpush2.msra.mxu0 0.0
    %167 = vmatprep.subr.mxu0 0.0
    %168 = vmatpush2.msra.mxu0 0.0
    %169 = vmatprep.subr.mxu0 0.0
    %170 = vmatpush2.msra.mxu0 0.0
    %171 = vmatprep.subr.mxu0 0.0
    %172 = vmatpush2.msra.mxu0 0.0
    %173 = vmatprep.subr.mxu0 0.0
    %174 = vmatpush2.msra.mxu0 0.0
    %175 = vmatprep.subr.mxu0 0.0
    %176 = vmatpush2.msra.mxu0 0.0
    %177 = vmatprep.subr.mxu0 0.0
    %178 = vmatpush2.msra.mxu0 0.0
    %179 = vmatprep.mubr.f32.mxu0 0.0
    %180 = vmatmul.mubr.f32.gmra.mxu0 %v92
    %v181 = vpop.f32.mrf.mxu0
    %v182 = vadd.f32 %v83, %v181
    %v183 = vpop.f32.mrf.mxu0
    %v184 = vadd.f32 %v87, %v183
    %185 = vmatprep.mubr.f32.mxu0 0.0
    %186 = vmatmul.mubr.f32.gmra.mxu0 %v95
    %v187 = vpop.f32.mrf.mxu0
    %v188 = vadd.f32 %v83, %v187
    %v189 = vpop.f32.mrf.mxu0
    %v190 = vadd.f32 %v87, %v189
    %191 = vmatprep.mubr.f32.mxu0 0.0
    %192 = vmatmul.mubr.f32.gmra.mxu0 %v98
    %v193 = vpop.f32.mrf.mxu0
    %v194 = vadd.f32 %v83, %v193
    %v195 = vpop.f32.mrf.mxu0
    %v196 = vadd.f32 %v87, %v195
    %197 = vmatprep.mubr.f32.mxu0 0.0
    %198 = vmatmul.mubr.f32.gmra.mxu0 %v101
    %v199 = vpop.f32.mrf.mxu0
    %v200 = vadd.f32 %v83, %v199
    %v201 = vpop.f32.mrf.mxu0
    %v202 = vadd.f32 %v87, %v201
    %203 = vmatprep.mubr.f32.mxu0 0.0
    %204 = vmatmul.mubr.f32.gmra.mxu0 %v104
    %v205 = vpop.f32.mrf.mxu0
    %v206 = vadd.f32 %v83, %v205
    %v207 = vpop.f32.mrf.mxu0
    %v208 = vadd.f32 %v87, %v207
    %209 = vmatprep.mubr.f32.mxu0 0.0
    %210 = vmatmul.mubr.f32.gmra.mxu0 %v107
    %v211 = vpop.f32.mrf.mxu0
    %v212 = vadd.f32 %v83, %v211
    %v213 = vpop.f32.mrf.mxu0
    %v214 = vadd.f32 %v87, %v213
    %215 = vmatprep.mubr.f32.mxu0 0.0
    %216 = vmatmul.mubr.f32.gmra.mxu0 %v110
    %v217 = vpop.f32.mrf.mxu0
    %v218 = vadd.f32 %v83, %v217
    %v219 = vpop.f32.mrf.mxu0
    %v220 = vadd.f32 %v87, %v219
    %221 = vmatprep.mubr.f32.mxu0 0.0
    %222 = vmatmul.mubr.f32.gmra.mxu0 %v113
    %v223 = vpop.f32.mrf.mxu0
    %v224 = vadd.f32 %v83, %v223
    %v225 = vpop.f32.mrf.mxu0
    %v226 = vadd.f32 %v87, %v225
    %227 = vdwg.mxu0
    %228 = vst [vmem:[#allocation2] sm:$0xff] %v182
    %229 = vst [vmem:[#allocation2 + $0x8] sm:$0xff] %v184
    %230 = vst [vmem:[#allocation2 + $0x10] sm:$0xff] %v188
    %231 = vst [vmem:[#allocation2 + $0x18] sm:$0xff] %v190
    %232 = vst [vmem:[#allocation2 + $0x20] sm:$0xff] %v194
    %233 = vst [vmem:[#allocation2 + $0x28] sm:$0xff] %v196
    %234 = vst [vmem:[#allocation2 + $0x30] sm:$0xff] %v200
    %235 = vst [vmem:[#allocation2 + $0x38] sm:$0xff] %v202
    %236 = vst [vmem:[#allocation2 + $0x40] sm:$0xff] %v206
    %237 = vst [vmem:[#allocation2 + $0x48] sm:$0xff] %v208
    %238 = vst [vmem:[#allocation2 + $0x50] sm:$0xff] %v212
    %239 = vst [vmem:[#allocation2 + $0x58] sm:$0xff] %v214
    %240 = vst [vmem:[#allocation2 + $0x60] sm:$0xff] %v218
    %241 = vst [vmem:[#allocation2 + $0x68] sm:$0xff] %v220
    %242 = vst [vmem:[#allocation2 + $0x70] sm:$0xff] %v224
    %243 = vst [vmem:[#allocation2 + $0x78] sm:$0xff] %v226
    %v244 = vld [vmem:[#allocation4] sm:$0xff]
    %v245 = vld [vmem:[#allocation4 + $0x8] sm:$0xff]
    %v246 = vld [vmem:[#allocation4 + $0x10] sm:$0xff]
    %v247 = vld [vmem:[#allocation4 + $0x18] sm:$0xff]
    %v248 = vld [vmem:[#allocation4 + $0x20] sm:$0xff]
    %v249 = vld [vmem:[#allocation4 + $0x28] sm:$0xff]
    %v250 = vld [vmem:[#allocation4 + $0x30] sm:$0xff]
    %v251 = vld [vmem:[#allocation4 + $0x38] sm:$0xff]
    %v252 = vld [vmem:[#allocation4 + $0x40] sm:$0xff]
    %v253 = vld [vmem:[#allocation4 + $0x48] sm:$0xff]
    %v254 = vld [vmem:[#allocation4 + $0x50] sm:$0xff]
    %v255 = vld [vmem:[#allocation4 + $0x58] sm:$0xff]
    %v256 = vld [vmem:[#allocation4 + $0x60] sm:$0xff]
    %v257 = vld [vmem:[#allocation4 + $0x68] sm:$0xff]
    %v258 = vld [vmem:[#allocation4 + $0x70] sm:$0xff]
    %v259 = vld [vmem:[#allocation4 + $0x78] sm:$0xff]
    %v260 = vld [vmem:[#allocation2] sm:$0xff]
    %v261 = vld [vmem:[#allocation2 + $0x8] sm:$0xff]
    %v263 = vsel %vm90, 0.0, 0
    %265 = vmatprep.subr.mxu0 0.0
    %266 = vmatpush1.msra.mxu0 0.0
    %267 = vmatprep.subr.mxu0 0.0
    %268 = vmatpush1.msra.mxu0 0.0
    %269 = vmatprep.subr.mxu0 0.0
    %270 = vmatpush1.msra.mxu0 0.0
    %271 = vmatprep.subr.mxu0 0.0
    %272 = vmatpush1.msra.mxu0 0.0
    %273 = vmatprep.subr.mxu0 0.0
    %274 = vmatpush1.msra.mxu0 0.0
    %275 = vmatprep.subr.mxu0 0.0
    %276 = vmatpush1.msra.mxu0 0.0
    %277 = vmatprep.subr.mxu0 0.0
    %278 = vmatpush1.msra.mxu0 0.0
    %279 = vmatprep.subr.mxu0 0.0
    %280 = vmatpush1.msra.mxu0 0.0
    %281 = vmatprep.subr.mxu0 %v259
    %282 = vmatpush1.msra.mxu0 %v258
    %283 = vmatprep.subr.mxu0 %v257
    %284 = vmatpush1.msra.mxu0 %v256
    %285 = vmatprep.subr.mxu0 %v255
    %286 = vmatpush1.msra.mxu0 %v254
    %287 = vmatprep.subr.mxu0 %v253
    %288 = vmatpush1.msra.mxu0 %v252
    %289 = vmatprep.subr.mxu0 %v251
    %290 = vmatpush1.msra.mxu0 %v250
    %291 = vmatprep.subr.mxu0 %v249
    %292 = vmatpush1.msra.mxu0 %v248
    %293 = vmatprep.subr.mxu0 %v247
    %294 = vmatpush1.msra.mxu0 %v246
    %295 = vmatprep.subr.mxu0 %v245
    %296 = vmatpush1.msra.mxu0 %v244
    %297 = vmatprep.subr.mxu0 0.0
    %298 = vmatpush2.msra.mxu0 0.0
    %299 = vmatprep.subr.mxu0 0.0
    %300 = vmatpush2.msra.mxu0 0.0
    %301 = vmatprep.subr.mxu0 0.0
    %302 = vmatpush2.msra.mxu0 0.0
    %303 = vmatprep.subr.mxu0 0.0
    %304 = vmatpush2.msra.mxu0 0.0
    %305 = vmatprep.subr.mxu0 0.0
    %306 = vmatpush2.msra.mxu0 0.0
    %307 = vmatprep.subr.mxu0 0.0
    %308 = vmatpush2.msra.mxu0 0.0
    %309 = vmatprep.subr.mxu0 0.0
    %310 = vmatpush2.msra.mxu0 0.0
    %311 = vmatprep.subr.mxu0 0.0
    %312 = vmatpush2.msra.mxu0 0.0
    %313 = vmatprep.subr.mxu0 0.0
    %314 = vmatpush2.msra.mxu0 0.0
    %315 = vmatprep.subr.mxu0 0.0
    %316 = vmatpush2.msra.mxu0 0.0
    %317 = vmatprep.subr.mxu0 0.0
    %318 = vmatpush2.msra.mxu0 0.0
    %319 = vmatprep.subr.mxu0 0.0
    %320 = vmatpush2.msra.mxu0 0.0
    %321 = vmatprep.subr.mxu0 0.0
    %322 = vmatpush2.msra.mxu0 0.0
    %323 = vmatprep.subr.mxu0 0.0
    %324 = vmatpush2.msra.mxu0 0.0
    %325 = vmatprep.subr.mxu0 0.0
    %326 = vmatpush2.msra.mxu0 0.0
    %327 = vmatprep.subr.mxu0 0.0
    %328 = vmatpush2.msra.mxu0 0.0
    %329 = vmatprep.mubr.f32.mxu0 0.0
    %330 = vmatmul.mubr.f32.gmra.mxu0 %v263
    %v331 = vpop.f32.mrf.mxu0
    %v332 = vadd.f32 0.0, %v331
    %v333 = vpop.f32.mrf.mxu0
    %v334 = vadd.f32 0.0, %v333
    %335 = vdwg.mxu0
    %v336 = vadd.f32 %v260, %v332
    %v337 = vadd.f32 %v261, %v334
    %v338 = vmul.f32 %v336, 0.5
    %v339 = vmul.f32 %v337, 0.5
    %v340 = vtanh.pop %v338
    %v341 = vtanh.pop %v339
    %v342 = vmul.f32 %v340, 0.5
    %v343 = vmul.f32 %v341, 0.5
    %v344 = vadd.f32 %v342, 0.5
    %v345 = vadd.f32 %v343, 0.5
    %v346 = vtanh.pop %v337
    %v347 = vmul.f32 %v344, 0.0
    %349 = vrot.lane.b32.xlu0 %v346, 64
    %v350 = vpop.permute.xlu0 %349
    %v352 = vmul.f32 %v344, %v350
    %354 = vrot.lane.b32.xlu0 %v352, 64
    %v355 = vpop.permute.xlu0 %354
    %v357 = vadd.f32 %v347, %v355
    %v358 = vtanh.pop %v357
    %360 = vrot.lane.b32.xlu0 %v358, 64
    %v361 = vpop.permute.xlu0 %360
    %v363 = vmul.f32 %v345, %v361
    %vm364 = vcmask 261120
    %365 = vst.msk [vmem:[#allocation3] sm:$0xff] %vm364, %v363
    %vm366 = vcmask 523520
    %367 = vst.msk [vmem:[#allocation3 + $0x38] sm:$0xff] %vm366, %v363
    %369 = vrot.lane.b32.xlu0 %v363, 64
    %v370 = vpop.permute.xlu0 %369
    %vm372 = vcmask 785920
    %373 = vst.msk [vmem:[#allocation3 + $0x38] sm:$0xff] %vm372, %v370
    %vm374 = vcmask 1048320
    %375 = vst.msk [vmem:[#allocation3] sm:$0xff] %vm374, %v370
    %v376 = vld [vmem:[#allocation2 + $0x10] sm:$0xff]
    %v377 = vld [vmem:[#allocation2 + $0x18] sm:$0xff]
    %v378 = vsel %vm90, %v363, 0
    %380 = vmatprep.subr.mxu0 0.0
    %381 = vmatpush1.msra.mxu0 0.0
    %382 = vmatprep.subr.mxu0 0.0
    %383 = vmatpush1.msra.mxu0 0.0
    %384 = vmatprep.subr.mxu0 0.0
    %385 = vmatpush1.msra.mxu0 0.0
    %386 = vmatprep.subr.mxu0 0.0
    %387 = vmatpush1.msra.mxu0 0.0
    %388 = vmatprep.subr.mxu0 0.0
    %389 = vmatpush1.msra.mxu0 0.0
    %390 = vmatprep.subr.mxu0 0.0
    %391 = vmatpush1.msra.mxu0 0.0
    %392 = vmatprep.subr.mxu0 0.0
    %393 = vmatpush1.msra.mxu0 0.0
    %394 = vmatprep.subr.mxu0 0.0
    %395 = vmatpush1.msra.mxu0 0.0
    %396 = vmatprep.subr.mxu0 %v259
    %397 = vmatpush1.msra.mxu0 %v258
    %398 = vmatprep.subr.mxu0 %v257
    %399 = vmatpush1.msra.mxu0 %v256
    %400 = vmatprep.subr.mxu0 %v255
    %401 = vmatpush1.msra.mxu0 %v254
    %402 = vmatprep.subr.mxu0 %v253
    %403 = vmatpush1.msra.mxu0 %v252
    %404 = vmatprep.subr.mxu0 %v251
    %405 = vmatpush1.msra.mxu0 %v250
    %406 = vmatprep.subr.mxu0 %v249
    %407 = vmatpush1.msra.mxu0 %v248
    %408 = vmatprep.subr.mxu0 %v247
    %409 = vmatpush1.msra.mxu0 %v246
    %410 = vmatprep.subr.mxu0 %v245
    %411 = vmatpush1.msra.mxu0 %v244
    %412 = vmatprep.subr.mxu0 0.0
    %413 = vmatpush2.msra.mxu0 0.0
    %414 = vmatprep.subr.mxu0 0.0
    %415 = vmatpush2.msra.mxu0 0.0
    %416 = vmatprep.subr.mxu0 0.0
    %417 = vmatpush2.msra.mxu0 0.0
    %418 = vmatprep.subr.mxu0 0.0
    %419 = vmatpush2.msra.mxu0 0.0
    %420 = vmatprep.subr.mxu0 0.0
    %421 = vmatpush2.msra.mxu0 0.0
    %422 = vmatprep.subr.mxu0 0.0
    %423 = vmatpush2.msra.mxu0 0.0
    %424 = vmatprep.subr.mxu0 0.0
    %425 = vmatpush2.msra.mxu0 0.0
    %426 = vmatprep.subr.mxu0 0.0
    %427 = vmatpush2.msra.mxu0 0.0
    %428 = vmatprep.subr.mxu0 0.0
    %429 = vmatpush2.msra.mxu0 0.0
    %430 = vmatprep.subr.mxu0 0.0
    %431 = vmatpush2.msra.mxu0 0.0
    %432 = vmatprep.subr.mxu0 0.0
    %433 = vmatpush2.msra.mxu0 0.0
    %434 = vmatprep.subr.mxu0 0.0
    %435 = vmatpush2.msra.mxu0 0.0
    %436 = vmatprep.subr.mxu0 0.0
    %437 = vmatpush2.msra.mxu0 0.0
    %438 = vmatprep.subr.mxu0 0.0
    %439 = vmatpush2.msra.mxu0 0.0
    %440 = vmatprep.subr.mxu0 0.0
    %441 = vmatpush2.msra.mxu0 0.0
    %442 = vmatprep.subr.mxu0 0.0
    %443 = vmatpush2.msra.mxu0 0.0
    %444 = vmatprep.mubr.f32.mxu0 0.0
    %445 = vmatmul.mubr.f32.gmra.mxu0 %v378
    %v446 = vpop.f32.mrf.mxu0
    %v447 = vadd.f32 0.0, %v446
    %v448 = vpop.f32.mrf.mxu0
    %v449 = vadd.f32 0.0, %v448
    %450 = vdwg.mxu0
    %v451 = vadd.f32 %v376, %v447
    %v452 = vadd.f32 %v377, %v449
    %v453 = vmul.f32 %v451, 0.5
    %v454 = vmul.f32 %v452, 0.5
    %v455 = vtanh.pop %v453
    %v456 = vtanh.pop %v454
    %v457 = vmul.f32 %v455, 0.5
    %v458 = vmul.f32 %v456, 0.5
    %v459 = vadd.f32 %v457, 0.5
    %v460 = vadd.f32 %v458, 0.5
    %v461 = vtanh.pop %v452
    %v462 = vmul.f32 %v459, %v357
    %464 = vrot.lane.b32.xlu0 %v461, 64
    %v465 = vpop.permute.xlu0 %464
    %v467 = vmul.f32 %v459, %v465
    %469 = vrot.lane.b32.xlu0 %v467, 64
    %v470 = vpop.permute.xlu0 %469
    %v472 = vadd.f32 %v462, %v470
    %v473 = vtanh.pop %v472
    %475 = vrot.lane.b32.xlu0 %v473, 64
    %v476 = vpop.permute.xlu0 %475
    %v478 = vmul.f32 %v460, %v476
    %479 = vst.msk [vmem:[#allocation3 + $0x8] sm:$0xff] %vm364, %v478
    %480 = vst.msk [vmem:[#allocation3 + $0x30] sm:$0xff] %vm366, %v478
    %482 = vrot.lane.b32.xlu0 %v478, 64
    %v483 = vpop.permute.xlu0 %482
    %485 = vst.msk [vmem:[#allocation3 + $0x30] sm:$0xff] %vm372, %v483
    %486 = vst.msk [vmem:[#allocation3 + $0x8] sm:$0xff] %vm374, %v483
    %v487 = vld [vmem:[#allocation2 + $0x20] sm:$0xff]
    %v488 = vld [vmem:[#allocation2 + $0x28] sm:$0xff]
    %v489 = vsel %vm90, %v478, 0
    %491 = vmatprep.subr.mxu0 0.0
    %492 = vmatpush1.msra.mxu0 0.0
    %493 = vmatprep.subr.mxu0 0.0
    %494 = vmatpush1.msra.mxu0 0.0
    %495 = vmatprep.subr.mxu0 0.0
    %496 = vmatpush1.msra.mxu0 0.0
    %497 = vmatprep.subr.mxu0 0.0
    %498 = vmatpush1.msra.mxu0 0.0
    %499 = vmatprep.subr.mxu0 0.0
    %500 = vmatpush1.msra.mxu0 0.0
    %501 = vmatprep.subr.mxu0 0.0
    %502 = vmatpush1.msra.mxu0 0.0
    %503 = vmatprep.subr.mxu0 0.0
    %504 = vmatpush1.msra.mxu0 0.0
    %505 = vmatprep.subr.mxu0 0.0
    %506 = vmatpush1.msra.mxu0 0.0
    %507 = vmatprep.subr.mxu0 %v259
    %508 = vmatpush1.msra.mxu0 %v258
    %509 = vmatprep.subr.mxu0 %v257
    %510 = vmatpush1.msra.mxu0 %v256
    %511 = vmatprep.subr.mxu0 %v255
    %512 = vmatpush1.msra.mxu0 %v254
    %513 = vmatprep.subr.mxu0 %v253
    %514 = vmatpush1.msra.mxu0 %v252
    %515 = vmatprep.subr.mxu0 %v251
    %516 = vmatpush1.msra.mxu0 %v250
    %517 = vmatprep.subr.mxu0 %v249
    %518 = vmatpush1.msra.mxu0 %v248
    %519 = vmatprep.subr.mxu0 %v247
    %520 = vmatpush1.msra.mxu0 %v246
    %521 = vmatprep.subr.mxu0 %v245
    %522 = vmatpush1.msra.mxu0 %v244
    %523 = vmatprep.subr.mxu0 0.0
    %524 = vmatpush2.msra.mxu0 0.0
    %525 = vmatprep.subr.mxu0 0.0
    %526 = vmatpush2.msra.mxu0 0.0
    %527 = vmatprep.subr.mxu0 0.0
    %528 = vmatpush2.msra.mxu0 0.0
    %529 = vmatprep.subr.mxu0 0.0
    %530 = vmatpush2.msra.mxu0 0.0
    %531 = vmatprep.subr.mxu0 0.0
    %532 = vmatpush2.msra.mxu0 0.0
    %533 = vmatprep.subr.mxu0 0.0
    %534 = vmatpush2.msra.mxu0 0.0
    %535 = vmatprep.subr.mxu0 0.0
    %536 = vmatpush2.msra.mxu0 0.0
    %537 = vmatprep.subr.mxu0 0.0
    %538 = vmatpush2.msra.mxu0 0.0
    %539 = vmatprep.subr.mxu0 0.0
    %540 = vmatpush2.msra.mxu0 0.0
    %541 = vmatprep.subr.mxu0 0.0
    %542 = vmatpush2.msra.mxu0 0.0
    %543 = vmatprep.subr.mxu0 0.0
    %544 = vmatpush2.msra.mxu0 0.0
    %545 = vmatprep.subr.mxu0 0.0
    %546 = vmatpush2.msra.mxu0 0.0
    %547 = vmatprep.subr.mxu0 0.0
    %548 = vmatpush2.msra.mxu0 0.0
    %549 = vmatprep.subr.mxu0 0.0
    %550 = vmatpush2.msra.mxu0 0.0
    %551 = vmatprep.subr.mxu0 0.0
    %552 = vmatpush2.msra.mxu0 0.0
    %553 = vmatprep.subr.mxu0 0.0
    %554 = vmatpush2.msra.mxu0 0.0
    %555 = vmatprep.mubr.f32.mxu0 0.0
    %556 = vmatmul.mubr.f32.gmra.mxu0 %v489
    %v557 = vpop.f32.mrf.mxu0
    %v558 = vadd.f32 0.0, %v557
    %v559 = vpop.f32.mrf.mxu0
    %v560 = vadd.f32 0.0, %v559
    %561 = vdwg.mxu0
    %v562 = vadd.f32 %v487, %v558
    %v563 = vadd.f32 %v488, %v560
    %v564 = vmul.f32 %v562, 0.5
    %v565 = vmul.f32 %v563, 0.5
    %v566 = vtanh.pop %v564
    %v567 = vtanh.pop %v565
    %v568 = vmul.f32 %v566, 0.5
    %v569 = vmul.f32 %v567, 0.5
    %v570 = vadd.f32 %v568, 0.5
    %v571 = vadd.f32 %v569, 0.5
    %v572 = vtanh.pop %v563
    %v573 = vmul.f32 %v570, %v472
    %575 = vrot.lane.b32.xlu0 %v572, 64
    %v576 = vpop.permute.xlu0 %575
    %v578 = vmul.f32 %v570, %v576
    %580 = vrot.lane.b32.xlu0 %v578, 64
    %v581 = vpop.permute.xlu0 %580
    %v583 = vadd.f32 %v573, %v581
    %v584 = vtanh.pop %v583
    %586 = vrot.lane.b32.xlu0 %v584, 64
    %v587 = vpop.permute.xlu0 %586
    %v589 = vmul.f32 %v571, %v587
    %590 = vst.msk [vmem:[#allocation3 + $0x10] sm:$0xff] %vm364, %v589
    %591 = vst.msk [vmem:[#allocation3 + $0x28] sm:$0xff] %vm366, %v589
    %593 = vrot.lane.b32.xlu0 %v589, 64
    %v594 = vpop.permute.xlu0 %593
    %596 = vst.msk [vmem:[#allocation3 + $0x28] sm:$0xff] %vm372, %v594
    %597 = vst.msk [vmem:[#allocation3 + $0x10] sm:$0xff] %vm374, %v594
    %v598 = vld [vmem:[#allocation2 + $0x30] sm:$0xff]
    %v599 = vld [vmem:[#allocation2 + $0x38] sm:$0xff]
    %v600 = vsel %vm90, %v589, 0
    %602 = vmatprep.subr.mxu0 0.0
    %603 = vmatpush1.msra.mxu0 0.0
    %604 = vmatprep.subr.mxu0 0.0
    %605 = vmatpush1.msra.mxu0 0.0
    %606 = vmatprep.subr.mxu0 0.0
    %607 = vmatpush1.msra.mxu0 0.0
    %608 = vmatprep.subr.mxu0 0.0
    %609 = vmatpush1.msra.mxu0 0.0
    %610 = vmatprep.subr.mxu0 0.0
    %611 = vmatpush1.msra.mxu0 0.0
    %612 = vmatprep.subr.mxu0 0.0
    %613 = vmatpush1.msra.mxu0 0.0
    %614 = vmatprep.subr.mxu0 0.0
    %615 = vmatpush1.msra.mxu0 0.0
    %616 = vmatprep.subr.mxu0 0.0
    %617 = vmatpush1.msra.mxu0 0.0
    %618 = vmatprep.subr.mxu0 %v259
    %619 = vmatpush1.msra.mxu0 %v258
    %620 = vmatprep.subr.mxu0 %v257
    %621 = vmatpush1.msra.mxu0 %v256
    %622 = vmatprep.subr.mxu0 %v255
    %623 = vmatpush1.msra.mxu0 %v254
    %624 = vmatprep.subr.mxu0 %v253
    %625 = vmatpush1.msra.mxu0 %v252
    %626 = vmatprep.subr.mxu0 %v251
    %627 = vmatpush1.msra.mxu0 %v250
    %628 = vmatprep.subr.mxu0 %v249
    %629 = vmatpush1.msra.mxu0 %v248
    %630 = vmatprep.subr.mxu0 %v247
    %631 = vmatpush1.msra.mxu0 %v246
    %632 = vmatprep.subr.mxu0 %v245
    %633 = vmatpush1.msra.mxu0 %v244
    %634 = vmatprep.subr.mxu0 0.0
    %635 = vmatpush2.msra.mxu0 0.0
    %636 = vmatprep.subr.mxu0 0.0
    %637 = vmatpush2.msra.mxu0 0.0
    %638 = vmatprep.subr.mxu0 0.0
    %639 = vmatpush2.msra.mxu0 0.0
    %640 = vmatprep.subr.mxu0 0.0
    %641 = vmatpush2.msra.mxu0 0.0
    %642 = vmatprep.subr.mxu0 0.0
    %643 = vmatpush2.msra.mxu0 0.0
    %644 = vmatprep.subr.mxu0 0.0
    %645 = vmatpush2.msra.mxu0 0.0
    %646 = vmatprep.subr.mxu0 0.0
    %647 = vmatpush2.msra.mxu0 0.0
    %648 = vmatprep.subr.mxu0 0.0
    %649 = vmatpush2.msra.mxu0 0.0
    %650 = vmatprep.subr.mxu0 0.0
    %651 = vmatpush2.msra.mxu0 0.0
    %652 = vmatprep.subr.mxu0 0.0
    %653 = vmatpush2.msra.mxu0 0.0
    %654 = vmatprep.subr.mxu0 0.0
    %655 = vmatpush2.msra.mxu0 0.0
    %656 = vmatprep.subr.mxu0 0.0
    %657 = vmatpush2.msra.mxu0 0.0
    %658 = vmatprep.subr.mxu0 0.0
    %659 = vmatpush2.msra.mxu0 0.0
    %660 = vmatprep.subr.mxu0 0.0
    %661 = vmatpush2.msra.mxu0 0.0
    %662 = vmatprep.subr.mxu0 0.0
    %663 = vmatpush2.msra.mxu0 0.0
    %664 = vmatprep.subr.mxu0 0.0
    %665 = vmatpush2.msra.mxu0 0.0
    %666 = vmatprep.mubr.f32.mxu0 0.0
    %667 = vmatmul.mubr.f32.gmra.mxu0 %v600
    %v668 = vpop.f32.mrf.mxu0
    %v669 = vadd.f32 0.0, %v668
    %v670 = vpop.f32.mrf.mxu0
    %v671 = vadd.f32 0.0, %v670
    %672 = vdwg.mxu0
    %v673 = vadd.f32 %v598, %v669
    %v674 = vadd.f32 %v599, %v671
    %v675 = vmul.f32 %v673, 0.5
    %v676 = vmul.f32 %v674, 0.5
    %v677 = vtanh.pop %v675
    %v678 = vtanh.pop %v676
    %v679 = vmul.f32 %v677, 0.5
    %v680 = vmul.f32 %v678, 0.5
    %v681 = vadd.f32 %v679, 0.5
    %v682 = vadd.f32 %v680, 0.5
    %v683 = vtanh.pop %v674
    %v684 = vmul.f32 %v681, %v583
    %686 = vrot.lane.b32.xlu0 %v683, 64
    %v687 = vpop.permute.xlu0 %686
    %v689 = vmul.f32 %v681, %v687
    %691 = vrot.lane.b32.xlu0 %v689, 64
    %v692 = vpop.permute.xlu0 %691
    %v694 = vadd.f32 %v684, %v692
    %v695 = vtanh.pop %v694
    %697 = vrot.lane.b32.xlu0 %v695, 64
    %v698 = vpop.permute.xlu0 %697
    %v700 = vmul.f32 %v682, %v698
    %701 = vst.msk [vmem:[#allocation3 + $0x18] sm:$0xff] %vm364, %v700
    %702 = vst.msk [vmem:[#allocation3 + $0x20] sm:$0xff] %vm366, %v700
    %704 = vrot.lane.b32.xlu0 %v700, 64
    %v705 = vpop.permute.xlu0 %704
    %707 = vst.msk [vmem:[#allocation3 + $0x20] sm:$0xff] %vm372, %v705
    %708 = vst.msk [vmem:[#allocation3 + $0x18] sm:$0xff] %vm374, %v705
    %v709 = vld [vmem:[#allocation2 + $0x40] sm:$0xff]
    %v710 = vld [vmem:[#allocation2 + $0x48] sm:$0xff]
    %v711 = vsel %vm90, %v700, 0
    %713 = vmatprep.subr.mxu0 0.0
    %714 = vmatpush1.msra.mxu0 0.0
    %715 = vmatprep.subr.mxu0 0.0
    %716 = vmatpush1.msra.mxu0 0.0
    %717 = vmatprep.subr.mxu0 0.0
    %718 = vmatpush1.msra.mxu0 0.0
    %719 = vmatprep.subr.mxu0 0.0
    %720 = vmatpush1.msra.mxu0 0.0
    %721 = vmatprep.subr.mxu0 0.0
    %722 = vmatpush1.msra.mxu0 0.0
    %723 = vmatprep.subr.mxu0 0.0
    %724 = vmatpush1.msra.mxu0 0.0
    %725 = vmatprep.subr.mxu0 0.0
    %726 = vmatpush1.msra.mxu0 0.0
    %727 = vmatprep.subr.mxu0 0.0
    %728 = vmatpush1.msra.mxu0 0.0
    %729 = vmatprep.subr.mxu0 %v259
    %730 = vmatpush1.msra.mxu0 %v258
    %731 = vmatprep.subr.mxu0 %v257
    %732 = vmatpush1.msra.mxu0 %v256
    %733 = vmatprep.subr.mxu0 %v255
    %734 = vmatpush1.msra.mxu0 %v254
    %735 = vmatprep.subr.mxu0 %v253
    %736 = vmatpush1.msra.mxu0 %v252
    %737 = vmatprep.subr.mxu0 %v251
    %738 = vmatpush1.msra.mxu0 %v250
    %739 = vmatprep.subr.mxu0 %v249
    %740 = vmatpush1.msra.mxu0 %v248
    %741 = vmatprep.subr.mxu0 %v247
    %742 = vmatpush1.msra.mxu0 %v246
    %743 = vmatprep.subr.mxu0 %v245
    %744 = vmatpush1.msra.mxu0 %v244
    %745 = vmatprep.subr.mxu0 0.0
    %746 = vmatpush2.msra.mxu0 0.0
    %747 = vmatprep.subr.mxu0 0.0
    %748 = vmatpush2.msra.mxu0 0.0
    %749 = vmatprep.subr.mxu0 0.0
    %750 = vmatpush2.msra.mxu0 0.0
    %751 = vmatprep.subr.mxu0 0.0
    %752 = vmatpush2.msra.mxu0 0.0
    %753 = vmatprep.subr.mxu0 0.0
    %754 = vmatpush2.msra.mxu0 0.0
    %755 = vmatprep.subr.mxu0 0.0
    %756 = vmatpush2.msra.mxu0 0.0
    %757 = vmatprep.subr.mxu0 0.0
    %758 = vmatpush2.msra.mxu0 0.0
    %759 = vmatprep.subr.mxu0 0.0
    %760 = vmatpush2.msra.mxu0 0.0
    %761 = vmatprep.subr.mxu0 0.0
    %762 = vmatpush2.msra.mxu0 0.0
    %763 = vmatprep.subr.mxu0 0.0
    %764 = vmatpush2.msra.mxu0 0.0
    %765 = vmatprep.subr.mxu0 0.0
    %766 = vmatpush2.msra.mxu0 0.0
    %767 = vmatprep.subr.mxu0 0.0
    %768 = vmatpush2.msra.mxu0 0.0
    %769 = vmatprep.subr.mxu0 0.0
    %770 = vmatpush2.msra.mxu0 0.0
    %771 = vmatprep.subr.mxu0 0.0
    %772 = vmatpush2.msra.mxu0 0.0
    %773 = vmatprep.subr.mxu0 0.0
    %774 = vmatpush2.msra.mxu0 0.0
    %775 = vmatprep.subr.mxu0 0.0
    %776 = vmatpush2.msra.mxu0 0.0
    %777 = vmatprep.mubr.f32.mxu0 0.0
    %778 = vmatmul.mubr.f32.gmra.mxu0 %v711
    %v779 = vpop.f32.mrf.mxu0
    %v780 = vadd.f32 0.0, %v779
    %v781 = vpop.f32.mrf.mxu0
    %v782 = vadd.f32 0.0, %v781
    %783 = vdwg.mxu0
    %v784 = vadd.f32 %v709, %v780
    %v785 = vadd.f32 %v710, %v782
    %v786 = vmul.f32 %v784, 0.5
    %v787 = vmul.f32 %v785, 0.5
    %v788 = vtanh.pop %v786
    %v789 = vtanh.pop %v787
    %v790 = vmul.f32 %v788, 0.5
    %v791 = vmul.f32 %v789, 0.5
    %v792 = vadd.f32 %v790, 0.5
    %v793 = vadd.f32 %v791, 0.5
    %v794 = vtanh.pop %v785
    %v795 = vmul.f32 %v792, %v694
    %797 = vrot.lane.b32.xlu0 %v794, 64
    %v798 = vpop.permute.xlu0 %797
    %v800 = vmul.f32 %v792, %v798
    %802 = vrot.lane.b32.xlu0 %v800, 64
    %v803 = vpop.permute.xlu0 %802
    %v805 = vadd.f32 %v795, %v803
    %v806 = vtanh.pop %v805
    %808 = vrot.lane.b32.xlu0 %v806, 64
    %v809 = vpop.permute.xlu0 %808
    %v811 = vmul.f32 %v793, %v809
    %812 = vst.msk [vmem:[#allocation3 + $0x20] sm:$0xff] %vm364, %v811
    %813 = vst.msk [vmem:[#allocation3 + $0x18] sm:$0xff] %vm366, %v811
    %815 = vrot.lane.b32.xlu0 %v811, 64
    %v816 = vpop.permute.xlu0 %815
    %818 = vst.msk [vmem:[#allocation3 + $0x18] sm:$0xff] %vm372, %v816
    %819 = vst.msk [vmem:[#allocation3 + $0x20] sm:$0xff] %vm374, %v816
    %v820 = vld [vmem:[#allocation2 + $0x50] sm:$0xff]
    %v821 = vld [vmem:[#allocation2 + $0x58] sm:$0xff]
    %v822 = vsel %vm90, %v811, 0
    %824 = vmatprep.subr.mxu0 0.0
    %825 = vmatpush1.msra.mxu0 0.0
    %826 = vmatprep.subr.mxu0 0.0
    %827 = vmatpush1.msra.mxu0 0.0
    %828 = vmatprep.subr.mxu0 0.0
    %829 = vmatpush1.msra.mxu0 0.0
    %830 = vmatprep.subr.mxu0 0.0
    %831 = vmatpush1.msra.mxu0 0.0
    %832 = vmatprep.subr.mxu0 0.0
    %833 = vmatpush1.msra.mxu0 0.0
    %834 = vmatprep.subr.mxu0 0.0
    %835 = vmatpush1.msra.mxu0 0.0
    %836 = vmatprep.subr.mxu0 0.0
    %837 = vmatpush1.msra.mxu0 0.0
    %838 = vmatprep.subr.mxu0 0.0
    %839 = vmatpush1.msra.mxu0 0.0
    %840 = vmatprep.subr.mxu0 %v259
    %841 = vmatpush1.msra.mxu0 %v258
    %842 = vmatprep.subr.mxu0 %v257
    %843 = vmatpush1.msra.mxu0 %v256
    %844 = vmatprep.subr.mxu0 %v255
    %845 = vmatpush1.msra.mxu0 %v254
    %846 = vmatprep.subr.mxu0 %v253
    %847 = vmatpush1.msra.mxu0 %v252
    %848 = vmatprep.subr.mxu0 %v251
    %849 = vmatpush1.msra.mxu0 %v250
    %850 = vmatprep.subr.mxu0 %v249
    %851 = vmatpush1.msra.mxu0 %v248
    %852 = vmatprep.subr.mxu0 %v247
    %853 = vmatpush1.msra.mxu0 %v246
    %854 = vmatprep.subr.mxu0 %v245
    %855 = vmatpush1.msra.mxu0 %v244
    %856 = vmatprep.subr.mxu0 0.0
    %857 = vmatpush2.msra.mxu0 0.0
    %858 = vmatprep.subr.mxu0 0.0
    %859 = vmatpush2.msra.mxu0 0.0
    %860 = vmatprep.subr.mxu0 0.0
    %861 = vmatpush2.msra.mxu0 0.0
    %862 = vmatprep.subr.mxu0 0.0
    %863 = vmatpush2.msra.mxu0 0.0
    %864 = vmatprep.subr.mxu0 0.0
    %865 = vmatpush2.msra.mxu0 0.0
    %866 = vmatprep.subr.mxu0 0.0
    %867 = vmatpush2.msra.mxu0 0.0
    %868 = vmatprep.subr.mxu0 0.0
    %869 = vmatpush2.msra.mxu0 0.0
    %870 = vmatprep.subr.mxu0 0.0
    %871 = vmatpush2.msra.mxu0 0.0
    %872 = vmatprep.subr.mxu0 0.0
    %873 = vmatpush2.msra.mxu0 0.0
    %874 = vmatprep.subr.mxu0 0.0
    %875 = vmatpush2.msra.mxu0 0.0
    %876 = vmatprep.subr.mxu0 0.0
    %877 = vmatpush2.msra.mxu0 0.0
    %878 = vmatprep.subr.mxu0 0.0
    %879 = vmatpush2.msra.mxu0 0.0
    %880 = vmatprep.subr.mxu0 0.0
    %881 = vmatpush2.msra.mxu0 0.0
    %882 = vmatprep.subr.mxu0 0.0
    %883 = vmatpush2.msra.mxu0 0.0
    %884 = vmatprep.subr.mxu0 0.0
    %885 = vmatpush2.msra.mxu0 0.0
    %886 = vmatprep.subr.mxu0 0.0
    %887 = vmatpush2.msra.mxu0 0.0
    %888 = vmatprep.mubr.f32.mxu0 0.0
    %889 = vmatmul.mubr.f32.gmra.mxu0 %v822
    %v890 = vpop.f32.mrf.mxu0
    %v891 = vadd.f32 0.0, %v890
    %v892 = vpop.f32.mrf.mxu0
    %v893 = vadd.f32 0.0, %v892
    %894 = vdwg.mxu0
    %v895 = vadd.f32 %v820, %v891
    %v896 = vadd.f32 %v821, %v893
    %v897 = vmul.f32 %v895, 0.5
    %v898 = vmul.f32 %v896, 0.5
    %v899 = vtanh.pop %v897
    %v900 = vtanh.pop %v898
    %v901 = vmul.f32 %v899, 0.5
    %v902 = vmul.f32 %v900, 0.5
    %v903 = vadd.f32 %v901, 0.5
    %v904 = vadd.f32 %v902, 0.5
    %v905 = vtanh.pop %v896
    %v906 = vmul.f32 %v903, %v805
    %908 = vrot.lane.b32.xlu0 %v905, 64
    %v909 = vpop.permute.xlu0 %908
    %v911 = vmul.f32 %v903, %v909
    %913 = vrot.lane.b32.xlu0 %v911, 64
    %v914 = vpop.permute.xlu0 %913
    %v916 = vadd.f32 %v906, %v914
    %v917 = vtanh.pop %v916
    %919 = vrot.lane.b32.xlu0 %v917, 64
    %v920 = vpop.permute.xlu0 %919
    %v922 = vmul.f32 %v904, %v920
    %923 = vst.msk [vmem:[#allocation3 + $0x28] sm:$0xff] %vm364, %v922
    %924 = vst.msk [vmem:[#allocation3 + $0x10] sm:$0xff] %vm366, %v922
    %926 = vrot.lane.b32.xlu0 %v922, 64
    %v927 = vpop.permute.xlu0 %926
    %929 = vst.msk [vmem:[#allocation3 + $0x10] sm:$0xff] %vm372, %v927
    %930 = vst.msk [vmem:[#allocation3 + $0x28] sm:$0xff] %vm374, %v927
    %v931 = vld [vmem:[#allocation2 + $0x60] sm:$0xff]
    %v932 = vld [vmem:[#allocation2 + $0x68] sm:$0xff]
    %v933 = vsel %vm90, %v922, 0
    %935 = vmatprep.subr.mxu0 0.0
    %936 = vmatpush1.msra.mxu0 0.0
    %937 = vmatprep.subr.mxu0 0.0
    %938 = vmatpush1.msra.mxu0 0.0
    %939 = vmatprep.subr.mxu0 0.0
    %940 = vmatpush1.msra.mxu0 0.0
    %941 = vmatprep.subr.mxu0 0.0
    %942 = vmatpush1.msra.mxu0 0.0
    %943 = vmatprep.subr.mxu0 0.0
    %944 = vmatpush1.msra.mxu0 0.0
    %945 = vmatprep.subr.mxu0 0.0
    %946 = vmatpush1.msra.mxu0 0.0
    %947 = vmatprep.subr.mxu0 0.0
    %948 = vmatpush1.msra.mxu0 0.0
    %949 = vmatprep.subr.mxu0 0.0
    %950 = vmatpush1.msra.mxu0 0.0
    %951 = vmatprep.subr.mxu0 %v259
    %952 = vmatpush1.msra.mxu0 %v258
    %953 = vmatprep.subr.mxu0 %v257
    %954 = vmatpush1.msra.mxu0 %v256
    %955 = vmatprep.subr.mxu0 %v255
    %956 = vmatpush1.msra.mxu0 %v254
    %957 = vmatprep.subr.mxu0 %v253
    %958 = vmatpush1.msra.mxu0 %v252
    %959 = vmatprep.subr.mxu0 %v251
    %960 = vmatpush1.msra.mxu0 %v250
    %961 = vmatprep.subr.mxu0 %v249
    %962 = vmatpush1.msra.mxu0 %v248
    %963 = vmatprep.subr.mxu0 %v247
    %964 = vmatpush1.msra.mxu0 %v246
    %965 = vmatprep.subr.mxu0 %v245
    %966 = vmatpush1.msra.mxu0 %v244
    %967 = vmatprep.subr.mxu0 0.0
    %968 = vmatpush2.msra.mxu0 0.0
    %969 = vmatprep.subr.mxu0 0.0
    %970 = vmatpush2.msra.mxu0 0.0
    %971 = vmatprep.subr.mxu0 0.0
    %972 = vmatpush2.msra.mxu0 0.0
    %973 = vmatprep.subr.mxu0 0.0
    %974 = vmatpush2.msra.mxu0 0.0
    %975 = vmatprep.subr.mxu0 0.0
    %976 = vmatpush2.msra.mxu0 0.0
    %977 = vmatprep.subr.mxu0 0.0
    %978 = vmatpush2.msra.mxu0 0.0
    %979 = vmatprep.subr.mxu0 0.0
    %980 = vmatpush2.msra.mxu0 0.0
    %981 = vmatprep.subr.mxu0 0.0
    %982 = vmatpush2.msra.mxu0 0.0
    %983 = vmatprep.subr.mxu0 0.0
    %984 = vmatpush2.msra.mxu0 0.0
    %985 = vmatprep.subr.mxu0 0.0
    %986 = vmatpush2.msra.mxu0 0.0
    %987 = vmatprep.subr.mxu0 0.0
    %988 = vmatpush2.msra.mxu0 0.0
    %989 = vmatprep.subr.mxu0 0.0
    %990 = vmatpush2.msra.mxu0 0.0
    %991 = vmatprep.subr.mxu0 0.0
    %992 = vmatpush2.msra.mxu0 0.0
    %993 = vmatprep.subr.mxu0 0.0
    %994 = vmatpush2.msra.mxu0 0.0
    %995 = vmatprep.subr.mxu0 0.0
    %996 = vmatpush2.msra.mxu0 0.0
    %997 = vmatprep.subr.mxu0 0.0
    %998 = vmatpush2.msra.mxu0 0.0
    %999 = vmatprep.mubr.f32.mxu0 0.0
    %1000 = vmatmul.mubr.f32.gmra.mxu0 %v933
    %v1001 = vpop.f32.mrf.mxu0
    %v1002 = vadd.f32 0.0, %v1001
    %v1003 = vpop.f32.mrf.mxu0
    %v1004 = vadd.f32 0.0, %v1003
    %1005 = vdwg.mxu0
    %v1006 = vadd.f32 %v931, %v1002
    %v1007 = vadd.f32 %v932, %v1004
    %v1008 = vmul.f32 %v1006, 0.5
    %v1009 = vmul.f32 %v1007, 0.5
    %v1010 = vtanh.pop %v1008
    %v1011 = vtanh.pop %v1009
    %v1012 = vmul.f32 %v1010, 0.5
    %v1013 = vmul.f32 %v1011, 0.5
    %v1014 = vadd.f32 %v1012, 0.5
    %v1015 = vadd.f32 %v1013, 0.5
    %v1016 = vtanh.pop %v1007
    %v1017 = vmul.f32 %v1014, %v916
    %1019 = vrot.lane.b32.xlu0 %v1016, 64
    %v1020 = vpop.permute.xlu0 %1019
    %v1022 = vmul.f32 %v1014, %v1020
    %1024 = vrot.lane.b32.xlu0 %v1022, 64
    %v1025 = vpop.permute.xlu0 %1024
    %v1027 = vadd.f32 %v1017, %v1025
    %v1028 = vtanh.pop %v1027
    %1030 = vrot.lane.b32.xlu0 %v1028, 64
    %v1031 = vpop.permute.xlu0 %1030
    %v1033 = vmul.f32 %v1015, %v1031
    %1034 = vst.msk [vmem:[#allocation3 + $0x30] sm:$0xff] %vm364, %v1033
    %1035 = vst.msk [vmem:[#allocation3 + $0x8] sm:$0xff] %vm366, %v1033
    %1037 = vrot.lane.b32.xlu0 %v1033, 64
    %v1038 = vpop.permute.xlu0 %1037
    %1040 = vst.msk [vmem:[#allocation3 + $0x8] sm:$0xff] %vm372, %v1038
    %1041 = vst.msk [vmem:[#allocation3 + $0x30] sm:$0xff] %vm374, %v1038
    %v1042 = vld [vmem:[#allocation2 + $0x70] sm:$0xff]
    %v1043 = vld [vmem:[#allocation2 + $0x78] sm:$0xff]
    %v1044 = vsel %vm90, %v1033, 0
    %1046 = vmatprep.subr.mxu0 0.0
    %1047 = vmatpush1.msra.mxu0 0.0
    %1048 = vmatprep.subr.mxu0 0.0
    %1049 = vmatpush1.msra.mxu0 0.0
    %1050 = vmatprep.subr.mxu0 0.0
    %1051 = vmatpush1.msra.mxu0 0.0
    %1052 = vmatprep.subr.mxu0 0.0
    %1053 = vmatpush1.msra.mxu0 0.0
    %1054 = vmatprep.subr.mxu0 0.0
    %1055 = vmatpush1.msra.mxu0 0.0
    %1056 = vmatprep.subr.mxu0 0.0
    %1057 = vmatpush1.msra.mxu0 0.0
    %1058 = vmatprep.subr.mxu0 0.0
    %1059 = vmatpush1.msra.mxu0 0.0
    %1060 = vmatprep.subr.mxu0 0.0
    %1061 = vmatpush1.msra.mxu0 0.0
    %1062 = vmatprep.subr.mxu0 %v259
    %1063 = vmatpush1.msra.mxu0 %v258
    %1064 = vmatprep.subr.mxu0 %v257
    %1065 = vmatpush1.msra.mxu0 %v256
    %1066 = vmatprep.subr.mxu0 %v255
    %1067 = vmatpush1.msra.mxu0 %v254
    %1068 = vmatprep.subr.mxu0 %v253
    %1069 = vmatpush1.msra.mxu0 %v252
    %1070 = vmatprep.subr.mxu0 %v251
    %1071 = vmatpush1.msra.mxu0 %v250
    %1072 = vmatprep.subr.mxu0 %v249
    %1073 = vmatpush1.msra.mxu0 %v248
    %1074 = vmatprep.subr.mxu0 %v247
    %1075 = vmatpush1.msra.mxu0 %v246
    %1076 = vmatprep.subr.mxu0 %v245
    %1077 = vmatpush1.msra.mxu0 %v244
    %1078 = vmatprep.subr.mxu0 0.0
    %1079 = vmatpush2.msra.mxu0 0.0
    %1080 = vmatprep.subr.mxu0 0.0
    %1081 = vmatpush2.msra.mxu0 0.0
    %1082 = vmatprep.subr.mxu0 0.0
    %1083 = vmatpush2.msra.mxu0 0.0
    %1084 = vmatprep.subr.mxu0 0.0
    %1085 = vmatpush2.msra.mxu0 0.0
    %1086 = vmatprep.subr.mxu0 0.0
    %1087 = vmatpush2.msra.mxu0 0.0
    %1088 = vmatprep.subr.mxu0 0.0
    %1089 = vmatpush2.msra.mxu0 0.0
    %1090 = vmatprep.subr.mxu0 0.0
    %1091 = vmatpush2.msra.mxu0 0.0
    %1092 = vmatprep.subr.mxu0 0.0
    %1093 = vmatpush2.msra.mxu0 0.0
    %1094 = vmatprep.subr.mxu0 0.0
    %1095 = vmatpush2.msra.mxu0 0.0
    %1096 = vmatprep.subr.mxu0 0.0
    %1097 = vmatpush2.msra.mxu0 0.0
    %1098 = vmatprep.subr.mxu0 0.0
    %1099 = vmatpush2.msra.mxu0 0.0
    %1100 = vmatprep.subr.mxu0 0.0
    %1101 = vmatpush2.msra.mxu0 0.0
    %1102 = vmatprep.subr.mxu0 0.0
    %1103 = vmatpush2.msra.mxu0 0.0
    %1104 = vmatprep.subr.mxu0 0.0
    %1105 = vmatpush2.msra.mxu0 0.0
    %1106 = vmatprep.subr.mxu0 0.0
    %1107 = vmatpush2.msra.mxu0 0.0
    %1108 = vmatprep.subr.mxu0 0.0
    %1109 = vmatpush2.msra.mxu0 0.0
    %1110 = vmatprep.mubr.f32.mxu0 0.0
    %1111 = vmatmul.mubr.f32.gmra.mxu0 %v1044
    %v1112 = vpop.f32.mrf.mxu0
    %v1113 = vadd.f32 0.0, %v1112
    %v1114 = vpop.f32.mrf.mxu0
    %v1115 = vadd.f32 0.0, %v1114
    %1116 = vdwg.mxu0
    %v1117 = vadd.f32 %v1042, %v1113
    %v1118 = vadd.f32 %v1043, %v1115
    %v1119 = vmul.f32 %v1117, 0.5
    %v1120 = vmul.f32 %v1118, 0.5
    %v1121 = vtanh.pop %v1119
    %v1122 = vtanh.pop %v1120
    %v1123 = vmul.f32 %v1121, 0.5
    %v1124 = vmul.f32 %v1122, 0.5
    %v1125 = vadd.f32 %v1123, 0.5
    %v1126 = vadd.f32 %v1124, 0.5
    %v1127 = vtanh.pop %v1118
    %v1128 = vmul.f32 %v1125, %v1027
    %1130 = vrot.lane.b32.xlu0 %v1127, 64
    %v1131 = vpop.permute.xlu0 %1130
    %v1133 = vmul.f32 %v1125, %v1131
    %1135 = vrot.lane.b32.xlu0 %v1133, 64
    %v1136 = vpop.permute.xlu0 %1135
    %v1138 = vadd.f32 %v1128, %v1136
    %v1139 = vtanh.pop %v1138
    %1141 = vrot.lane.b32.xlu0 %v1139, 64
    %v1142 = vpop.permute.xlu0 %1141
    %v1144 = vmul.f32 %v1126, %v1142
    %1145 = vst.msk [vmem:[#allocation3 + $0x38] sm:$0xff] %vm364, %v1144
    %1146 = vst.msk [vmem:[#allocation3] sm:$0xff] %vm366, %v1144
    %1148 = vrot.lane.b32.xlu0 %v1144, 64
    %v1149 = vpop.permute.xlu0 %1148
    %1151 = vst.msk [vmem:[#allocation3] sm:$0xff] %vm372, %v1149
    %1152 = vst.msk [vmem:[#allocation3 + $0x38] sm:$0xff] %vm374, %v1149
    %v1153 = vld [vmem:[#allocation3] sm:$0xff]
    %v1154 = vld [vmem:[#allocation3 + $0x8] sm:$0xff]
    %v1155 = vld [vmem:[#allocation3 + $0x10] sm:$0xff]
    %v1156 = vld [vmem:[#allocation3 + $0x18] sm:$0xff]
    %v1157 = vld [vmem:[#allocation3 + $0x20] sm:$0xff]
    %v1158 = vld [vmem:[#allocation3 + $0x28] sm:$0xff]
    %v1159 = vld [vmem:[#allocation3 + $0x30] sm:$0xff]
    %v1160 = vld [vmem:[#allocation3 + $0x38] sm:$0xff]
    %v1161 = vld [vmem:[%s4] sm:$0xff]
    %v1162 = vld [vmem:[%s4 + $0x8] sm:$0xff]
    %v1163 = vld [vmem:[%s4 + $0x10] sm:$0xff]
    %v1164 = vld [vmem:[%s4 + $0x18] sm:$0xff]
    %v1165 = vld [vmem:[%s4 + $0x20] sm:$0xff]
    %v1166 = vld [vmem:[%s4 + $0x28] sm:$0xff]
    %v1167 = vld [vmem:[%s4 + $0x30] sm:$0xff]
    %v1168 = vld [vmem:[%s4 + $0x38] sm:$0xff]
    %v1169 = vld [vmem:[%s4 + $0x40] sm:$0xff]
    %v1170 = vld [vmem:[%s4 + $0x48] sm:$0xff]
    %v1171 = vld [vmem:[%s4 + $0x50] sm:$0xff]
    %v1172 = vld [vmem:[%s4 + $0x58] sm:$0xff]
    %v1173 = vld [vmem:[%s4 + $0x60] sm:$0xff]
    %v1174 = vld [vmem:[%s4 + $0x68] sm:$0xff]
    %v1175 = vld [vmem:[%s4 + $0x70] sm:$0xff]
    %v1176 = vld [vmem:[%s4 + $0x78] sm:$0xff]
    %v1177 = vld [vmem:[%s4 + $0x80] sm:$0xff]
    %v1178 = vld [vmem:[%s4 + $0x88] sm:$0xff]
    %v1179 = vld [vmem:[%s4 + $0x90] sm:$0xff]
    %v1180 = vld [vmem:[%s4 + $0x98] sm:$0xff]
    %v1181 = vld [vmem:[%s4 + $0xa0] sm:$0xff]
    %v1182 = vld [vmem:[%s4 + $0xa8] sm:$0xff]
    %v1183 = vld [vmem:[%s4 + $0xb0] sm:$0xff]
    %v1184 = vld [vmem:[%s4 + $0xb8] sm:$0xff]
    %v1185 = vld [vmem:[%s4 + $0xc0] sm:$0xff]
    %v1186 = vld [vmem:[%s4 + $0xc8] sm:$0xff]
    %v1187 = vld [vmem:[%s4 + $0xd0] sm:$0xff]
    %v1188 = vld [vmem:[%s4 + $0xd8] sm:$0xff]
    %v1189 = vld [vmem:[%s4 + $0xe0] sm:$0xff]
    %v1190 = vld [vmem:[%s4 + $0xe8] sm:$0xff]
    %v1191 = vld [vmem:[%s4 + $0xf0] sm:$0xff]
    %v1192 = vld [vmem:[%s4 + $0xf8] sm:$0xff]
    %v1193 = vld [vmem:[%s6] sm:$0x3]
    %v1195 = vlaneseq
    %v1196 = vshrl.u32 %v1195, 7
    %v1197 = vsub.s32 0, %v1196
    %v1198 = vrot.slane %v1193, %v1197
    %v1199 = vlaneseq
    %v1200 = vshrl.u32 %v1199, 7
    %v1201 = vsub.s32 1, %v1200
    %v1202 = vrot.slane %v1193, %v1201
    %1205 = vmatprep.subr.mxu0 %v1192
    %1206 = vmatpush1.msra.mxu0 %v1191
    %1207 = vmatprep.subr.mxu0 %v1190
    %1208 = vmatpush1.msra.mxu0 %v1189
    %1209 = vmatprep.subr.mxu0 %v1188
    %1210 = vmatpush1.msra.mxu0 %v1187
    %1211 = vmatprep.subr.mxu0 %v1186
    %1212 = vmatpush1.msra.mxu0 %v1185
    %1213 = vmatprep.subr.mxu0 %v1184
    %1214 = vmatpush1.msra.mxu0 %v1183
    %1215 = vmatprep.subr.mxu0 %v1182
    %1216 = vmatpush1.msra.mxu0 %v1181
    %1217 = vmatprep.subr.mxu0 %v1180
    %1218 = vmatpush1.msra.mxu0 %v1179
    %1219 = vmatprep.subr.mxu0 %v1178
    %1220 = vmatpush1.msra.mxu0 %v1177
    %1221 = vmatprep.subr.mxu0 %v1176
    %1222 = vmatpush1.msra.mxu0 %v1175
    %1223 = vmatprep.subr.mxu0 %v1174
    %1224 = vmatpush1.msra.mxu0 %v1173
    %1225 = vmatprep.subr.mxu0 %v1172
    %1226 = vmatpush1.msra.mxu0 %v1171
    %1227 = vmatprep.subr.mxu0 %v1170
    %1228 = vmatpush1.msra.mxu0 %v1169
    %1229 = vmatprep.subr.mxu0 %v1168
    %1230 = vmatpush1.msra.mxu0 %v1167
    %1231 = vmatprep.subr.mxu0 %v1166
    %1232 = vmatpush1.msra.mxu0 %v1165
    %1233 = vmatprep.subr.mxu0 %v1164
    %1234 = vmatpush1.msra.mxu0 %v1163
    %1235 = vmatprep.subr.mxu0 %v1162
    %1236 = vmatpush1.msra.mxu0 %v1161
    %1237 = vmatprep.subr.mxu0 0.0
    %1238 = vmatpush2.msra.mxu0 0.0
    %1239 = vmatprep.subr.mxu0 0.0
    %1240 = vmatpush2.msra.mxu0 0.0
    %1241 = vmatprep.subr.mxu0 0.0
    %1242 = vmatpush2.msra.mxu0 0.0
    %1243 = vmatprep.subr.mxu0 0.0
    %1244 = vmatpush2.msra.mxu0 0.0
    %1245 = vmatprep.subr.mxu0 0.0
    %1246 = vmatpush2.msra.mxu0 0.0
    %1247 = vmatprep.subr.mxu0 0.0
    %1248 = vmatpush2.msra.mxu0 0.0
    %1249 = vmatprep.subr.mxu0 0.0
    %1250 = vmatpush2.msra.mxu0 0.0
    %1251 = vmatprep.subr.mxu0 0.0
    %1252 = vmatpush2.msra.mxu0 0.0
    %1253 = vmatprep.subr.mxu0 0.0
    %1254 = vmatpush2.msra.mxu0 0.0
    %1255 = vmatprep.subr.mxu0 0.0
    %1256 = vmatpush2.msra.mxu0 0.0
    %1257 = vmatprep.subr.mxu0 0.0
    %1258 = vmatpush2.msra.mxu0 0.0
    %1259 = vmatprep.subr.mxu0 0.0
    %1260 = vmatpush2.msra.mxu0 0.0
    %1261 = vmatprep.subr.mxu0 0.0
    %1262 = vmatpush2.msra.mxu0 0.0
    %1263 = vmatprep.subr.mxu0 0.0
    %1264 = vmatpush2.msra.mxu0 0.0
    %1265 = vmatprep.subr.mxu0 0.0
    %1266 = vmatpush2.msra.mxu0 0.0
    %1267 = vmatprep.subr.mxu0 0.0
    %1268 = vmatpush2.msra.mxu0 0.0
    %1269 = vmatprep.mubr.f32.mxu0 0.0
    %1270 = vmatmul.mubr.f32.gmra.mxu0 %v1153
    %v1271 = vpop.f32.mrf.mxu0
    %v1272 = vadd.f32 %v1198, %v1271
    %v1273 = vpop.f32.mrf.mxu0
    %v1274 = vadd.f32 %v1202, %v1273
    %1275 = vmatprep.mubr.f32.mxu0 0.0
    %1276 = vmatmul.mubr.f32.gmra.mxu0 %v1154
    %v1277 = vpop.f32.mrf.mxu0
    %v1278 = vadd.f32 %v1198, %v1277
    %v1279 = vpop.f32.mrf.mxu0
    %v1280 = vadd.f32 %v1202, %v1279
    %1281 = vmatprep.mubr.f32.mxu0 0.0
    %1282 = vmatmul.mubr.f32.gmra.mxu0 %v1155
    %v1283 = vpop.f32.mrf.mxu0
    %v1284 = vadd.f32 %v1198, %v1283
    %v1285 = vpop.f32.mrf.mxu0
    %v1286 = vadd.f32 %v1202, %v1285
    %1287 = vmatprep.mubr.f32.mxu0 0.0
    %1288 = vmatmul.mubr.f32.gmra.mxu0 %v1156
    %v1289 = vpop.f32.mrf.mxu0
    %v1290 = vadd.f32 %v1198, %v1289
    %v1291 = vpop.f32.mrf.mxu0
    %v1292 = vadd.f32 %v1202, %v1291
    %1293 = vmatprep.mubr.f32.mxu0 0.0
    %1294 = vmatmul.mubr.f32.gmra.mxu0 %v1157
    %v1295 = vpop.f32.mrf.mxu0
    %v1296 = vadd.f32 %v1198, %v1295
    %v1297 = vpop.f32.mrf.mxu0
    %v1298 = vadd.f32 %v1202, %v1297
    %1299 = vmatprep.mubr.f32.mxu0 0.0
    %1300 = vmatmul.mubr.f32.gmra.mxu0 %v1158
    %v1301 = vpop.f32.mrf.mxu0
    %v1302 = vadd.f32 %v1198, %v1301
    %v1303 = vpop.f32.mrf.mxu0
    %v1304 = vadd.f32 %v1202, %v1303
    %1305 = vmatprep.mubr.f32.mxu0 0.0
    %1306 = vmatmul.mubr.f32.gmra.mxu0 %v1159
    %v1307 = vpop.f32.mrf.mxu0
    %v1308 = vadd.f32 %v1198, %v1307
    %v1309 = vpop.f32.mrf.mxu0
    %v1310 = vadd.f32 %v1202, %v1309
    %1311 = vmatprep.mubr.f32.mxu0 0.0
    %1312 = vmatmul.mubr.f32.gmra.mxu0 %v1160
    %v1313 = vpop.f32.mrf.mxu0
    %v1314 = vadd.f32 %v1198, %v1313
    %v1315 = vpop.f32.mrf.mxu0
    %v1316 = vadd.f32 %v1202, %v1315
    %1317 = vdwg.mxu0
    %1318 = vst [vmem:[#allocation2] sm:$0xff] %v1272
    %1319 = vst [vmem:[#allocation2 + $0x8] sm:$0xff] %v1274
    %1320 = vst [vmem:[#allocation2 + $0x10] sm:$0xff] %v1278
    %1321 = vst [vmem:[#allocation2 + $0x18] sm:$0xff] %v1280
    %1322 = vst [vmem:[#allocation2 + $0x20] sm:$0xff] %v1284
    %1323 = vst [vmem:[#allocation2 + $0x28] sm:$0xff] %v1286
    %1324 = vst [vmem:[#allocation2 + $0x30] sm:$0xff] %v1290
    %1325 = vst [vmem:[#allocation2 + $0x38] sm:$0xff] %v1292
    %1326 = vst [vmem:[#allocation2 + $0x40] sm:$0xff] %v1296
    %1327 = vst [vmem:[#allocation2 + $0x48] sm:$0xff] %v1298
    %1328 = vst [vmem:[#allocation2 + $0x50] sm:$0xff] %v1302
    %1329 = vst [vmem:[#allocation2 + $0x58] sm:$0xff] %v1304
    %1330 = vst [vmem:[#allocation2 + $0x60] sm:$0xff] %v1308
    %1331 = vst [vmem:[#allocation2 + $0x68] sm:$0xff] %v1310
    %1332 = vst [vmem:[#allocation2 + $0x70] sm:$0xff] %v1314
    %1333 = vst [vmem:[#allocation2 + $0x78] sm:$0xff] %v1316
    %v1334 = vld [vmem:[#allocation6] sm:$0xff]
    %v1335 = vld [vmem:[#allocation6 + $0x8] sm:$0xff]
    %v1336 = vld [vmem:[#allocation6 + $0x10] sm:$0xff]
    %v1337 = vld [vmem:[#allocation6 + $0x18] sm:$0xff]
    %v1338 = vld [vmem:[#allocation6 + $0x20] sm:$0xff]
    %v1339 = vld [vmem:[#allocation6 + $0x28] sm:$0xff]
    %v1340 = vld [vmem:[#allocation6 + $0x30] sm:$0xff]
    %v1341 = vld [vmem:[#allocation6 + $0x38] sm:$0xff]
    %v1342 = vld [vmem:[#allocation6 + $0x40] sm:$0xff]
    %v1343 = vld [vmem:[#allocation6 + $0x48] sm:$0xff]
    %v1344 = vld [vmem:[#allocation6 + $0x50] sm:$0xff]
    %v1345 = vld [vmem:[#allocation6 + $0x58] sm:$0xff]
    %v1346 = vld [vmem:[#allocation6 + $0x60] sm:$0xff]
    %v1347 = vld [vmem:[#allocation6 + $0x68] sm:$0xff]
    %v1348 = vld [vmem:[#allocation6 + $0x70] sm:$0xff]
    %v1349 = vld [vmem:[#allocation6 + $0x78] sm:$0xff]
    %v1350 = vld [vmem:[#allocation2] sm:$0xff]
    %v1351 = vld [vmem:[#allocation2 + $0x8] sm:$0xff]
    %1352 = vmatprep.subr.mxu0 0.0
    %1353 = vmatpush1.msra.mxu0 0.0
    %1354 = vmatprep.subr.mxu0 0.0
    %1355 = vmatpush1.msra.mxu0 0.0
    %1356 = vmatprep.subr.mxu0 0.0
    %1357 = vmatpush1.msra.mxu0 0.0
    %1358 = vmatprep.subr.mxu0 0.0
    %1359 = vmatpush1.msra.mxu0 0.0
    %1360 = vmatprep.subr.mxu0 0.0
    %1361 = vmatpush1.msra.mxu0 0.0
    %1362 = vmatprep.subr.mxu0 0.0
    %1363 = vmatpush1.msra.mxu0 0.0
    %1364 = vmatprep.subr.mxu0 0.0
    %1365 = vmatpush1.msra.mxu0 0.0
    %1366 = vmatprep.subr.mxu0 0.0
    %1367 = vmatpush1.msra.mxu0 0.0
    %1368 = vmatprep.subr.mxu0 %v1349
    %1369 = vmatpush1.msra.mxu0 %v1348
    %1370 = vmatprep.subr.mxu0 %v1347
    %1371 = vmatpush1.msra.mxu0 %v1346
    %1372 = vmatprep.subr.mxu0 %v1345
    %1373 = vmatpush1.msra.mxu0 %v1344
    %1374 = vmatprep.subr.mxu0 %v1343
    %1375 = vmatpush1.msra.mxu0 %v1342
    %1376 = vmatprep.subr.mxu0 %v1341
    %1377 = vmatpush1.msra.mxu0 %v1340
    %1378 = vmatprep.subr.mxu0 %v1339
    %1379 = vmatpush1.msra.mxu0 %v1338
    %1380 = vmatprep.subr.mxu0 %v1337
    %1381 = vmatpush1.msra.mxu0 %v1336
    %1382 = vmatprep.subr.mxu0 %v1335
    %1383 = vmatpush1.msra.mxu0 %v1334
    %1384 = vmatprep.subr.mxu0 0.0
    %1385 = vmatpush2.msra.mxu0 0.0
    %1386 = vmatprep.subr.mxu0 0.0
    %1387 = vmatpush2.msra.mxu0 0.0
    %1388 = vmatprep.subr.mxu0 0.0
    %1389 = vmatpush2.msra.mxu0 0.0
    %1390 = vmatprep.subr.mxu0 0.0
    %1391 = vmatpush2.msra.mxu0 0.0
    %1392 = vmatprep.subr.mxu0 0.0
    %1393 = vmatpush2.msra.mxu0 0.0
    %1394 = vmatprep.subr.mxu0 0.0
    %1395 = vmatpush2.msra.mxu0 0.0
    %1396 = vmatprep.subr.mxu0 0.0
    %1397 = vmatpush2.msra.mxu0 0.0
    %1398 = vmatprep.subr.mxu0 0.0
    %1399 = vmatpush2.msra.mxu0 0.0
    %1400 = vmatprep.subr.mxu0 0.0
    %1401 = vmatpush2.msra.mxu0 0.0
    %1402 = vmatprep.subr.mxu0 0.0
    %1403 = vmatpush2.msra.mxu0 0.0
    %1404 = vmatprep.subr.mxu0 0.0
    %1405 = vmatpush2.msra.mxu0 0.0
    %1406 = vmatprep.subr.mxu0 0.0
    %1407 = vmatpush2.msra.mxu0 0.0
    %1408 = vmatprep.subr.mxu0 0.0
    %1409 = vmatpush2.msra.mxu0 0.0
    %1410 = vmatprep.subr.mxu0 0.0
    %1411 = vmatpush2.msra.mxu0 0.0
    %1412 = vmatprep.subr.mxu0 0.0
    %1413 = vmatpush2.msra.mxu0 0.0
    %1414 = vmatprep.subr.mxu0 0.0
    %1415 = vmatpush2.msra.mxu0 0.0
    %1416 = vmatprep.mubr.f32.mxu0 0.0
    %1417 = vmatmul.mubr.f32.gmra.mxu0 %v263
    %v1418 = vpop.f32.mrf.mxu0
    %v1419 = vadd.f32 0.0, %v1418
    %v1420 = vpop.f32.mrf.mxu0
    %v1421 = vadd.f32 0.0, %v1420
    %1422 = vdwg.mxu0
    %v1423 = vadd.f32 %v1350, %v1419
    %v1424 = vadd.f32 %v1351, %v1421
    %v1425 = vmul.f32 %v1423, 0.5
    %v1426 = vmul.f32 %v1424, 0.5
    %v1427 = vtanh.pop %v1425
    %v1428 = vtanh.pop %v1426
    %v1429 = vmul.f32 %v1427, 0.5
    %v1430 = vmul.f32 %v1428, 0.5
    %v1431 = vadd.f32 %v1429, 0.5
    %v1432 = vadd.f32 %v1430, 0.5
    %v1433 = vtanh.pop %v1424
    %v1434 = vmul.f32 %v1431, 0.0
    %1436 = vrot.lane.b32.xlu0 %v1433, 64
    %v1437 = vpop.permute.xlu0 %1436
    %v1439 = vmul.f32 %v1431, %v1437
    %1441 = vrot.lane.b32.xlu0 %v1439, 64
    %v1442 = vpop.permute.xlu0 %1441
    %v1444 = vadd.f32 %v1434, %v1442
    %v1445 = vtanh.pop %v1444
    %1447 = vrot.lane.b32.xlu0 %v1445, 64
    %v1448 = vpop.permute.xlu0 %1447
    %v1450 = vmul.f32 %v1432, %v1448
    %1451 = vst.msk [vmem:[%s7] sm:$0xff] %vm364, %v1450
    %1452 = vst.msk [vmem:[%s7 + $0x38] sm:$0xff] %vm366, %v1450
    %v1453 = vld [vmem:[#allocation2 + $0x10] sm:$0xff]
    %v1454 = vld [vmem:[#allocation2 + $0x18] sm:$0xff]
    %v1456 = vsel %vm90, %v1450, 0
    %1458 = vmatprep.subr.mxu0 0.0
    %1459 = vmatpush1.msra.mxu0 0.0
    %1460 = vmatprep.subr.mxu0 0.0
    %1461 = vmatpush1.msra.mxu0 0.0
    %1462 = vmatprep.subr.mxu0 0.0
    %1463 = vmatpush1.msra.mxu0 0.0
    %1464 = vmatprep.subr.mxu0 0.0
    %1465 = vmatpush1.msra.mxu0 0.0
    %1466 = vmatprep.subr.mxu0 0.0
    %1467 = vmatpush1.msra.mxu0 0.0
    %1468 = vmatprep.subr.mxu0 0.0
    %1469 = vmatpush1.msra.mxu0 0.0
    %1470 = vmatprep.subr.mxu0 0.0
    %1471 = vmatpush1.msra.mxu0 0.0
    %1472 = vmatprep.subr.mxu0 0.0
    %1473 = vmatpush1.msra.mxu0 0.0
    %1474 = vmatprep.subr.mxu0 %v1349
    %1475 = vmatpush1.msra.mxu0 %v1348
    %1476 = vmatprep.subr.mxu0 %v1347
    %1477 = vmatpush1.msra.mxu0 %v1346
    %1478 = vmatprep.subr.mxu0 %v1345
    %1479 = vmatpush1.msra.mxu0 %v1344
    %1480 = vmatprep.subr.mxu0 %v1343
    %1481 = vmatpush1.msra.mxu0 %v1342
    %1482 = vmatprep.subr.mxu0 %v1341
    %1483 = vmatpush1.msra.mxu0 %v1340
    %1484 = vmatprep.subr.mxu0 %v1339
    %1485 = vmatpush1.msra.mxu0 %v1338
    %1486 = vmatprep.subr.mxu0 %v1337
    %1487 = vmatpush1.msra.mxu0 %v1336
    %1488 = vmatprep.subr.mxu0 %v1335
    %1489 = vmatpush1.msra.mxu0 %v1334
    %1490 = vmatprep.subr.mxu0 0.0
    %1491 = vmatpush2.msra.mxu0 0.0
    %1492 = vmatprep.subr.mxu0 0.0
    %1493 = vmatpush2.msra.mxu0 0.0
    %1494 = vmatprep.subr.mxu0 0.0
    %1495 = vmatpush2.msra.mxu0 0.0
    %1496 = vmatprep.subr.mxu0 0.0
    %1497 = vmatpush2.msra.mxu0 0.0
    %1498 = vmatprep.subr.mxu0 0.0
    %1499 = vmatpush2.msra.mxu0 0.0
    %1500 = vmatprep.subr.mxu0 0.0
    %1501 = vmatpush2.msra.mxu0 0.0
    %1502 = vmatprep.subr.mxu0 0.0
    %1503 = vmatpush2.msra.mxu0 0.0
    %1504 = vmatprep.subr.mxu0 0.0
    %1505 = vmatpush2.msra.mxu0 0.0
    %1506 = vmatprep.subr.mxu0 0.0
    %1507 = vmatpush2.msra.mxu0 0.0
    %1508 = vmatprep.subr.mxu0 0.0
    %1509 = vmatpush2.msra.mxu0 0.0
    %1510 = vmatprep.subr.mxu0 0.0
    %1511 = vmatpush2.msra.mxu0 0.0
    %1512 = vmatprep.subr.mxu0 0.0
    %1513 = vmatpush2.msra.mxu0 0.0
    %1514 = vmatprep.subr.mxu0 0.0
    %1515 = vmatpush2.msra.mxu0 0.0
    %1516 = vmatprep.subr.mxu0 0.0
    %1517 = vmatpush2.msra.mxu0 0.0
    %1518 = vmatprep.subr.mxu0 0.0
    %1519 = vmatpush2.msra.mxu0 0.0
    %1520 = vmatprep.subr.mxu0 0.0
    %1521 = vmatpush2.msra.mxu0 0.0
    %1522 = vmatprep.mubr.f32.mxu0 0.0
    %1523 = vmatmul.mubr.f32.gmra.mxu0 %v1456
    %v1524 = vpop.f32.mrf.mxu0
    %v1525 = vadd.f32 0.0, %v1524
    %v1526 = vpop.f32.mrf.mxu0
    %v1527 = vadd.f32 0.0, %v1526
    %1528 = vdwg.mxu0
    %v1529 = vadd.f32 %v1453, %v1525
    %v1530 = vadd.f32 %v1454, %v1527
    %v1531 = vmul.f32 %v1529, 0.5
    %v1532 = vmul.f32 %v1530, 0.5
    %v1533 = vtanh.pop %v1531
    %v1534 = vtanh.pop %v1532
    %v1535 = vmul.f32 %v1533, 0.5
    %v1536 = vmul.f32 %v1534, 0.5
    %v1537 = vadd.f32 %v1535, 0.5
    %v1538 = vadd.f32 %v1536, 0.5
    %v1539 = vtanh.pop %v1530
    %v1540 = vmul.f32 %v1537, %v1444
    %1542 = vrot.lane.b32.xlu0 %v1539, 64
    %v1543 = vpop.permute.xlu0 %1542
    %v1545 = vmul.f32 %v1537, %v1543
    %1547 = vrot.lane.b32.xlu0 %v1545, 64
    %v1548 = vpop.permute.xlu0 %1547
    %v1550 = vadd.f32 %v1540, %v1548
    %v1551 = vtanh.pop %v1550
    %1553 = vrot.lane.b32.xlu0 %v1551, 64
    %v1554 = vpop.permute.xlu0 %1553
    %v1556 = vmul.f32 %v1538, %v1554
    %1557 = vst.msk [vmem:[%s7 + $0x8] sm:$0xff] %vm364, %v1556
    %1558 = vst.msk [vmem:[%s7 + $0x30] sm:$0xff] %vm366, %v1556
    %v1559 = vld [vmem:[#allocation2 + $0x20] sm:$0xff]
    %v1560 = vld [vmem:[#allocation2 + $0x28] sm:$0xff]
    %v1562 = vsel %vm90, %v1556, 0
    %1564 = vmatprep.subr.mxu0 0.0
    %1565 = vmatpush1.msra.mxu0 0.0
    %1566 = vmatprep.subr.mxu0 0.0
    %1567 = vmatpush1.msra.mxu0 0.0
    %1568 = vmatprep.subr.mxu0 0.0
    %1569 = vmatpush1.msra.mxu0 0.0
    %1570 = vmatprep.subr.mxu0 0.0
    %1571 = vmatpush1.msra.mxu0 0.0
    %1572 = vmatprep.subr.mxu0 0.0
    %1573 = vmatpush1.msra.mxu0 0.0
    %1574 = vmatprep.subr.mxu0 0.0
    %1575 = vmatpush1.msra.mxu0 0.0
    %1576 = vmatprep.subr.mxu0 0.0
    %1577 = vmatpush1.msra.mxu0 0.0
    %1578 = vmatprep.subr.mxu0 0.0
    %1579 = vmatpush1.msra.mxu0 0.0
    %1580 = vmatprep.subr.mxu0 %v1349
    %1581 = vmatpush1.msra.mxu0 %v1348
    %1582 = vmatprep.subr.mxu0 %v1347
    %1583 = vmatpush1.msra.mxu0 %v1346
    %1584 = vmatprep.subr.mxu0 %v1345
    %1585 = vmatpush1.msra.mxu0 %v1344
    %1586 = vmatprep.subr.mxu0 %v1343
    %1587 = vmatpush1.msra.mxu0 %v1342
    %1588 = vmatprep.subr.mxu0 %v1341
    %1589 = vmatpush1.msra.mxu0 %v1340
    %1590 = vmatprep.subr.mxu0 %v1339
    %1591 = vmatpush1.msra.mxu0 %v1338
    %1592 = vmatprep.subr.mxu0 %v1337
    %1593 = vmatpush1.msra.mxu0 %v1336
    %1594 = vmatprep.subr.mxu0 %v1335
    %1595 = vmatpush1.msra.mxu0 %v1334
    %1596 = vmatprep.subr.mxu0 0.0
    %1597 = vmatpush2.msra.mxu0 0.0
    %1598 = vmatprep.subr.mxu0 0.0
    %1599 = vmatpush2.msra.mxu0 0.0
    %1600 = vmatprep.subr.mxu0 0.0
    %1601 = vmatpush2.msra.mxu0 0.0
    %1602 = vmatprep.subr.mxu0 0.0
    %1603 = vmatpush2.msra.mxu0 0.0
    %1604 = vmatprep.subr.mxu0 0.0
    %1605 = vmatpush2.msra.mxu0 0.0
    %1606 = vmatprep.subr.mxu0 0.0
    %1607 = vmatpush2.msra.mxu0 0.0
    %1608 = vmatprep.subr.mxu0 0.0
    %1609 = vmatpush2.msra.mxu0 0.0
    %1610 = vmatprep.subr.mxu0 0.0
    %1611 = vmatpush2.msra.mxu0 0.0
    %1612 = vmatprep.subr.mxu0 0.0
    %1613 = vmatpush2.msra.mxu0 0.0
    %1614 = vmatprep.subr.mxu0 0.0
    %1615 = vmatpush2.msra.mxu0 0.0
    %1616 = vmatprep.subr.mxu0 0.0
    %1617 = vmatpush2.msra.mxu0 0.0
    %1618 = vmatprep.subr.mxu0 0.0
    %1619 = vmatpush2.msra.mxu0 0.0
    %1620 = vmatprep.subr.mxu0 0.0
    %1621 = vmatpush2.msra.mxu0 0.0
    %1622 = vmatprep.subr.mxu0 0.0
    %1623 = vmatpush2.msra.mxu0 0.0
    %1624 = vmatprep.subr.mxu0 0.0
    %1625 = vmatpush2.msra.mxu0 0.0
    %1626 = vmatprep.subr.mxu0 0.0
    %1627 = vmatpush2.msra.mxu0 0.0
    %1628 = vmatprep.mubr.f32.mxu0 0.0
    %1629 = vmatmul.mubr.f32.gmra.mxu0 %v1562
    %v1630 = vpop.f32.mrf.mxu0
    %v1631 = vadd.f32 0.0, %v1630
    %v1632 = vpop.f32.mrf.mxu0
    %v1633 = vadd.f32 0.0, %v1632
    %1634 = vdwg.mxu0
    %v1635 = vadd.f32 %v1559, %v1631
    %v1636 = vadd.f32 %v1560, %v1633
    %v1637 = vmul.f32 %v1635, 0.5
    %v1638 = vmul.f32 %v1636, 0.5
    %v1639 = vtanh.pop %v1637
    %v1640 = vtanh.pop %v1638
    %v1641 = vmul.f32 %v1639, 0.5
    %v1642 = vmul.f32 %v1640, 0.5
    %v1643 = vadd.f32 %v1641, 0.5
    %v1644 = vadd.f32 %v1642, 0.5
    %v1645 = vtanh.pop %v1636
    %v1646 = vmul.f32 %v1643, %v1550
    %1648 = vrot.lane.b32.xlu0 %v1645, 64
    %v1649 = vpop.permute.xlu0 %1648
    %v1651 = vmul.f32 %v1643, %v1649
    %1653 = vrot.lane.b32.xlu0 %v1651, 64
    %v1654 = vpop.permute.xlu0 %1653
    %v1656 = vadd.f32 %v1646, %v1654
    %v1657 = vtanh.pop %v1656
    %1659 = vrot.lane.b32.xlu0 %v1657, 64
    %v1660 = vpop.permute.xlu0 %1659
    %v1662 = vmul.f32 %v1644, %v1660
    %1663 = vst.msk [vmem:[%s7 + $0x10] sm:$0xff] %vm364, %v1662
    %1664 = vst.msk [vmem:[%s7 + $0x28] sm:$0xff] %vm366, %v1662
    %v1665 = vld [vmem:[#allocation2 + $0x30] sm:$0xff]
    %v1666 = vld [vmem:[#allocation2 + $0x38] sm:$0xff]
    %v1668 = vsel %vm90, %v1662, 0
    %1670 = vmatprep.subr.mxu0 0.0
    %1671 = vmatpush1.msra.mxu0 0.0
    %1672 = vmatprep.subr.mxu0 0.0
    %1673 = vmatpush1.msra.mxu0 0.0
    %1674 = vmatprep.subr.mxu0 0.0
    %1675 = vmatpush1.msra.mxu0 0.0
    %1676 = vmatprep.subr.mxu0 0.0
    %1677 = vmatpush1.msra.mxu0 0.0
    %1678 = vmatprep.subr.mxu0 0.0
    %1679 = vmatpush1.msra.mxu0 0.0
    %1680 = vmatprep.subr.mxu0 0.0
    %1681 = vmatpush1.msra.mxu0 0.0
    %1682 = vmatprep.subr.mxu0 0.0
    %1683 = vmatpush1.msra.mxu0 0.0
    %1684 = vmatprep.subr.mxu0 0.0
    %1685 = vmatpush1.msra.mxu0 0.0
    %1686 = vmatprep.subr.mxu0 %v1349
    %1687 = vmatpush1.msra.mxu0 %v1348
    %1688 = vmatprep.subr.mxu0 %v1347
    %1689 = vmatpush1.msra.mxu0 %v1346
    %1690 = vmatprep.subr.mxu0 %v1345
    %1691 = vmatpush1.msra.mxu0 %v1344
    %1692 = vmatprep.subr.mxu0 %v1343
    %1693 = vmatpush1.msra.mxu0 %v1342
    %1694 = vmatprep.subr.mxu0 %v1341
    %1695 = vmatpush1.msra.mxu0 %v1340
    %1696 = vmatprep.subr.mxu0 %v1339
    %1697 = vmatpush1.msra.mxu0 %v1338
    %1698 = vmatprep.subr.mxu0 %v1337
    %1699 = vmatpush1.msra.mxu0 %v1336
    %1700 = vmatprep.subr.mxu0 %v1335
    %1701 = vmatpush1.msra.mxu0 %v1334
    %1702 = vmatprep.subr.mxu0 0.0
    %1703 = vmatpush2.msra.mxu0 0.0
    %1704 = vmatprep.subr.mxu0 0.0
    %1705 = vmatpush2.msra.mxu0 0.0
    %1706 = vmatprep.subr.mxu0 0.0
    %1707 = vmatpush2.msra.mxu0 0.0
    %1708 = vmatprep.subr.mxu0 0.0
    %1709 = vmatpush2.msra.mxu0 0.0
    %1710 = vmatprep.subr.mxu0 0.0
    %1711 = vmatpush2.msra.mxu0 0.0
    %1712 = vmatprep.subr.mxu0 0.0
    %1713 = vmatpush2.msra.mxu0 0.0
    %1714 = vmatprep.subr.mxu0 0.0
    %1715 = vmatpush2.msra.mxu0 0.0
    %1716 = vmatprep.subr.mxu0 0.0
    %1717 = vmatpush2.msra.mxu0 0.0
    %1718 = vmatprep.subr.mxu0 0.0
    %1719 = vmatpush2.msra.mxu0 0.0
    %1720 = vmatprep.subr.mxu0 0.0
    %1721 = vmatpush2.msra.mxu0 0.0
    %1722 = vmatprep.subr.mxu0 0.0
    %1723 = vmatpush2.msra.mxu0 0.0
    %1724 = vmatprep.subr.mxu0 0.0
    %1725 = vmatpush2.msra.mxu0 0.0
    %1726 = vmatprep.subr.mxu0 0.0
    %1727 = vmatpush2.msra.mxu0 0.0
    %1728 = vmatprep.subr.mxu0 0.0
    %1729 = vmatpush2.msra.mxu0 0.0
    %1730 = vmatprep.subr.mxu0 0.0
    %1731 = vmatpush2.msra.mxu0 0.0
    %1732 = vmatprep.subr.mxu0 0.0
    %1733 = vmatpush2.msra.mxu0 0.0
    %1734 = vmatprep.mubr.f32.mxu0 0.0
    %1735 = vmatmul.mubr.f32.gmra.mxu0 %v1668
    %v1736 = vpop.f32.mrf.mxu0
    %v1737 = vadd.f32 0.0, %v1736
    %v1738 = vpop.f32.mrf.mxu0
    %v1739 = vadd.f32 0.0, %v1738
    %1740 = vdwg.mxu0
    %v1741 = vadd.f32 %v1665, %v1737
    %v1742 = vadd.f32 %v1666, %v1739
    %v1743 = vmul.f32 %v1741, 0.5
    %v1744 = vmul.f32 %v1742, 0.5
    %v1745 = vtanh.pop %v1743
    %v1746 = vtanh.pop %v1744
    %v1747 = vmul.f32 %v1745, 0.5
    %v1748 = vmul.f32 %v1746, 0.5
    %v1749 = vadd.f32 %v1747, 0.5
    %v1750 = vadd.f32 %v1748, 0.5
    %v1751 = vtanh.pop %v1742
    %v1752 = vmul.f32 %v1749, %v1656
    %1754 = vrot.lane.b32.xlu0 %v1751, 64
    %v1755 = vpop.permute.xlu0 %1754
    %v1757 = vmul.f32 %v1749, %v1755
    %1759 = vrot.lane.b32.xlu0 %v1757, 64
    %v1760 = vpop.permute.xlu0 %1759
    %v1762 = vadd.f32 %v1752, %v1760
    %v1763 = vtanh.pop %v1762
    %1765 = vrot.lane.b32.xlu0 %v1763, 64
    %v1766 = vpop.permute.xlu0 %1765
    %v1768 = vmul.f32 %v1750, %v1766
    %1769 = vst.msk [vmem:[%s7 + $0x18] sm:$0xff] %vm364, %v1768
    %1770 = vst.msk [vmem:[%s7 + $0x20] sm:$0xff] %vm366, %v1768
    %v1771 = vld [vmem:[#allocation2 + $0x40] sm:$0xff]
    %v1772 = vld [vmem:[#allocation2 + $0x48] sm:$0xff]
    %v1774 = vsel %vm90, %v1768, 0
    %1776 = vmatprep.subr.mxu0 0.0
    %1777 = vmatpush1.msra.mxu0 0.0
    %1778 = vmatprep.subr.mxu0 0.0
    %1779 = vmatpush1.msra.mxu0 0.0
    %1780 = vmatprep.subr.mxu0 0.0
    %1781 = vmatpush1.msra.mxu0 0.0
    %1782 = vmatprep.subr.mxu0 0.0
    %1783 = vmatpush1.msra.mxu0 0.0
    %1784 = vmatprep.subr.mxu0 0.0
    %1785 = vmatpush1.msra.mxu0 0.0
    %1786 = vmatprep.subr.mxu0 0.0
    %1787 = vmatpush1.msra.mxu0 0.0
    %1788 = vmatprep.subr.mxu0 0.0
    %1789 = vmatpush1.msra.mxu0 0.0
    %1790 = vmatprep.subr.mxu0 0.0
    %1791 = vmatpush1.msra.mxu0 0.0
    %1792 = vmatprep.subr.mxu0 %v1349
    %1793 = vmatpush1.msra.mxu0 %v1348
    %1794 = vmatprep.subr.mxu0 %v1347
    %1795 = vmatpush1.msra.mxu0 %v1346
    %1796 = vmatprep.subr.mxu0 %v1345
    %1797 = vmatpush1.msra.mxu0 %v1344
    %1798 = vmatprep.subr.mxu0 %v1343
    %1799 = vmatpush1.msra.mxu0 %v1342
    %1800 = vmatprep.subr.mxu0 %v1341
    %1801 = vmatpush1.msra.mxu0 %v1340
    %1802 = vmatprep.subr.mxu0 %v1339
    %1803 = vmatpush1.msra.mxu0 %v1338
    %1804 = vmatprep.subr.mxu0 %v1337
    %1805 = vmatpush1.msra.mxu0 %v1336
    %1806 = vmatprep.subr.mxu0 %v1335
    %1807 = vmatpush1.msra.mxu0 %v1334
    %1808 = vmatprep.subr.mxu0 0.0
    %1809 = vmatpush2.msra.mxu0 0.0
    %1810 = vmatprep.subr.mxu0 0.0
    %1811 = vmatpush2.msra.mxu0 0.0
    %1812 = vmatprep.subr.mxu0 0.0
    %1813 = vmatpush2.msra.mxu0 0.0
    %1814 = vmatprep.subr.mxu0 0.0
    %1815 = vmatpush2.msra.mxu0 0.0
    %1816 = vmatprep.subr.mxu0 0.0
    %1817 = vmatpush2.msra.mxu0 0.0
    %1818 = vmatprep.subr.mxu0 0.0
    %1819 = vmatpush2.msra.mxu0 0.0
    %1820 = vmatprep.subr.mxu0 0.0
    %1821 = vmatpush2.msra.mxu0 0.0
    %1822 = vmatprep.subr.mxu0 0.0
    %1823 = vmatpush2.msra.mxu0 0.0
    %1824 = vmatprep.subr.mxu0 0.0
    %1825 = vmatpush2.msra.mxu0 0.0
    %1826 = vmatprep.subr.mxu0 0.0
    %1827 = vmatpush2.msra.mxu0 0.0
    %1828 = vmatprep.subr.mxu0 0.0
    %1829 = vmatpush2.msra.mxu0 0.0
    %1830 = vmatprep.subr.mxu0 0.0
    %1831 = vmatpush2.msra.mxu0 0.0
    %1832 = vmatprep.subr.mxu0 0.0
    %1833 = vmatpush2.msra.mxu0 0.0
    %1834 = vmatprep.subr.mxu0 0.0
    %1835 = vmatpush2.msra.mxu0 0.0
    %1836 = vmatprep.subr.mxu0 0.0
    %1837 = vmatpush2.msra.mxu0 0.0
    %1838 = vmatprep.subr.mxu0 0.0
    %1839 = vmatpush2.msra.mxu0 0.0
    %1840 = vmatprep.mubr.f32.mxu0 0.0
    %1841 = vmatmul.mubr.f32.gmra.mxu0 %v1774
    %v1842 = vpop.f32.mrf.mxu0
    %v1843 = vadd.f32 0.0, %v1842
    %v1844 = vpop.f32.mrf.mxu0
    %v1845 = vadd.f32 0.0, %v1844
    %1846 = vdwg.mxu0
    %v1847 = vadd.f32 %v1771, %v1843
    %v1848 = vadd.f32 %v1772, %v1845
    %v1849 = vmul.f32 %v1847, 0.5
    %v1850 = vmul.f32 %v1848, 0.5
    %v1851 = vtanh.pop %v1849
    %v1852 = vtanh.pop %v1850
    %v1853 = vmul.f32 %v1851, 0.5
    %v1854 = vmul.f32 %v1852, 0.5
    %v1855 = vadd.f32 %v1853, 0.5
    %v1856 = vadd.f32 %v1854, 0.5
    %v1857 = vtanh.pop %v1848
    %v1858 = vmul.f32 %v1855, %v1762
    %1860 = vrot.lane.b32.xlu0 %v1857, 64
    %v1861 = vpop.permute.xlu0 %1860
    %v1863 = vmul.f32 %v1855, %v1861
    %1865 = vrot.lane.b32.xlu0 %v1863, 64
    %v1866 = vpop.permute.xlu0 %1865
    %v1868 = vadd.f32 %v1858, %v1866
    %v1869 = vtanh.pop %v1868
    %1871 = vrot.lane.b32.xlu0 %v1869, 64
    %v1872 = vpop.permute.xlu0 %1871
    %v1874 = vmul.f32 %v1856, %v1872
    %1875 = vst.msk [vmem:[%s7 + $0x20] sm:$0xff] %vm364, %v1874
    %1876 = vst.msk [vmem:[%s7 + $0x18] sm:$0xff] %vm366, %v1874
    %v1877 = vld [vmem:[#allocation2 + $0x50] sm:$0xff]
    %v1878 = vld [vmem:[#allocation2 + $0x58] sm:$0xff]
    %v1880 = vsel %vm90, %v1874, 0
    %1882 = vmatprep.subr.mxu0 0.0
    %1883 = vmatpush1.msra.mxu0 0.0
    %1884 = vmatprep.subr.mxu0 0.0
    %1885 = vmatpush1.msra.mxu0 0.0
    %1886 = vmatprep.subr.mxu0 0.0
    %1887 = vmatpush1.msra.mxu0 0.0
    %1888 = vmatprep.subr.mxu0 0.0
    %1889 = vmatpush1.msra.mxu0 0.0
    %1890 = vmatprep.subr.mxu0 0.0
    %1891 = vmatpush1.msra.mxu0 0.0
    %1892 = vmatprep.subr.mxu0 0.0
    %1893 = vmatpush1.msra.mxu0 0.0
    %1894 = vmatprep.subr.mxu0 0.0
    %1895 = vmatpush1.msra.mxu0 0.0
    %1896 = vmatprep.subr.mxu0 0.0
    %1897 = vmatpush1.msra.mxu0 0.0
    %1898 = vmatprep.subr.mxu0 %v1349
    %1899 = vmatpush1.msra.mxu0 %v1348
    %1900 = vmatprep.subr.mxu0 %v1347
    %1901 = vmatpush1.msra.mxu0 %v1346
    %1902 = vmatprep.subr.mxu0 %v1345
    %1903 = vmatpush1.msra.mxu0 %v1344
    %1904 = vmatprep.subr.mxu0 %v1343
    %1905 = vmatpush1.msra.mxu0 %v1342
    %1906 = vmatprep.subr.mxu0 %v1341
    %1907 = vmatpush1.msra.mxu0 %v1340
    %1908 = vmatprep.subr.mxu0 %v1339
    %1909 = vmatpush1.msra.mxu0 %v1338
    %1910 = vmatprep.subr.mxu0 %v1337
    %1911 = vmatpush1.msra.mxu0 %v1336
    %1912 = vmatprep.subr.mxu0 %v1335
    %1913 = vmatpush1.msra.mxu0 %v1334
    %1914 = vmatprep.subr.mxu0 0.0
    %1915 = vmatpush2.msra.mxu0 0.0
    %1916 = vmatprep.subr.mxu0 0.0
    %1917 = vmatpush2.msra.mxu0 0.0
    %1918 = vmatprep.subr.mxu0 0.0
    %1919 = vmatpush2.msra.mxu0 0.0
    %1920 = vmatprep.subr.mxu0 0.0
    %1921 = vmatpush2.msra.mxu0 0.0
    %1922 = vmatprep.subr.mxu0 0.0
    %1923 = vmatpush2.msra.mxu0 0.0
    %1924 = vmatprep.subr.mxu0 0.0
    %1925 = vmatpush2.msra.mxu0 0.0
    %1926 = vmatprep.subr.mxu0 0.0
    %1927 = vmatpush2.msra.mxu0 0.0
    %1928 = vmatprep.subr.mxu0 0.0
    %1929 = vmatpush2.msra.mxu0 0.0
    %1930 = vmatprep.subr.mxu0 0.0
    %1931 = vmatpush2.msra.mxu0 0.0
    %1932 = vmatprep.subr.mxu0 0.0
    %1933 = vmatpush2.msra.mxu0 0.0
    %1934 = vmatprep.subr.mxu0 0.0
    %1935 = vmatpush2.msra.mxu0 0.0
    %1936 = vmatprep.subr.mxu0 0.0
    %1937 = vmatpush2.msra.mxu0 0.0
    %1938 = vmatprep.subr.mxu0 0.0
    %1939 = vmatpush2.msra.mxu0 0.0
    %1940 = vmatprep.subr.mxu0 0.0
    %1941 = vmatpush2.msra.mxu0 0.0
    %1942 = vmatprep.subr.mxu0 0.0
    %1943 = vmatpush2.msra.mxu0 0.0
    %1944 = vmatprep.subr.mxu0 0.0
    %1945 = vmatpush2.msra.mxu0 0.0
    %1946 = vmatprep.mubr.f32.mxu0 0.0
    %1947 = vmatmul.mubr.f32.gmra.mxu0 %v1880
    %v1948 = vpop.f32.mrf.mxu0
    %v1949 = vadd.f32 0.0, %v1948
    %v1950 = vpop.f32.mrf.mxu0
    %v1951 = vadd.f32 0.0, %v1950
    %1952 = vdwg.mxu0
    %v1953 = vadd.f32 %v1877, %v1949
    %v1954 = vadd.f32 %v1878, %v1951
    %v1955 = vmul.f32 %v1953, 0.5
    %v1956 = vmul.f32 %v1954, 0.5
    %v1957 = vtanh.pop %v1955
    %v1958 = vtanh.pop %v1956
    %v1959 = vmul.f32 %v1957, 0.5
    %v1960 = vmul.f32 %v1958, 0.5
    %v1961 = vadd.f32 %v1959, 0.5
    %v1962 = vadd.f32 %v1960, 0.5
    %v1963 = vtanh.pop %v1954
    %v1964 = vmul.f32 %v1961, %v1868
    %1966 = vrot.lane.b32.xlu0 %v1963, 64
    %v1967 = vpop.permute.xlu0 %1966
    %v1969 = vmul.f32 %v1961, %v1967
    %1971 = vrot.lane.b32.xlu0 %v1969, 64
    %v1972 = vpop.permute.xlu0 %1971
    %v1974 = vadd.f32 %v1964, %v1972
    %v1975 = vtanh.pop %v1974
    %1977 = vrot.lane.b32.xlu0 %v1975, 64
    %v1978 = vpop.permute.xlu0 %1977
    %v1980 = vmul.f32 %v1962, %v1978
    %1981 = vst.msk [vmem:[%s7 + $0x28] sm:$0xff] %vm364, %v1980
    %1982 = vst.msk [vmem:[%s7 + $0x10] sm:$0xff] %vm366, %v1980
    %v1983 = vld [vmem:[#allocation2 + $0x60] sm:$0xff]
    %v1984 = vld [vmem:[#allocation2 + $0x68] sm:$0xff]
    %v1986 = vsel %vm90, %v1980, 0
    %1988 = vmatprep.subr.mxu0 0.0
    %1989 = vmatpush1.msra.mxu0 0.0
    %1990 = vmatprep.subr.mxu0 0.0
    %1991 = vmatpush1.msra.mxu0 0.0
    %1992 = vmatprep.subr.mxu0 0.0
    %1993 = vmatpush1.msra.mxu0 0.0
    %1994 = vmatprep.subr.mxu0 0.0
    %1995 = vmatpush1.msra.mxu0 0.0
    %1996 = vmatprep.subr.mxu0 0.0
    %1997 = vmatpush1.msra.mxu0 0.0
    %1998 = vmatprep.subr.mxu0 0.0
    %1999 = vmatpush1.msra.mxu0 0.0
    %2000 = vmatprep.subr.mxu0 0.0
    %2001 = vmatpush1.msra.mxu0 0.0
    %2002 = vmatprep.subr.mxu0 0.0
    %2003 = vmatpush1.msra.mxu0 0.0
    %2004 = vmatprep.subr.mxu0 %v1349
    %2005 = vmatpush1.msra.mxu0 %v1348
    %2006 = vmatprep.subr.mxu0 %v1347
    %2007 = vmatpush1.msra.mxu0 %v1346
    %2008 = vmatprep.subr.mxu0 %v1345
    %2009 = vmatpush1.msra.mxu0 %v1344
    %2010 = vmatprep.subr.mxu0 %v1343
    %2011 = vmatpush1.msra.mxu0 %v1342
    %2012 = vmatprep.subr.mxu0 %v1341
    %2013 = vmatpush1.msra.mxu0 %v1340
    %2014 = vmatprep.subr.mxu0 %v1339
    %2015 = vmatpush1.msra.mxu0 %v1338
    %2016 = vmatprep.subr.mxu0 %v1337
    %2017 = vmatpush1.msra.mxu0 %v1336
    %2018 = vmatprep.subr.mxu0 %v1335
    %2019 = vmatpush1.msra.mxu0 %v1334
    %2020 = vmatprep.subr.mxu0 0.0
    %2021 = vmatpush2.msra.mxu0 0.0
    %2022 = vmatprep.subr.mxu0 0.0
    %2023 = vmatpush2.msra.mxu0 0.0
    %2024 = vmatprep.subr.mxu0 0.0
    %2025 = vmatpush2.msra.mxu0 0.0
    %2026 = vmatprep.subr.mxu0 0.0
    %2027 = vmatpush2.msra.mxu0 0.0
    %2028 = vmatprep.subr.mxu0 0.0
    %2029 = vmatpush2.msra.mxu0 0.0
    %2030 = vmatprep.subr.mxu0 0.0
    %2031 = vmatpush2.msra.mxu0 0.0
    %2032 = vmatprep.subr.mxu0 0.0
    %2033 = vmatpush2.msra.mxu0 0.0
    %2034 = vmatprep.subr.mxu0 0.0
    %2035 = vmatpush2.msra.mxu0 0.0
    %2036 = vmatprep.subr.mxu0 0.0
    %2037 = vmatpush2.msra.mxu0 0.0
    %2038 = vmatprep.subr.mxu0 0.0
    %2039 = vmatpush2.msra.mxu0 0.0
    %2040 = vmatprep.subr.mxu0 0.0
    %2041 = vmatpush2.msra.mxu0 0.0
    %2042 = vmatprep.subr.mxu0 0.0
    %2043 = vmatpush2.msra.mxu0 0.0
    %2044 = vmatprep.subr.mxu0 0.0
    %2045 = vmatpush2.msra.mxu0 0.0
    %2046 = vmatprep.subr.mxu0 0.0
    %2047 = vmatpush2.msra.mxu0 0.0
    %2048 = vmatprep.subr.mxu0 0.0
    %2049 = vmatpush2.msra.mxu0 0.0
    %2050 = vmatprep.subr.mxu0 0.0
    %2051 = vmatpush2.msra.mxu0 0.0
    %2052 = vmatprep.mubr.f32.mxu0 0.0
    %2053 = vmatmul.mubr.f32.gmra.mxu0 %v1986
    %v2054 = vpop.f32.mrf.mxu0
    %v2055 = vadd.f32 0.0, %v2054
    %v2056 = vpop.f32.mrf.mxu0
    %v2057 = vadd.f32 0.0, %v2056
    %2058 = vdwg.mxu0
    %v2059 = vadd.f32 %v1983, %v2055
    %v2060 = vadd.f32 %v1984, %v2057
    %v2061 = vmul.f32 %v2059, 0.5
    %v2062 = vmul.f32 %v2060, 0.5
    %v2063 = vtanh.pop %v2061
    %v2064 = vtanh.pop %v2062
    %v2065 = vmul.f32 %v2063, 0.5
    %v2066 = vmul.f32 %v2064, 0.5
    %v2067 = vadd.f32 %v2065, 0.5
    %v2068 = vadd.f32 %v2066, 0.5
    %v2069 = vtanh.pop %v2060
    %v2070 = vmul.f32 %v2067, %v1974
    %2072 = vrot.lane.b32.xlu0 %v2069, 64
    %v2073 = vpop.permute.xlu0 %2072
    %v2075 = vmul.f32 %v2067, %v2073
    %2077 = vrot.lane.b32.xlu0 %v2075, 64
    %v2078 = vpop.permute.xlu0 %2077
    %v2080 = vadd.f32 %v2070, %v2078
    %v2081 = vtanh.pop %v2080
    %2083 = vrot.lane.b32.xlu0 %v2081, 64
    %v2084 = vpop.permute.xlu0 %2083
    %v2086 = vmul.f32 %v2068, %v2084
    %2087 = vst.msk [vmem:[%s7 + $0x30] sm:$0xff] %vm364, %v2086
    %2088 = vst.msk [vmem:[%s7 + $0x8] sm:$0xff] %vm366, %v2086
    %v2089 = vld [vmem:[#allocation2 + $0x70] sm:$0xff]
    %v2090 = vld [vmem:[#allocation2 + $0x78] sm:$0xff]
    %v2092 = vsel %vm90, %v2086, 0
    %2094 = vmatprep.subr.mxu0 0.0
    %2095 = vmatpush1.msra.mxu0 0.0
    %2096 = vmatprep.subr.mxu0 0.0
    %2097 = vmatpush1.msra.mxu0 0.0
    %2098 = vmatprep.subr.mxu0 0.0
    %2099 = vmatpush1.msra.mxu0 0.0
    %2100 = vmatprep.subr.mxu0 0.0
    %2101 = vmatpush1.msra.mxu0 0.0
    %2102 = vmatprep.subr.mxu0 0.0
    %2103 = vmatpush1.msra.mxu0 0.0
    %2104 = vmatprep.subr.mxu0 0.0
    %2105 = vmatpush1.msra.mxu0 0.0
    %2106 = vmatprep.subr.mxu0 0.0
    %2107 = vmatpush1.msra.mxu0 0.0
    %2108 = vmatprep.subr.mxu0 0.0
    %2109 = vmatpush1.msra.mxu0 0.0
    %2110 = vmatprep.subr.mxu0 %v1349
    %2111 = vmatpush1.msra.mxu0 %v1348
    %2112 = vmatprep.subr.mxu0 %v1347
    %2113 = vmatpush1.msra.mxu0 %v1346
    %2114 = vmatprep.subr.mxu0 %v1345
    %2115 = vmatpush1.msra.mxu0 %v1344
    %2116 = vmatprep.subr.mxu0 %v1343
    %2117 = vmatpush1.msra.mxu0 %v1342
    %2118 = vmatprep.subr.mxu0 %v1341
    %2119 = vmatpush1.msra.mxu0 %v1340
    %2120 = vmatprep.subr.mxu0 %v1339
    %2121 = vmatpush1.msra.mxu0 %v1338
    %2122 = vmatprep.subr.mxu0 %v1337
    %2123 = vmatpush1.msra.mxu0 %v1336
    %2124 = vmatprep.subr.mxu0 %v1335
    %2125 = vmatpush1.msra.mxu0 %v1334
    %2126 = vmatprep.subr.mxu0 0.0
    %2127 = vmatpush2.msra.mxu0 0.0
    %2128 = vmatprep.subr.mxu0 0.0
    %2129 = vmatpush2.msra.mxu0 0.0
    %2130 = vmatprep.subr.mxu0 0.0
    %2131 = vmatpush2.msra.mxu0 0.0
    %2132 = vmatprep.subr.mxu0 0.0
    %2133 = vmatpush2.msra.mxu0 0.0
    %2134 = vmatprep.subr.mxu0 0.0
    %2135 = vmatpush2.msra.mxu0 0.0
    %2136 = vmatprep.subr.mxu0 0.0
    %2137 = vmatpush2.msra.mxu0 0.0
    %2138 = vmatprep.subr.mxu0 0.0
    %2139 = vmatpush2.msra.mxu0 0.0
    %2140 = vmatprep.subr.mxu0 0.0
    %2141 = vmatpush2.msra.mxu0 0.0
    %2142 = vmatprep.subr.mxu0 0.0
    %2143 = vmatpush2.msra.mxu0 0.0
    %2144 = vmatprep.subr.mxu0 0.0
    %2145 = vmatpush2.msra.mxu0 0.0
    %2146 = vmatprep.subr.mxu0 0.0
    %2147 = vmatpush2.msra.mxu0 0.0
    %2148 = vmatprep.subr.mxu0 0.0
    %2149 = vmatpush2.msra.mxu0 0.0
    %2150 = vmatprep.subr.mxu0 0.0
    %2151 = vmatpush2.msra.mxu0 0.0
    %2152 = vmatprep.subr.mxu0 0.0
    %2153 = vmatpush2.msra.mxu0 0.0
    %2154 = vmatprep.subr.mxu0 0.0
    %2155 = vmatpush2.msra.mxu0 0.0
    %2156 = vmatprep.subr.mxu0 0.0
    %2157 = vmatpush2.msra.mxu0 0.0
    %2158 = vmatprep.mubr.f32.mxu0 0.0
    %2159 = vmatmul.mubr.f32.gmra.mxu0 %v2092
    %v2160 = vpop.f32.mrf.mxu0
    %v2161 = vadd.f32 0.0, %v2160
    %v2162 = vpop.f32.mrf.mxu0
    %v2163 = vadd.f32 0.0, %v2162
    %2164 = vdwg.mxu0
    %v2165 = vadd.f32 %v2089, %v2161
    %v2166 = vadd.f32 %v2090, %v2163
    %v2167 = vmul.f32 %v2165, 0.5
    %v2168 = vmul.f32 %v2166, 0.5
    %v2169 = vtanh.pop %v2167
    %v2170 = vtanh.pop %v2168
    %v2171 = vmul.f32 %v2169, 0.5
    %v2172 = vmul.f32 %v2170, 0.5
    %v2173 = vadd.f32 %v2171, 0.5
    %v2174 = vadd.f32 %v2172, 0.5
    %v2175 = vtanh.pop %v2166
    %v2176 = vmul.f32 %v2173, %v2080
    %2178 = vrot.lane.b32.xlu0 %v2175, 64
    %v2179 = vpop.permute.xlu0 %2178
    %v2181 = vmul.f32 %v2173, %v2179
    %2183 = vrot.lane.b32.xlu0 %v2181, 64
    %v2184 = vpop.permute.xlu0 %2183
    %v2186 = vadd.f32 %v2176, %v2184
    %v2187 = vtanh.pop %v2186
    %2189 = vrot.lane.b32.xlu0 %v2187, 64
    %v2190 = vpop.permute.xlu0 %2189
    %v2192 = vmul.f32 %v2174, %v2190
    %2193 = vst.msk [vmem:[%s7 + $0x38] sm:$0xff] %vm364, %v2192
    %2194 = vst.msk [vmem:[%s7] sm:$0xff] %vm366, %v2192
    // Predicated region
    $region38: #{bidirectional_lstm_forward.1} parent=1 // pred_check
      _
    $region39: #{bidirectional_lstm_forward.1} parent=1 // pred_check_branch
      %2196 = sbr.rel (0) target = $region41
    $region40: #{bidirectional_lstm_forward.1} parent=1 // pred_region
      _
    $region41: #{bidirectional_lstm_forward.1} parent=1 // pred_fallthru
      _
    // Predicated region
    $region42: #{bidirectional_lstm_forward.1} parent=1 // pred_check
      _
    $region43: #{bidirectional_lstm_forward.1} parent=1 // pred_check_branch
      %2198 = sbr.rel (0) target = $region45
    $region44: #{bidirectional_lstm_forward.1} parent=1 // pred_region
      _
    $region45: #{bidirectional_lstm_forward.1} parent=1 // pred_fallthru
      _
    %2199 = vsyncpa [#allocation5], 1
    %2200 = vsyncpa [#allocation7], 1

</llo_original>
